<compile_context>
chip_gen: v5e
topology: v5e:2x2
jax: 0.10.0
libtpu: 0.0.40
codegen_flags: <defaults>
</compile_context>

<pallas_src>
import random as pyrandom

import jax
import jax.numpy as jnp
from jax.experimental import pallas as pl
from jax.experimental.pallas import tpu as pltpu


# =============================================================================
# Encoder kernel 1: fused bidirectional LSTM layer (grid over time).
#   x is passed twice (forward-time and reversed-time index maps); the input
#   feature vector may arrive as 1 piece (src) or 2 pieces (prev layer halves).
# =============================================================================
def _make_bidir_lstm_kernel(num_x, H, emit_seq):
    def kernel(*refs):
        idx = 0
        xf = refs[idx:idx + num_x]; idx += num_x          # x pieces at time t
        xb = refs[idx:idx + num_x]; idx += num_x          # x pieces at time T-1-t
        wxf = refs[idx:idx + num_x]; idx += num_x         # (d_i, 4H) each
        whf = refs[idx]; bf = refs[idx + 1]; idx += 2     # (H, 4H), (1, 4H)
        wxb = refs[idx:idx + num_x]; idx += num_x
        whb = refs[idx]; bb = refs[idx + 1]; idx += 2
        if emit_seq:
            yf_ref = refs[idx]; yb_ref = refs[idx + 1]; idx += 2
        hf_ref, cf_ref, hb_ref, cb_ref = refs[idx:idx + 4]; idx += 4
        hf_sc, cf_sc, hb_sc, cb_sc = refs[idx:idx + 4]

        t = pl.program_id(0)

        @pl.when(t == 0)
        def _():
            hf_sc[...] = jnp.zeros_like(hf_sc)
            cf_sc[...] = jnp.zeros_like(cf_sc)
            hb_sc[...] = jnp.zeros_like(hb_sc)
            cb_sc[...] = jnp.zeros_like(cb_sc)

        def cell(x_refs, wx_refs, wh_ref, b_ref, h, c):
            # gates = x @ W_ih^T + h @ W_hh^T + (b_ih + b_hh); gate order i,f,g,o
            gates = jnp.dot(h, wh_ref[...],
                            preferred_element_type=jnp.float32) + b_ref[...]
            for xr, wr in zip(x_refs, wx_refs):
                gates = gates + jnp.dot(xr[0], wr[...],
                                        preferred_element_type=jnp.float32)
            i_g = jax.nn.sigmoid(gates[:, 0 * H:1 * H])
            f_g = jax.nn.sigmoid(gates[:, 1 * H:2 * H])
            g_g = jnp.tanh(gates[:, 2 * H:3 * H])
            o_g = jax.nn.sigmoid(gates[:, 3 * H:4 * H])
            c_new = f_g * c + i_g * g_g
            h_new = o_g * jnp.tanh(c_new)
            return h_new, c_new

        h_f, c_f = cell(xf, wxf, whf, bf, hf_sc[...], cf_sc[...])
        h_b, c_b = cell(xb, wxb, whb, bb, hb_sc[...], cb_sc[...])
        hf_sc[...] = h_f
        cf_sc[...] = c_f
        hb_sc[...] = h_b
        cb_sc[...] = c_b
        if emit_seq:
            yf_ref[0] = h_f
            yb_ref[0] = h_b

        @pl.when(t == pl.num_programs(0) - 1)
        def _():
            hf_ref[...] = h_f
            cf_ref[...] = c_f
            hb_ref[...] = h_b
            cb_ref[...] = c_b

    return kernel


def bidir_lstm_layer(x_pieces, w_ih_f, w_hh_f, b_f, w_ih_b, w_hh_b, b_b,
                     H, emit_seq):
    """x_pieces: list of (T,B,d_i) whose feature concat is the LSTM input."""
    T, B = x_pieces[0].shape[0], x_pieces[0].shape[1]
    dims = [p.shape[-1] for p in x_pieces]
    num_x = len(x_pieces)

    def split_wx(w_ih):                      # (4H, sum d) -> [(d_i, 4H)]
        parts, off = [], 0
        for d in dims:
            parts.append(jnp.transpose(w_ih[:, off:off + d]))
            off += d
        return parts

    wxf = split_wx(w_ih_f)
    wxb = split_wx(w_ih_b)
    whf = jnp.transpose(w_hh_f)
    whb = jnp.transpose(w_hh_b)
    bf2 = b_f.reshape(1, 4 * H)
    bb2 = b_b.reshape(1, 4 * H)

    fwd_seq = lambda d: pl.BlockSpec((1, B, d), lambda t: (t, 0, 0))
    rev_seq = lambda d: pl.BlockSpec((1, B, d), lambda t: (T - 1 - t, 0, 0))
    const = lambda s: pl.BlockSpec(s, lambda t: tuple(0 for _ in s))

    in_specs = ([fwd_seq(d) for d in dims] + [rev_seq(d) for d in dims]
                + [const(w.shape) for w in wxf]
                + [const(whf.shape), const(bf2.shape)]
                + [const(w.shape) for w in wxb]
                + [const(whb.shape), const(bb2.shape)])
    args = list(x_pieces) + list(x_pieces) + wxf + [whf, bf2] + wxb + [whb, bb2]

    out_specs, out_shape = [], []
    if emit_seq:
        out_specs += [fwd_seq(H), rev_seq(H)]
        out_shape += [jax.ShapeDtypeStruct((T, B, H), jnp.float32)] * 2
    out_specs += [pl.BlockSpec((B, H), lambda t: (0, 0))] * 4
    out_shape += [jax.ShapeDtypeStruct((B, H), jnp.float32)] * 4

    return pl.pallas_call(
        _make_bidir_lstm_kernel(num_x, H, emit_seq),
        grid=(T,),
        in_specs=in_specs,
        out_specs=out_specs,
        out_shape=out_shape,
        scratch_shapes=[pltpu.VMEM((B, H), jnp.float32)] * 4,
        compiler_params=pltpu.CompilerParams(
            dimension_semantics=("arbitrary",)),   # recurrence over time
    )(*args)


# =============================================================================
# Encoder kernel 2: LayerNorm over the virtual [y_f ; y_b] 2H vector + residual
# (optionally the layer-0 residual projection), producing two H-wide halves.
# =============================================================================
def _make_enc_ln_kernel(project, H):
    inv_den = 1.0 / float(2 * H)

    def kernel(*refs):
        idx = 0
        yf_ref, yb_ref = refs[idx:idx + 2]; idx += 2
        if project:
            src_ref, wrf_ref, wrb_ref, brf_ref, brb_ref = refs[idx:idx + 5]
            idx += 5
        else:
            rf_ref, rb_ref = refs[idx:idx + 2]; idx += 2
        gf_ref, gb_ref, betf_ref, betb_ref = refs[idx:idx + 4]; idx += 4
        of_ref, ob_ref = refs[idx:idx + 2]

        yf = yf_ref[0]                                   # (B, H)
        yb = yb_ref[0]
        mean = (jnp.sum(yf, axis=-1, keepdims=True)
                + jnp.sum(yb, axis=-1, keepdims=True)) * inv_den
        var = (jnp.sum(jnp.square(yf - mean), axis=-1, keepdims=True)
               + jnp.sum(jnp.square(yb - mean), axis=-1, keepdims=True)) * inv_den
        inv = jax.lax.rsqrt(var + 1e-5)                  # PyTorch LayerNorm eps
        nf = (yf - mean) * inv * gf_ref[...] + betf_ref[...]
        nb = (yb - mean) * inv * gb_ref[...] + betb_ref[...]
        if project:
            x = src_ref[0]
            res_f = jnp.dot(x, wrf_ref[...],
                            preferred_element_type=jnp.float32) + brf_ref[...]
            res_b = jnp.dot(x, wrb_ref[...],
                            preferred_element_type=jnp.float32) + brb_ref[...]
        else:
            res_f = rf_ref[0]
            res_b = rb_ref[0]
        of_ref[0] = nf + res_f
        ob_ref[0] = nb + res_b

    return kernel


def enc_ln_residual(y_f, y_b, res_pieces, ln_g, ln_b, H, w_res=None, b_res=None):
    T, B, _ = y_f.shape
    project = w_res is not None

    seq = lambda d: pl.BlockSpec((1, B, d), lambda t: (t, 0, 0))
    const = lambda s: pl.BlockSpec(s, lambda t: tuple(0 for _ in s))

    gf, gb = ln_g[:H].reshape(1, H), ln_g[H:].reshape(1, H)
    betf, betb = ln_b[:H].reshape(1, H), ln_b[H:].reshape(1, H)

    in_specs = [seq(H), seq(H)]
    args = [y_f, y_b]
    if project:
        src = res_pieces[0]
        wrf = jnp.transpose(w_res[:H, :])                # (I, H)
        wrb = jnp.transpose(w_res[H:, :])
        brf = b_res[:H].reshape(1, H)
        brb = b_res[H:].reshape(1, H)
        in_specs += [seq(src.shape[-1]), const(wrf.shape), const(wrb.shape),
                     const(brf.shape), const(brb.shape)]
        args += [src, wrf, wrb, brf, brb]
    else:
        rf, rb = res_pieces
        in_specs += [seq(H), seq(H)]
        args += [rf, rb]
    in_specs += [const((1, H))] * 4
    args += [gf, gb, betf, betb]

    return pl.pallas_call(
        _make_enc_ln_kernel(project, H),
        grid=(T,),
        in_specs=in_specs,
        out_specs=[seq(H), seq(H)],
        out_shape=[jax.ShapeDtypeStruct((T, B, H), jnp.float32)] * 2,
        compiler_params=pltpu.CompilerParams(
            dimension_semantics=("parallel",)),
    )(*args)


# =============================================================================
# Decoder: ONE kernel for the whole autoregressive loop.
#   grid over trg_len; all layers unrolled inside; h/c state, previous
#   prediction and weights live in VMEM; teacher-forcing mask in SMEM
#   (scalar prefetch).
# =============================================================================
def _make_decoder_kernel(n_layers, D2):
    def kernel(*refs):
        idx = 0
        tf_ref = refs[idx]; idx += 1                      # (trg_len,) int32, SMEM
        trg_ref = refs[idx]; idx += 1                     # (1, B, O) block at t
        h0_ref = refs[idx]; idx += 1                      # (n_layers, B, D2)
        c0_ref = refs[idx]; idx += 1
        layers = []
        for i in range(n_layers):
            wx = refs[idx]; wh = refs[idx + 1]; b = refs[idx + 2]
            g = refs[idx + 3]; beta = refs[idx + 4]; idx += 5
            if i == 0:
                wres = refs[idx]; bres = refs[idx + 1]; idx += 2
            else:
                wres = bres = None
            layers.append((wx, wh, b, g, beta, wres, bres))
        fc_w = refs[idx]; fc_b = refs[idx + 1]; idx += 2
        out_ref = refs[idx]; idx += 1
        h_sc, c_sc, inp_sc = refs[idx:idx + 3]

        t = pl.program_id(0)

        @pl.when(t == 0)
        def _():
            h_sc[...] = h0_ref[...]
            c_sc[...] = c0_ref[...]
            inp_sc[...] = jnp.zeros_like(inp_sc)          # first decoder input = 0

        output = inp_sc[...]                              # (B, O) or (B, D2)
        for i, (wx, wh, b, g, beta, wres, bres) in enumerate(layers):
            residual = output
            h = h_sc[i]
            c = c_sc[i]
            gates = (jnp.dot(output, wx[...], preferred_element_type=jnp.float32)
                     + jnp.dot(h, wh[...], preferred_element_type=jnp.float32)
                     + b[...])                            # (B, 4*D2), order i,f,g,o
            i_g = jax.nn.sigmoid(gates[:, 0 * D2:1 * D2])
            f_g = jax.nn.sigmoid(gates[:, 1 * D2:2 * D2])
            g_g = jnp.tanh(gates[:, 2 * D2:3 * D2])
            o_g = jax.nn.sigmoid(gates[:, 3 * D2:4 * D2])
            c_new = f_g * c + i_g * g_g
            h_new = o_g * jnp.tanh(c_new)
            h_sc[i] = h_new
            c_sc[i] = c_new
            # LayerNorm over D2
            mean = jnp.mean(h_new, axis=-1, keepdims=True)
            var = jnp.mean(jnp.square(h_new - mean), axis=-1, keepdims=True)
            ln = (h_new - mean) * jax.lax.rsqrt(var + 1e-5) * g[...] + beta[...]
            if wres is not None:
                residual = (jnp.dot(residual, wres[...],
                                    preferred_element_type=jnp.float32)
                            + bres[...])
            output = ln + residual

        pred = (jnp.dot(output, fc_w[...], preferred_element_type=jnp.float32)
                + fc_b[...])                              # (B, O)
        out_ref[0] = pred
        # input for step t+1: trg[t] if teacher forcing else prediction
        inp_sc[...] = jnp.where(tf_ref[t] == 1, trg_ref[0], pred)

    return kernel


def decoder_forward(dec_params, fc_w, fc_b, h0, c0, trg, tf_mask):
    trg_len, B, out_dim = trg.shape
    n_layers = len(dec_params)
    D2 = dec_params[0]["w_hh"].shape[-1]

    const2 = lambda s: pl.BlockSpec(s, lambda t, tf: (0, 0))
    const3 = lambda s: pl.BlockSpec(s, lambda t, tf: (0, 0, 0))

    in_specs = [
        pl.BlockSpec((1, B, out_dim), lambda t, tf: (t, 0, 0)),   # trg
        const3((n_layers, B, D2)),                                # h0
        const3((n_layers, B, D2)),                                # c0
    ]
    args = [trg, h0, c0]
    for i, lp in enumerate(dec_params):
        wx = jnp.transpose(lp["w_ih"])                    # (in_dim, 4*D2)
        wh = jnp.transpose(lp["w_hh"])                    # (D2, 4*D2)
        b = lp["b"].reshape(1, 4 * D2)
        g = lp["ln_g"].reshape(1, D2)
        beta = lp["ln_b"].reshape(1, D2)
        in_specs += [const2(wx.shape), const2(wh.shape), const2(b.shape),
                     const2(g.shape), const2(beta.shape)]
        args += [wx, wh, b, g, beta]
        if i == 0:
            wres = jnp.transpose(lp["w_res"])             # (out_dim, D2)
            bres = lp["b_res"].reshape(1, D2)
            in_specs += [const2(wres.shape), const2(bres.shape)]
            args += [wres, bres]
    fc_w_t = jnp.transpose(fc_w)                          # (D2, out_dim)
    fc_b2 = fc_b.reshape(1, out_dim)
    in_specs += [const2(fc_w_t.shape), const2(fc_b2.shape)]
    args += [fc_w_t, fc_b2]

    return pl.pallas_call(
        _make_decoder_kernel(n_layers, D2),
        grid_spec=pltpu.PrefetchScalarGridSpec(
            num_scalar_prefetch=1,
            grid=(trg_len,),
            in_specs=in_specs,
            out_specs=pl.BlockSpec((1, B, out_dim), lambda t, tf: (t, 0, 0)),
            scratch_shapes=[
                pltpu.VMEM((n_layers, B, D2), jnp.float32),   # h state
                pltpu.VMEM((n_layers, B, D2), jnp.float32),   # c state
                pltpu.VMEM((B, out_dim), jnp.float32),        # next input
            ],
        ),
        out_shape=jax.ShapeDtypeStruct((trg_len, B, out_dim), jnp.float32),
        compiler_params=pltpu.CompilerParams(
            dimension_semantics=("arbitrary",)),
    )(tf_mask, *args)


# =============================================================================
# Model forward (mirrors PyTorch Encoder / Decoder / Seq2Seq.forward).
# Note: nn.LSTM dropout is a no-op here since every LSTM has num_layers=1.
# =============================================================================
def encoder_forward(enc_params, src):
    n_layers = len(enc_params)
    H = enc_params[0]["w_hh_f"].shape[-1]
    x_pieces = [src]                       # feature halves of the layer input
    h_list, c_list = [], []
    for li, lp in enumerate(enc_params):
        last = li == n_layers - 1
        outs = bidir_lstm_layer(x_pieces, lp["w_ih_f"], lp["w_hh_f"], lp["b_f"],
                                lp["w_ih_b"], lp["w_hh_b"], lp["b_b"], H,
                                emit_seq=not last)
        if not last:
            y_f, y_b, h_f, c_f, h_b, c_b = outs
        else:
            h_f, c_f, h_b, c_b = outs
        # _combine_directions: cat(forward_final, backward_final) on features
        h_list.append(jnp.concatenate([h_f, h_b], axis=-1))
        c_list.append(jnp.concatenate([c_f, c_b], axis=-1))
        if not last:
            # LN + residual (projection on layer 0); last layer's LN output is
            # never consumed by Seq2Seq.forward, so it is skipped.
            o_f, o_b = enc_ln_residual(y_f, y_b, x_pieces, lp["ln_g"], lp["ln_b"],
                                       H, lp.get("w_res"), lp.get("b_res"))
            x_pieces = [o_f, o_b]
    return jnp.stack(h_list), jnp.stack(c_list)           # (n_layers, B, 2H)


def seq2seq_forward(params, src, trg, tf_mask):
    h0, c0 = encoder_forward(params["encoder"], src)
    return decoder_forward(params["decoder"], params["fc_out_w"],
                           params["fc_out_b"], h0, c0, trg, tf_mask)


# =============================================================================
# Parameter init (deterministic, PyTorch-style uniform ranges).
# =============================================================================
def _uniform(key, shape, scale):
    return jax.random.uniform(key, shape, jnp.float32, -scale, scale)


def init_params(key, input_dim, output_dim, hidden_dim, n_layers):
    H, D2 = hidden_dim, 2 * hidden_dim
    keys = list(jax.random.split(key, 8 * n_layers * 8 + 8))
    it = iter(keys)
    nk = lambda: next(it)
    params = {"encoder": [], "decoder": []}

    # Encoder: stacked bidirectional LSTMs (hidden H per direction).
    for i in range(n_layers):
        in_dim = input_dim if i == 0 else D2
        s = H ** -0.5
        layer = {
            "w_ih_f": _uniform(nk(), (4 * H, in_dim), s),
            "w_hh_f": _uniform(nk(), (4 * H, H), s),
            "b_f": _uniform(nk(), (4 * H,), s) + _uniform(nk(), (4 * H,), s),
            "w_ih_b": _uniform(nk(), (4 * H, in_dim), s),
            "w_hh_b": _uniform(nk(), (4 * H, H), s),
            "b_b": _uniform(nk(), (4 * H,), s) + _uniform(nk(), (4 * H,), s),
            "ln_g": jnp.ones((D2,), jnp.float32),
            "ln_b": jnp.zeros((D2,), jnp.float32),
        }
        if i == 0:
            sl = in_dim ** -0.5
            layer["w_res"] = _uniform(nk(), (D2, in_dim), sl)
            layer["b_res"] = _uniform(nk(), (D2,), sl)
        params["encoder"].append(layer)

    # Decoder: stacked unidirectional LSTMs with hidden D2 = 2*hidden_dim.
    for i in range(n_layers):
        in_dim = output_dim if i == 0 else D2
        s = D2 ** -0.5
        layer = {
            "w_ih": _uniform(nk(), (4 * D2, in_dim), s),
            "w_hh": _uniform(nk(), (4 * D2, D2), s),
            "b": _uniform(nk(), (4 * D2,), s) + _uniform(nk(), (4 * D2,), s),
            "ln_g": jnp.ones((D2,), jnp.float32),
            "ln_b": jnp.zeros((D2,), jnp.float32),
        }
        if i == 0:
            sl = in_dim ** -0.5
            layer["w_res"] = _uniform(nk(), (D2, in_dim), sl)
            layer["b_res"] = _uniform(nk(), (D2,), sl)
        params["decoder"].append(layer)

    sfc = D2 ** -0.5
    params["fc_out_w"] = _uniform(nk(), (output_dim, D2), sfc)
    params["fc_out_b"] = _uniform(nk(), (output_dim,), sfc)
    return params


# =============================================================================
if __name__ == "__main__":
    input_dim, output_dim, hidden_dim, n_layers, dropout = 8, 4, 16, 2, 0.0
    T_src, trg_len, B = 6, 5, 2

    key = jax.random.PRNGKey(0)
    kp, ks, kt = jax.random.split(key, 3)
    params = init_params(kp, input_dim, output_dim, hidden_dim, n_layers)
    src = jax.random.normal(ks, (T_src, B, input_dim), jnp.float32)
    trg = jax.random.normal(kt, (trg_len, B, output_dim), jnp.float32)

    # TODO(synk): PyTorch uses the global random.random() per decoder step for
    # teacher forcing; we reproduce it with a seeded host RNG sampled BEFORE
    # tracing and pass the decisions to the fused decoder kernel as an int32
    # mask via scalar prefetch.
    rng = pyrandom.Random(0)
    tf_mask = jnp.asarray(
        [1 if rng.random() < 0.5 else 0 for _ in range(trg_len)], jnp.int32)

    fwd = jax.jit(seq2seq_forward)
    out = fwd(params, src, trg, tf_mask)
    out = jax.block_until_ready(out)
    assert out.shape == (trg_len, B, output_dim)
    assert bool(jnp.all(jnp.isfinite(out)))
    print("KERNEL_OK")
</pallas_src>

<mosaic_0001>
module attributes {stable_mosaic.version = 11 : i64} {
  func.func @kernel(%arg0: i32, %arg1: memref<1x2x16xf32, #tpu.memory_space<vmem>>, %arg2: memref<1x2x16xf32, #tpu.memory_space<vmem>>, %arg3: memref<1x2x8xf32, #tpu.memory_space<vmem>>, %arg4: memref<8x16xf32, #tpu.memory_space<vmem>>, %arg5: memref<8x16xf32, #tpu.memory_space<vmem>>, %arg6: memref<1x16xf32, #tpu.memory_space<vmem>>, %arg7: memref<1x16xf32, #tpu.memory_space<vmem>>, %arg8: memref<1x16xf32, #tpu.memory_space<vmem>>, %arg9: memref<1x16xf32, #tpu.memory_space<vmem>>, %arg10: memref<1x16xf32, #tpu.memory_space<vmem>>, %arg11: memref<1x16xf32, #tpu.memory_space<vmem>>, %arg12: memref<1x2x16xf32, #tpu.memory_space<vmem>>, %arg13: memref<1x2x16xf32, #tpu.memory_space<vmem>>) attributes {dimension_semantics = [#tpu.dimension_semantics<parallel>], iteration_bounds = array<i64: 6>, scalar_prefetch = 0 : i64, scratch_operands = 0 : i64, tpu.core_type = #tpu.core_type<tc>, window_params = [{transform_indices = @transform_0, window_bounds = array<i64: 1, 2, 16>}, {transform_indices = @transform_1, window_bounds = array<i64: 1, 2, 16>}, {transform_indices = @transform_2, window_bounds = array<i64: 1, 2, 8>}, {pipeline_mode = #tpu.pipeline_mode<synchronous>, transform_indices = @transform_3, window_bounds = array<i64: 8, 16>}, {pipeline_mode = #tpu.pipeline_mode<synchronous>, transform_indices = @transform_4, window_bounds = array<i64: 8, 16>}, {pipeline_mode = #tpu.pipeline_mode<synchronous>, transform_indices = @transform_5, window_bounds = array<i64: 1, 16>}, {pipeline_mode = #tpu.pipeline_mode<synchronous>, transform_indices = @transform_6, window_bounds = array<i64: 1, 16>}, {pipeline_mode = #tpu.pipeline_mode<synchronous>, transform_indices = @transform_7, window_bounds = array<i64: 1, 16>}, {pipeline_mode = #tpu.pipeline_mode<synchronous>, transform_indices = @transform_8, window_bounds = array<i64: 1, 16>}, {pipeline_mode = #tpu.pipeline_mode<synchronous>, transform_indices = @transform_9, window_bounds = array<i64: 1, 16>}, {pipeline_mode = #tpu.pipeline_mode<synchronous>, transform_indices = @transform_10, window_bounds = array<i64: 1, 16>}, {transform_indices = @transform_11, window_bounds = array<i64: 1, 2, 16>}, {transform_indices = @transform_12, window_bounds = array<i64: 1, 2, 16>}]} {
    %c0 = arith.constant 0 : index
    %c0_0 = arith.constant 0 : index
    %c0_1 = arith.constant 0 : index
    %0 = vector.load %arg1[%c0, %c0_0, %c0_1] : memref<1x2x16xf32, #tpu.memory_space<vmem>>, vector<1x2x16xf32>
    %1 = vector.shape_cast %0 : vector<1x2x16xf32> to vector<2x16xf32>
    %c0_2 = arith.constant 0 : index
    %c0_3 = arith.constant 0 : index
    %c0_4 = arith.constant 0 : index
    %2 = vector.load %arg2[%c0_2, %c0_3, %c0_4] : memref<1x2x16xf32, #tpu.memory_space<vmem>>, vector<1x2x16xf32>
    %3 = vector.shape_cast %2 : vector<1x2x16xf32> to vector<2x16xf32>
    %cst = arith.constant dense<0.000000e+00> : vector<2xf32>
    %4 = vector.multi_reduction <add>, %1, %cst [1] : vector<2x16xf32> to vector<2xf32>
    %5 = vector.shape_cast %4 : vector<2xf32> to vector<2x1xf32>
    %cst_5 = arith.constant dense<0.000000e+00> : vector<2xf32>
    %6 = vector.multi_reduction <add>, %3, %cst_5 [1] : vector<2x16xf32> to vector<2xf32>
    %7 = vector.shape_cast %6 : vector<2xf32> to vector<2x1xf32>
    %8 = arith.addf %5, %7 : vector<2x1xf32>
    %cst_6 = arith.constant 3.125000e-02 : f32
    %9 = vector.broadcast %cst_6 : f32 to vector<2x1xf32>
    %10 = arith.mulf %8, %9 : vector<2x1xf32>
    %11 = vector.broadcast %10 : vector<2x1xf32> to vector<2x16xf32>
    %12 = arith.subf %1, %11 : vector<2x16xf32>
    %13 = arith.mulf %12, %12 : vector<2x16xf32>
    %cst_7 = arith.constant dense<0.000000e+00> : vector<2xf32>
    %14 = vector.multi_reduction <add>, %13, %cst_7 [1] : vector<2x16xf32> to vector<2xf32>
    %15 = vector.shape_cast %14 : vector<2xf32> to vector<2x1xf32>
    %16 = vector.broadcast %10 : vector<2x1xf32> to vector<2x16xf32>
    %17 = arith.subf %3, %16 : vector<2x16xf32>
    %18 = arith.mulf %17, %17 : vector<2x16xf32>
    %cst_8 = arith.constant dense<0.000000e+00> : vector<2xf32>
    %19 = vector.multi_reduction <add>, %18, %cst_8 [1] : vector<2x16xf32> to vector<2xf32>
    %20 = vector.shape_cast %19 : vector<2xf32> to vector<2x1xf32>
    %21 = arith.addf %15, %20 : vector<2x1xf32>
    %cst_9 = arith.constant 3.125000e-02 : f32
    %22 = vector.broadcast %cst_9 : f32 to vector<2x1xf32>
    %23 = arith.mulf %21, %22 : vector<2x1xf32>
    %cst_10 = arith.constant 9.99999974E-6 : f32
    %24 = vector.broadcast %cst_10 : f32 to vector<2x1xf32>
    %25 = arith.addf %23, %24 : vector<2x1xf32>
    %26 = math.rsqrt %25 : vector<2x1xf32>
    %27 = vector.broadcast %10 : vector<2x1xf32> to vector<2x16xf32>
    %28 = arith.subf %1, %27 : vector<2x16xf32>
    %29 = vector.broadcast %26 : vector<2x1xf32> to vector<2x16xf32>
    %30 = arith.mulf %28, %29 : vector<2x16xf32>
    %c0_11 = arith.constant 0 : index
    %c0_12 = arith.constant 0 : index
    %31 = vector.load %arg8[%c0_11, %c0_12] : memref<1x16xf32, #tpu.memory_space<vmem>>, vector<1x16xf32>
    %32 = vector.broadcast %31 : vector<1x16xf32> to vector<2x16xf32>
    %33 = arith.mulf %30, %32 : vector<2x16xf32>
    %c0_13 = arith.constant 0 : index
    %c0_14 = arith.constant 0 : index
    %34 = vector.load %arg10[%c0_13, %c0_14] : memref<1x16xf32, #tpu.memory_space<vmem>>, vector<1x16xf32>
    %35 = vector.broadcast %34 : vector<1x16xf32> to vector<2x16xf32>
    %36 = arith.addf %33, %35 : vector<2x16xf32>
    %37 = vector.broadcast %10 : vector<2x1xf32> to vector<2x16xf32>
    %38 = arith.subf %3, %37 : vector<2x16xf32>
    %39 = vector.broadcast %26 : vector<2x1xf32> to vector<2x16xf32>
    %40 = arith.mulf %38, %39 : vector<2x16xf32>
    %c0_15 = arith.constant 0 : index
    %c0_16 = arith.constant 0 : index
    %41 = vector.load %arg9[%c0_15, %c0_16] : memref<1x16xf32, #tpu.memory_space<vmem>>, vector<1x16xf32>
    %42 = vector.broadcast %41 : vector<1x16xf32> to vector<2x16xf32>
    %43 = arith.mulf %40, %42 : vector<2x16xf32>
    %c0_17 = arith.constant 0 : index
    %c0_18 = arith.constant 0 : index
    %44 = vector.load %arg11[%c0_17, %c0_18] : memref<1x16xf32, #tpu.memory_space<vmem>>, vector<1x16xf32>
    %45 = vector.broadcast %44 : vector<1x16xf32> to vector<2x16xf32>
    %46 = arith.addf %43, %45 : vector<2x16xf32>
    %c0_19 = arith.constant 0 : index
    %c0_20 = arith.constant 0 : index
    %c0_21 = arith.constant 0 : index
    %47 = vector.load %arg3[%c0_19, %c0_20, %c0_21] : memref<1x2x8xf32, #tpu.memory_space<vmem>>, vector<1x2x8xf32>
    %48 = vector.shape_cast %47 : vector<1x2x8xf32> to vector<2x8xf32>
    %c0_22 = arith.constant 0 : index
    %c0_23 = arith.constant 0 : index
    %49 = vector.load %arg4[%c0_22, %c0_23] : memref<8x16xf32, #tpu.memory_space<vmem>>, vector<8x16xf32>
    %cst_24 = arith.constant dense<0.000000e+00> : vector<2x16xf32>
    %50 = tpu.matmul %48, %49, %cst_24 {dimension_numbers = #tpu.dot_dimension_numbers<[1], [0], [0], [1], [0, 0, 1, 1], [], []>} : vector<2x8xf32>, vector<8x16xf32>, vector<2x16xf32> -> vector<2x16xf32>
    %c0_25 = arith.constant 0 : index
    %c0_26 = arith.constant 0 : index
    %51 = vector.load %arg6[%c0_25, %c0_26] : memref<1x16xf32, #tpu.memory_space<vmem>>, vector<1x16xf32>
    %52 = vector.broadcast %51 : vector<1x16xf32> to vector<2x16xf32>
    %53 = arith.addf %50, %52 : vector<2x16xf32>
    %c0_27 = arith.constant 0 : index
    %c0_28 = arith.constant 0 : index
    %54 = vector.load %arg5[%c0_27, %c0_28] : memref<8x16xf32, #tpu.memory_space<vmem>>, vector<8x16xf32>
    %cst_29 = arith.constant dense<0.000000e+00> : vector<2x16xf32>
    %55 = tpu.matmul %48, %54, %cst_29 {dimension_numbers = #tpu.dot_dimension_numbers<[1], [0], [0], [1], [0, 0, 1, 1], [], []>} : vector<2x8xf32>, vector<8x16xf32>, vector<2x16xf32> -> vector<2x16xf32>
    %c0_30 = arith.constant 0 : index
    %c0_31 = arith.constant 0 : index
    %56 = vector.load %arg7[%c0_30, %c0_31] : memref<1x16xf32, #tpu.memory_space<vmem>>, vector<1x16xf32>
    %57 = vector.broadcast %56 : vector<1x16xf32> to vector<2x16xf32>
    %58 = arith.addf %55, %57 : vector<2x16xf32>
    %59 = arith.addf %36, %53 : vector<2x16xf32>
    %c0_32 = arith.constant 0 : index
    %c0_33 = arith.constant 0 : index
    %c0_34 = arith.constant 0 : index
    %60 = vector.load %arg12[%c0_32, %c0_33, %c0_34] : memref<1x2x16xf32, #tpu.memory_space<vmem>>, vector<1x2x16xf32>
    %61 = vector.shape_cast %60 : vector<1x2x16xf32> to vector<2x16xf32>
    %62 = vector.shape_cast %59 : vector<2x16xf32> to vector<1x2x16xf32>
    tpu.vector_store %arg12[%c0_32, %c0_33, %c0_34], %62 {strides = array<i32>} : memref<1x2x16xf32, #tpu.memory_space<vmem>>, vector<1x2x16xf32>,
    %63 = arith.addf %46, %58 : vector<2x16xf32>
    %c0_35 = arith.constant 0 : index
    %c0_36 = arith.constant 0 : index
    %c0_37 = arith.constant 0 : index
    %64 = vector.load %arg13[%c0_35, %c0_36, %c0_37] : memref<1x2x16xf32, #tpu.memory_space<vmem>>, vector<1x2x16xf32>
    %65 = vector.shape_cast %64 : vector<1x2x16xf32> to vector<2x16xf32>
    %66 = vector.shape_cast %63 : vector<2x16xf32> to vector<1x2x16xf32>
    tpu.vector_store %arg13[%c0_35, %c0_36, %c0_37], %66 {strides = array<i32>} : memref<1x2x16xf32, #tpu.memory_space<vmem>>, vector<1x2x16xf32>,
    return
  }
  func.func @transform_0(%arg0: i32) -> (i32, i32, i32) {
    %c0_i32 = arith.constant 0 : i32
    %c0_i32_0 = arith.constant 0 : i32
    %c0_i32_1 = arith.constant 0 : i32
    return %arg0, %c0_i32, %c0_i32_0 : i32, i32, i32
  }
  func.func @transform_1(%arg0: i32) -> (i32, i32, i32) {
    %c0_i32 = arith.constant 0 : i32
    %c0_i32_0 = arith.constant 0 : i32
    %c0_i32_1 = arith.constant 0 : i32
    return %arg0, %c0_i32, %c0_i32_0 : i32, i32, i32
  }
  func.func @transform_2(%arg0: i32) -> (i32, i32, i32) {
    %c0_i32 = arith.constant 0 : i32
    %c0_i32_0 = arith.constant 0 : i32
    %c0_i32_1 = arith.constant 0 : i32
    return %arg0, %c0_i32, %c0_i32_0 : i32, i32, i32
  }
  func.func @transform_3(%arg0: i32) -> (i32, i32) {
    %c0_i32 = arith.constant 0 : i32
    %c0_i32_0 = arith.constant 0 : i32
    %c0_i32_1 = arith.constant 0 : i32
    return %c0_i32, %c0_i32_0 : i32, i32
  }
  func.func @transform_4(%arg0: i32) -> (i32, i32) {
    %c0_i32 = arith.constant 0 : i32
    %c0_i32_0 = arith.constant 0 : i32
    %c0_i32_1 = arith.constant 0 : i32
    return %c0_i32, %c0_i32_0 : i32, i32
  }
  func.func @transform_5(%arg0: i32) -> (i32, i32) {
    %c0_i32 = arith.constant 0 : i32
    %c0_i32_0 = arith.constant 0 : i32
    %c0_i32_1 = arith.constant 0 : i32
    return %c0_i32, %c0_i32_0 : i32, i32
  }
  func.func @transform_6(%arg0: i32) -> (i32, i32) {
    %c0_i32 = arith.constant 0 : i32
    %c0_i32_0 = arith.constant 0 : i32
    %c0_i32_1 = arith.constant 0 : i32
    return %c0_i32, %c0_i32_0 : i32, i32
  }
  func.func @transform_7(%arg0: i32) -> (i32, i32) {
    %c0_i32 = arith.constant 0 : i32
    %c0_i32_0 = arith.constant 0 : i32
    %c0_i32_1 = arith.constant 0 : i32
    return %c0_i32, %c0_i32_0 : i32, i32
  }
  func.func @transform_8(%arg0: i32) -> (i32, i32) {
    %c0_i32 = arith.constant 0 : i32
    %c0_i32_0 = arith.constant 0 : i32
    %c0_i32_1 = arith.constant 0 : i32
    return %c0_i32, %c0_i32_0 : i32, i32
  }
  func.func @transform_9(%arg0: i32) -> (i32, i32) {
    %c0_i32 = arith.constant 0 : i32
    %c0_i32_0 = arith.constant 0 : i32
    %c0_i32_1 = arith.constant 0 : i32
    return %c0_i32, %c0_i32_0 : i32, i32
  }
  func.func @transform_10(%arg0: i32) -> (i32, i32) {
    %c0_i32 = arith.constant 0 : i32
    %c0_i32_0 = arith.constant 0 : i32
    %c0_i32_1 = arith.constant 0 : i32
    return %c0_i32, %c0_i32_0 : i32, i32
  }
  func.func @transform_11(%arg0: i32) -> (i32, i32, i32) {
    %c0_i32 = arith.constant 0 : i32
    %c0_i32_0 = arith.constant 0 : i32
    %c0_i32_1 = arith.constant 0 : i32
    return %arg0, %c0_i32, %c0_i32_0 : i32, i32, i32
  }
  func.func @transform_12(%arg0: i32) -> (i32, i32, i32) {
    %c0_i32 = arith.constant 0 : i32
    %c0_i32_0 = arith.constant 0 : i32
    %c0_i32_1 = arith.constant 0 : i32
    return %arg0, %c0_i32, %c0_i32_0 : i32, i32, i32
  }
}

module attributes {stable_mosaic.version = 11 : i64} {
  func.func @kernel(%arg0: i32, %arg1: memref<1x2x8xf32, #tpu.memory_space<vmem>>, %arg2: memref<1x2x8xf32, #tpu.memory_space<vmem>>, %arg3: memref<8x64xf32, #tpu.memory_space<vmem>>, %arg4: memref<16x64xf32, #tpu.memory_space<vmem>>, %arg5: memref<1x64xf32, #tpu.memory_space<vmem>>, %arg6: memref<8x64xf32, #tpu.memory_space<vmem>>, %arg7: memref<16x64xf32, #tpu.memory_space<vmem>>, %arg8: memref<1x64xf32, #tpu.memory_space<vmem>>, %arg9: memref<1x2x16xf32, #tpu.memory_space<vmem>>, %arg10: memref<1x2x16xf32, #tpu.memory_space<vmem>>, %arg11: memref<2x16xf32, #tpu.memory_space<vmem>>, %arg12: memref<2x16xf32, #tpu.memory_space<vmem>>, %arg13: memref<2x16xf32, #tpu.memory_space<vmem>>, %arg14: memref<2x16xf32, #tpu.memory_space<vmem>>, %arg15: memref<2x16xf32, #tpu.memory_space<vmem>>, %arg16: memref<2x16xf32, #tpu.memory_space<vmem>>, %arg17: memref<2x16xf32, #tpu.memory_space<vmem>>, %arg18: memref<2x16xf32, #tpu.memory_space<vmem>>) attributes {dimension_semantics = [#tpu.dimension_semantics<arbitrary>], iteration_bounds = array<i64: 6>, scalar_prefetch = 0 : i64, scratch_operands = 4 : i64, tpu.core_type = #tpu.core_type<tc>, window_params = [{transform_indices = @transform_0, window_bounds = array<i64: 1, 2, 8>}, {transform_indices = @transform_1, window_bounds = array<i64: 1, 2, 8>}, {pipeline_mode = #tpu.pipeline_mode<synchronous>, transform_indices = @transform_2, window_bounds = array<i64: 8, 64>}, {pipeline_mode = #tpu.pipeline_mode<synchronous>, transform_indices = @transform_3, window_bounds = array<i64: 16, 64>}, {pipeline_mode = #tpu.pipeline_mode<synchronous>, transform_indices = @transform_4, window_bounds = array<i64: 1, 64>}, {pipeline_mode = #tpu.pipeline_mode<synchronous>, transform_indices = @transform_5, window_bounds = array<i64: 8, 64>}, {pipeline_mode = #tpu.pipeline_mode<synchronous>, transform_indices = @transform_6, window_bounds = array<i64: 16, 64>}, {pipeline_mode = #tpu.pipeline_mode<synchronous>, transform_indices = @transform_7, window_bounds = array<i64: 1, 64>}, {transform_indices = @transform_8, window_bounds = array<i64: 1, 2, 16>}, {transform_indices = @transform_9, window_bounds = array<i64: 1, 2, 16>}, {pipeline_mode = #tpu.pipeline_mode<synchronous>, transform_indices = @transform_10, window_bounds = array<i64: 2, 16>}, {pipeline_mode = #tpu.pipeline_mode<synchronous>, transform_indices = @transform_11, window_bounds = array<i64: 2, 16>}, {pipeline_mode = #tpu.pipeline_mode<synchronous>, transform_indices = @transform_12, window_bounds = array<i64: 2, 16>}, {pipeline_mode = #tpu.pipeline_mode<synchronous>, transform_indices = @transform_13, window_bounds = array<i64: 2, 16>}]} {
    %c0_i32 = arith.constant 0 : i32
    %0 = arith.cmpi eq, %arg0, %c0_i32 : i32
    %1 = arith.extui %0 : i1 to i32
    %c0_i32_0 = arith.constant 0 : i32
    %2 = arith.cmpi ne, %1, %c0_i32_0 : i32
    scf.if %2 {
      %cst_50 = arith.constant 0.000000e+00 : f32
      %90 = vector.broadcast %cst_50 : f32 to vector<2x16xf32>
      %c0_51 = arith.constant 0 : index
      %c0_52 = arith.constant 0 : index
      %91 = vector.load %arg15[%c0_51, %c0_52] : memref<2x16xf32, #tpu.memory_space<vmem>>, vector<2x16xf32>
      tpu.vector_store %arg15[%c0_51, %c0_52], %90 {strides = array<i32>} : memref<2x16xf32, #tpu.memory_space<vmem>>, vector<2x16xf32>,
      %cst_53 = arith.constant 0.000000e+00 : f32
      %92 = vector.broadcast %cst_53 : f32 to vector<2x16xf32>
      %c0_54 = arith.constant 0 : index
      %c0_55 = arith.constant 0 : index
      %93 = vector.load %arg16[%c0_54, %c0_55] : memref<2x16xf32, #tpu.memory_space<vmem>>, vector<2x16xf32>
      tpu.vector_store %arg16[%c0_54, %c0_55], %92 {strides = array<i32>} : memref<2x16xf32, #tpu.memory_space<vmem>>, vector<2x16xf32>,
      %cst_56 = arith.constant 0.000000e+00 : f32
      %94 = vector.broadcast %cst_56 : f32 to vector<2x16xf32>
      %c0_57 = arith.constant 0 : index
      %c0_58 = arith.constant 0 : index
      %95 = vector.load %arg17[%c0_57, %c0_58] : memref<2x16xf32, #tpu.memory_space<vmem>>, vector<2x16xf32>
      tpu.vector_store %arg17[%c0_57, %c0_58], %94 {strides = array<i32>} : memref<2x16xf32, #tpu.memory_space<vmem>>, vector<2x16xf32>,
      %cst_59 = arith.constant 0.000000e+00 : f32
      %96 = vector.broadcast %cst_59 : f32 to vector<2x16xf32>
      %c0_60 = arith.constant 0 : index
      %c0_61 = arith.constant 0 : index
      %97 = vector.load %arg18[%c0_60, %c0_61] : memref<2x16xf32, #tpu.memory_space<vmem>>, vector<2x16xf32>
      tpu.vector_store %arg18[%c0_60, %c0_61], %96 {strides = array<i32>} : memref<2x16xf32, #tpu.memory_space<vmem>>, vector<2x16xf32>,
    } else {
    }
    %c0 = arith.constant 0 : index
    %c0_1 = arith.constant 0 : index
    %3 = vector.load %arg15[%c0, %c0_1] : memref<2x16xf32, #tpu.memory_space<vmem>>, vector<2x16xf32>
    %c0_2 = arith.constant 0 : index
    %c0_3 = arith.constant 0 : index
    %4 = vector.load %arg16[%c0_2, %c0_3] : memref<2x16xf32, #tpu.memory_space<vmem>>, vector<2x16xf32>
    %c0_4 = arith.constant 0 : index
    %c0_5 = arith.constant 0 : index
    %5 = vector.load %arg4[%c0_4, %c0_5] : memref<16x64xf32, #tpu.memory_space<vmem>>, vector<16x64xf32>
    %cst = arith.constant dense<0.000000e+00> : vector<2x64xf32>
    %6 = tpu.matmul %3, %5, %cst {dimension_numbers = #tpu.dot_dimension_numbers<[1], [0], [0], [1], [0, 0, 1, 1], [], []>} : vector<2x16xf32>, vector<16x64xf32>, vector<2x64xf32> -> vector<2x64xf32>
    %c0_6 = arith.constant 0 : index
    %c0_7 = arith.constant 0 : index
    %7 = vector.load %arg5[%c0_6, %c0_7] : memref<1x64xf32, #tpu.memory_space<vmem>>, vector<1x64xf32>
    %8 = vector.broadcast %7 : vector<1x64xf32> to vector<2x64xf32>
    %9 = arith.addf %6, %8 : vector<2x64xf32>
    %c0_8 = arith.constant 0 : index
    %c0_9 = arith.constant 0 : index
    %c0_10 = arith.constant 0 : index
    %10 = vector.load %arg1[%c0_8, %c0_9, %c0_10] : memref<1x2x8xf32, #tpu.memory_space<vmem>>, vector<1x2x8xf32>
    %11 = vector.shape_cast %10 : vector<1x2x8xf32> to vector<2x8xf32>
    %c0_11 = arith.constant 0 : index
    %c0_12 = arith.constant 0 : index
    %12 = vector.load %arg3[%c0_11, %c0_12] : memref<8x64xf32, #tpu.memory_space<vmem>>, vector<8x64xf32>
    %cst_13 = arith.constant dense<0.000000e+00> : vector<2x64xf32>
    %13 = tpu.matmul %11, %12, %cst_13 {dimension_numbers = #tpu.dot_dimension_numbers<[1], [0], [0], [1], [0, 0, 1, 1], [], []>} : vector<2x8xf32>, vector<8x64xf32>, vector<2x64xf32> -> vector<2x64xf32>
    %14 = arith.addf %9, %13 : vector<2x64xf32>
    %15 = vector.extract_strided_slice %14 {offsets = [0, 0], sizes = [2, 16], strides = [1, 1]} : vector<2x64xf32> to vector<2x16xf32>
    %16 = arith.negf %15 : vector<2x16xf32>
    %17 = math.exp %16 : vector<2x16xf32>
    %cst_14 = arith.constant 1.000000e+00 : f32
    %18 = vector.broadcast %cst_14 : f32 to vector<2x16xf32>
    %19 = arith.addf %18, %17 : vector<2x16xf32>
    %20 = arith.divf %18, %19 : vector<2x16xf32>
    %21 = vector.extract_strided_slice %14 {offsets = [0, 16], sizes = [2, 16], strides = [1, 1]} : vector<2x64xf32> to vector<2x16xf32>
    %22 = arith.negf %21 : vector<2x16xf32>
    %23 = math.exp %22 : vector<2x16xf32>
    %cst_15 = arith.constant 1.000000e+00 : f32
    %24 = vector.broadcast %cst_15 : f32 to vector<2x16xf32>
    %25 = arith.addf %24, %23 : vector<2x16xf32>
    %26 = arith.divf %24, %25 : vector<2x16xf32>
    %27 = vector.extract_strided_slice %14 {offsets = [0, 32], sizes = [2, 16], strides = [1, 1]} : vector<2x64xf32> to vector<2x16xf32>
    %28 = math.tanh %27 : vector<2x16xf32>
    %29 = vector.extract_strided_slice %14 {offsets = [0, 48], sizes = [2, 16], strides = [1, 1]} : vector<2x64xf32> to vector<2x16xf32>
    %30 = arith.negf %29 : vector<2x16xf32>
    %31 = math.exp %30 : vector<2x16xf32>
    %cst_16 = arith.constant 1.000000e+00 : f32
    %32 = vector.broadcast %cst_16 : f32 to vector<2x16xf32>
    %33 = arith.addf %32, %31 : vector<2x16xf32>
    %34 = arith.divf %32, %33 : vector<2x16xf32>
    %35 = arith.mulf %26, %4 : vector<2x16xf32>
    %36 = arith.mulf %20, %28 : vector<2x16xf32>
    %37 = arith.addf %35, %36 : vector<2x16xf32>
    %38 = math.tanh %37 : vector<2x16xf32>
    %39 = arith.mulf %34, %38 : vector<2x16xf32>
    %c0_17 = arith.constant 0 : index
    %c0_18 = arith.constant 0 : index
    %40 = vector.load %arg17[%c0_17, %c0_18] : memref<2x16xf32, #tpu.memory_space<vmem>>, vector<2x16xf32>
    %c0_19 = arith.constant 0 : index
    %c0_20 = arith.constant 0 : index
    %41 = vector.load %arg18[%c0_19, %c0_20] : memref<2x16xf32, #tpu.memory_space<vmem>>, vector<2x16xf32>
    %c0_21 = arith.constant 0 : index
    %c0_22 = arith.constant 0 : index
    %42 = vector.load %arg7[%c0_21, %c0_22] : memref<16x64xf32, #tpu.memory_space<vmem>>, vector<16x64xf32>
    %cst_23 = arith.constant dense<0.000000e+00> : vector<2x64xf32>
    %43 = tpu.matmul %40, %42, %cst_23 {dimension_numbers = #tpu.dot_dimension_numbers<[1], [0], [0], [1], [0, 0, 1, 1], [], []>} : vector<2x16xf32>, vector<16x64xf32>, vector<2x64xf32> -> vector<2x64xf32>
    %c0_24 = arith.constant 0 : index
    %c0_25 = arith.constant 0 : index
    %44 = vector.load %arg8[%c0_24, %c0_25] : memref<1x64xf32, #tpu.memory_space<vmem>>, vector<1x64xf32>
    %45 = vector.broadcast %44 : vector<1x64xf32> to vector<2x64xf32>
    %46 = arith.addf %43, %45 : vector<2x64xf32>
    %c0_26 = arith.constant 0 : index
    %c0_27 = arith.constant 0 : index
    %c0_28 = arith.constant 0 : index
    %47 = vector.load %arg2[%c0_26, %c0_27, %c0_28] : memref<1x2x8xf32, #tpu.memory_space<vmem>>, vector<1x2x8xf32>
    %48 = vector.shape_cast %47 : vector<1x2x8xf32> to vector<2x8xf32>
    %c0_29 = arith.constant 0 : index
    %c0_30 = arith.constant 0 : index
    %49 = vector.load %arg6[%c0_29, %c0_30] : memref<8x64xf32, #tpu.memory_space<vmem>>, vector<8x64xf32>
    %cst_31 = arith.constant dense<0.000000e+00> : vector<2x64xf32>
    %50 = tpu.matmul %48, %49, %cst_31 {dimension_numbers = #tpu.dot_dimension_numbers<[1], [0], [0], [1], [0, 0, 1, 1], [], []>} : vector<2x8xf32>, vector<8x64xf32>, vector<2x64xf32> -> vector<2x64xf32>
    %51 = arith.addf %46, %50 : vector<2x64xf32>
    %52 = vector.extract_strided_slice %51 {offsets = [0, 0], sizes = [2, 16], strides = [1, 1]} : vector<2x64xf32> to vector<2x16xf32>
    %53 = arith.negf %52 : vector<2x16xf32>
    %54 = math.exp %53 : vector<2x16xf32>
    %cst_32 = arith.constant 1.000000e+00 : f32
    %55 = vector.broadcast %cst_32 : f32 to vector<2x16xf32>
    %56 = arith.addf %55, %54 : vector<2x16xf32>
    %57 = arith.divf %55, %56 : vector<2x16xf32>
    %58 = vector.extract_strided_slice %51 {offsets = [0, 16], sizes = [2, 16], strides = [1, 1]} : vector<2x64xf32> to vector<2x16xf32>
    %59 = arith.negf %58 : vector<2x16xf32>
    %60 = math.exp %59 : vector<2x16xf32>
    %cst_33 = arith.constant 1.000000e+00 : f32
    %61 = vector.broadcast %cst_33 : f32 to vector<2x16xf32>
    %62 = arith.addf %61, %60 : vector<2x16xf32>
    %63 = arith.divf %61, %62 : vector<2x16xf32>
    %64 = vector.extract_strided_slice %51 {offsets = [0, 32], sizes = [2, 16], strides = [1, 1]} : vector<2x64xf32> to vector<2x16xf32>
    %65 = math.tanh %64 : vector<2x16xf32>
    %66 = vector.extract_strided_slice %51 {offsets = [0, 48], sizes = [2, 16], strides = [1, 1]} : vector<2x64xf32> to vector<2x16xf32>
    %67 = arith.negf %66 : vector<2x16xf32>
    %68 = math.exp %67 : vector<2x16xf32>
    %cst_34 = arith.constant 1.000000e+00 : f32
    %69 = vector.broadcast %cst_34 : f32 to vector<2x16xf32>
    %70 = arith.addf %69, %68 : vector<2x16xf32>
    %71 = arith.divf %69, %70 : vector<2x16xf32>
    %72 = arith.mulf %63, %41 : vector<2x16xf32>
    %73 = arith.mulf %57, %65 : vector<2x16xf32>
    %74 = arith.addf %72, %73 : vector<2x16xf32>
    %75 = math.tanh %74 : vector<2x16xf32>
    %76 = arith.mulf %71, %75 : vector<2x16xf32>
    %c0_35 = arith.constant 0 : index
    %c0_36 = arith.constant 0 : index
    %77 = vector.load %arg15[%c0_35, %c0_36] : memref<2x16xf32, #tpu.memory_space<vmem>>, vector<2x16xf32>
    tpu.vector_store %arg15[%c0_35, %c0_36], %39 {strides = array<i32>} : memref<2x16xf32, #tpu.memory_space<vmem>>, vector<2x16xf32>,
    %c0_37 = arith.constant 0 : index
    %c0_38 = arith.constant 0 : index
    %78 = vector.load %arg16[%c0_37, %c0_38] : memref<2x16xf32, #tpu.memory_space<vmem>>, vector<2x16xf32>
    tpu.vector_store %arg16[%c0_37, %c0_38], %37 {strides = array<i32>} : memref<2x16xf32, #tpu.memory_space<vmem>>, vector<2x16xf32>,
    %c0_39 = arith.constant 0 : index
    %c0_40 = arith.constant 0 : index
    %79 = vector.load %arg17[%c0_39, %c0_40] : memref<2x16xf32, #tpu.memory_space<vmem>>, vector<2x16xf32>
    tpu.vector_store %arg17[%c0_39, %c0_40], %76 {strides = array<i32>} : memref<2x16xf32, #tpu.memory_space<vmem>>, vector<2x16xf32>,
    %c0_41 = arith.constant 0 : index
    %c0_42 = arith.constant 0 : index
    %80 = vector.load %arg18[%c0_41, %c0_42] : memref<2x16xf32, #tpu.memory_space<vmem>>, vector<2x16xf32>
    tpu.vector_store %arg18[%c0_41, %c0_42], %74 {strides = array<i32>} : memref<2x16xf32, #tpu.memory_space<vmem>>, vector<2x16xf32>,
    %c0_43 = arith.constant 0 : index
    %c0_44 = arith.constant 0 : index
    %c0_45 = arith.constant 0 : index
    %81 = vector.load %arg9[%c0_43, %c0_44, %c0_45] : memref<1x2x16xf32, #tpu.memory_space<vmem>>, vector<1x2x16xf32>
    %82 = vector.shape_cast %81 : vector<1x2x16xf32> to vector<2x16xf32>
    %83 = vector.shape_cast %39 : vector<2x16xf32> to vector<1x2x16xf32>
    tpu.vector_store %arg9[%c0_43, %c0_44, %c0_45], %83 {strides = array<i32>} : memref<1x2x16xf32, #tpu.memory_space<vmem>>, vector<1x2x16xf32>,
    %c0_46 = arith.constant 0 : index
    %c0_47 = arith.constant 0 : index
    %c0_48 = arith.constant 0 : index
    %84 = vector.load %arg10[%c0_46, %c0_47, %c0_48] : memref<1x2x16xf32, #tpu.memory_space<vmem>>, vector<1x2x16xf32>
    %85 = vector.shape_cast %84 : vector<1x2x16xf32> to vector<2x16xf32>
    %86 = vector.shape_cast %76 : vector<2x16xf32> to vector<1x2x16xf32>
    tpu.vector_store %arg10[%c0_46, %c0_47, %c0_48], %86 {strides = array<i32>} : memref<1x2x16xf32, #tpu.memory_space<vmem>>, vector<1x2x16xf32>,
    %c5_i32 = arith.constant 5 : i32
    %87 = arith.cmpi eq, %arg0, %c5_i32 : i32
    %88 = arith.extui %87 : i1 to i32
    %c0_i32_49 = arith.constant 0 : i32
    %89 = arith.cmpi ne, %88, %c0_i32_49 : i32
    scf.if %89 {
      %c0_50 = arith.constant 0 : index
      %c0_51 = arith.constant 0 : index
      %90 = vector.load %arg11[%c0_50, %c0_51] : memref<2x16xf32, #tpu.memory_space<vmem>>, vector<2x16xf32>
      tpu.vector_store %arg11[%c0_50, %c0_51], %39 {strides = array<i32>} : memref<2x16xf32, #tpu.memory_space<vmem>>, vector<2x16xf32>,
      %c0_52 = arith.constant 0 : index
      %c0_53 = arith.constant 0 : index
      %91 = vector.load %arg12[%c0_52, %c0_53] : memref<2x16xf32, #tpu.memory_space<vmem>>, vector<2x16xf32>
      tpu.vector_store %arg12[%c0_52, %c0_53], %37 {strides = array<i32>} : memref<2x16xf32, #tpu.memory_space<vmem>>, vector<2x16xf32>,
      %c0_54 = arith.constant 0 : index
      %c0_55 = arith.constant 0 : index
      %92 = vector.load %arg13[%c0_54, %c0_55] : memref<2x16xf32, #tpu.memory_space<vmem>>, vector<2x16xf32>
      tpu.vector_store %arg13[%c0_54, %c0_55], %76 {strides = array<i32>} : memref<2x16xf32, #tpu.memory_space<vmem>>, vector<2x16xf32>,
      %c0_56 = arith.constant 0 : index
      %c0_57 = arith.constant 0 : index
      %93 = vector.load %arg14[%c0_56, %c0_57] : memref<2x16xf32, #tpu.memory_space<vmem>>, vector<2x16xf32>
      tpu.vector_store %arg14[%c0_56, %c0_57], %74 {strides = array<i32>} : memref<2x16xf32, #tpu.memory_space<vmem>>, vector<2x16xf32>,
    } else {
    }
    return
  }
  func.func @transform_0(%arg0: i32) -> (i32, i32, i32) {
    %c0_i32 = arith.constant 0 : i32
    %c0_i32_0 = arith.constant 0 : i32
    %c0_i32_1 = arith.constant 0 : i32
    return %arg0, %c0_i32, %c0_i32_0 : i32, i32, i32
  }
  func.func @transform_1(%arg0: i32) -> (i32, i32, i32) {
    %c5_i32 = arith.constant 5 : i32
    %0 = arith.subi %c5_i32, %arg0 : i32
    %c0_i32 = arith.constant 0 : i32
    %c0_i32_0 = arith.constant 0 : i32
    %c0_i32_1 = arith.constant 0 : i32
    return %0, %c0_i32, %c0_i32_0 : i32, i32, i32
  }
  func.func @transform_2(%arg0: i32) -> (i32, i32) {
    %c0_i32 = arith.constant 0 : i32
    %c0_i32_0 = arith.constant 0 : i32
    %c0_i32_1 = arith.constant 0 : i32
    return %c0_i32, %c0_i32_0 : i32, i32
  }
  func.func @transform_3(%arg0: i32) -> (i32, i32) {
    %c0_i32 = arith.constant 0 : i32
    %c0_i32_0 = arith.constant 0 : i32
    %c0_i32_1 = arith.constant 0 : i32
    return %c0_i32, %c0_i32_0 : i32, i32
  }
  func.func @transform_4(%arg0: i32) -> (i32, i32) {
    %c0_i32 = arith.constant 0 : i32
    %c0_i32_0 = arith.constant 0 : i32
    %c0_i32_1 = arith.constant 0 : i32
    return %c0_i32, %c0_i32_0 : i32, i32
  }
  func.func @transform_5(%arg0: i32) -> (i32, i32) {
    %c0_i32 = arith.constant 0 : i32
    %c0_i32_0 = arith.constant 0 : i32
    %c0_i32_1 = arith.constant 0 : i32
    return %c0_i32, %c0_i32_0 : i32, i32
  }
  func.func @transform_6(%arg0: i32) -> (i32, i32) {
    %c0_i32 = arith.constant 0 : i32
    %c0_i32_0 = arith.constant 0 : i32
    %c0_i32_1 = arith.constant 0 : i32
    return %c0_i32, %c0_i32_0 : i32, i32
  }
  func.func @transform_7(%arg0: i32) -> (i32, i32) {
    %c0_i32 = arith.constant 0 : i32
    %c0_i32_0 = arith.constant 0 : i32
    %c0_i32_1 = arith.constant 0 : i32
    return %c0_i32, %c0_i32_0 : i32, i32
  }
  func.func @transform_8(%arg0: i32) -> (i32, i32, i32) {
    %c0_i32 = arith.constant 0 : i32
    %c0_i32_0 = arith.constant 0 : i32
    %c0_i32_1 = arith.constant 0 : i32
    return %arg0, %c0_i32, %c0_i32_0 : i32, i32, i32
  }
  func.func @transform_9(%arg0: i32) -> (i32, i32, i32) {
    %c5_i32 = arith.constant 5 : i32
    %0 = arith.subi %c5_i32, %arg0 : i32
    %c0_i32 = arith.constant 0 : i32
    %c0_i32_0 = arith.constant 0 : i32
    %c0_i32_1 = arith.constant 0 : i32
    return %0, %c0_i32, %c0_i32_0 : i32, i32, i32
  }
  func.func @transform_10(%arg0: i32) -> (i32, i32) {
    %c0_i32 = arith.constant 0 : i32
    %c0_i32_0 = arith.constant 0 : i32
    %c0_i32_1 = arith.constant 0 : i32
    return %c0_i32, %c0_i32_0 : i32, i32
  }
  func.func @transform_11(%arg0: i32) -> (i32, i32) {
    %c0_i32 = arith.constant 0 : i32
    %c0_i32_0 = arith.constant 0 : i32
    %c0_i32_1 = arith.constant 0 : i32
    return %c0_i32, %c0_i32_0 : i32, i32
  }
  func.func @transform_12(%arg0: i32) -> (i32, i32) {
    %c0_i32 = arith.constant 0 : i32
    %c0_i32_0 = arith.constant 0 : i32
    %c0_i32_1 = arith.constant 0 : i32
    return %c0_i32, %c0_i32_0 : i32, i32
  }
  func.func @transform_13(%arg0: i32) -> (i32, i32) {
    %c0_i32 = arith.constant 0 : i32
    %c0_i32_0 = arith.constant 0 : i32
    %c0_i32_1 = arith.constant 0 : i32
    return %c0_i32, %c0_i32_0 : i32, i32
  }
}

module attributes {stable_mosaic.version = 11 : i64} {
  func.func @kernel(%arg0: i32, %arg1: memref<1x2x16xf32, #tpu.memory_space<vmem>>, %arg2: memref<1x2x16xf32, #tpu.memory_space<vmem>>, %arg3: memref<1x2x16xf32, #tpu.memory_space<vmem>>, %arg4: memref<1x2x16xf32, #tpu.memory_space<vmem>>, %arg5: memref<16x64xf32, #tpu.memory_space<vmem>>, %arg6: memref<16x64xf32, #tpu.memory_space<vmem>>, %arg7: memref<16x64xf32, #tpu.memory_space<vmem>>, %arg8: memref<1x64xf32, #tpu.memory_space<vmem>>, %arg9: memref<16x64xf32, #tpu.memory_space<vmem>>, %arg10: memref<16x64xf32, #tpu.memory_space<vmem>>, %arg11: memref<16x64xf32, #tpu.memory_space<vmem>>, %arg12: memref<1x64xf32, #tpu.memory_space<vmem>>, %arg13: memref<2x16xf32, #tpu.memory_space<vmem>>, %arg14: memref<2x16xf32, #tpu.memory_space<vmem>>, %arg15: memref<2x16xf32, #tpu.memory_space<vmem>>, %arg16: memref<2x16xf32, #tpu.memory_space<vmem>>, %arg17: memref<2x16xf32, #tpu.memory_space<vmem>>, %arg18: memref<2x16xf32, #tpu.memory_space<vmem>>, %arg19: memref<2x16xf32, #tpu.memory_space<vmem>>, %arg20: memref<2x16xf32, #tpu.memory_space<vmem>>) attributes {dimension_semantics = [#tpu.dimension_semantics<arbitrary>], iteration_bounds = array<i64: 6>, scalar_prefetch = 0 : i64, scratch_operands = 4 : i64, tpu.core_type = #tpu.core_type<tc>, window_params = [{transform_indices = @transform_0, window_bounds = array<i64: 1, 2, 16>}, {transform_indices = @transform_1, window_bounds = array<i64: 1, 2, 16>}, {transform_indices = @transform_2, window_bounds = array<i64: 1, 2, 16>}, {transform_indices = @transform_3, window_bounds = array<i64: 1, 2, 16>}, {pipeline_mode = #tpu.pipeline_mode<synchronous>, transform_indices = @transform_4, window_bounds = array<i64: 16, 64>}, {pipeline_mode = #tpu.pipeline_mode<synchronous>, transform_indices = @transform_5, window_bounds = array<i64: 16, 64>}, {pipeline_mode = #tpu.pipeline_mode<synchronous>, transform_indices = @transform_6, window_bounds = array<i64: 16, 64>}, {pipeline_mode = #tpu.pipeline_mode<synchronous>, transform_indices = @transform_7, window_bounds = array<i64: 1, 64>}, {pipeline_mode = #tpu.pipeline_mode<synchronous>, transform_indices = @transform_8, window_bounds = array<i64: 16, 64>}, {pipeline_mode = #tpu.pipeline_mode<synchronous>, transform_indices = @transform_9, window_bounds = array<i64: 16, 64>}, {pipeline_mode = #tpu.pipeline_mode<synchronous>, transform_indices = @transform_10, window_bounds = array<i64: 16, 64>}, {pipeline_mode = #tpu.pipeline_mode<synchronous>, transform_indices = @transform_11, window_bounds = array<i64: 1, 64>}, {pipeline_mode = #tpu.pipeline_mode<synchronous>, transform_indices = @transform_12, window_bounds = array<i64: 2, 16>}, {pipeline_mode = #tpu.pipeline_mode<synchronous>, transform_indices = @transform_13, window_bounds = array<i64: 2, 16>}, {pipeline_mode = #tpu.pipeline_mode<synchronous>, transform_indices = @transform_14, window_bounds = array<i64: 2, 16>}, {pipeline_mode = #tpu.pipeline_mode<synchronous>, transform_indices = @transform_15, window_bounds = array<i64: 2, 16>}]} {
    %c0_i32 = arith.constant 0 : i32
    %0 = arith.cmpi eq, %arg0, %c0_i32 : i32
    %1 = arith.extui %0 : i1 to i32
    %c0_i32_0 = arith.constant 0 : i32
    %2 = arith.cmpi ne, %1, %c0_i32_0 : i32
    scf.if %2 {
      %cst_56 = arith.constant 0.000000e+00 : f32
      %94 = vector.broadcast %cst_56 : f32 to vector<2x16xf32>
      %c0_57 = arith.constant 0 : index
      %c0_58 = arith.constant 0 : index
      %95 = vector.load %arg17[%c0_57, %c0_58] : memref<2x16xf32, #tpu.memory_space<vmem>>, vector<2x16xf32>
      tpu.vector_store %arg17[%c0_57, %c0_58], %94 {strides = array<i32>} : memref<2x16xf32, #tpu.memory_space<vmem>>, vector<2x16xf32>,
      %cst_59 = arith.constant 0.000000e+00 : f32
      %96 = vector.broadcast %cst_59 : f32 to vector<2x16xf32>
      %c0_60 = arith.constant 0 : index
      %c0_61 = arith.constant 0 : index
      %97 = vector.load %arg18[%c0_60, %c0_61] : memref<2x16xf32, #tpu.memory_space<vmem>>, vector<2x16xf32>
      tpu.vector_store %arg18[%c0_60, %c0_61], %96 {strides = array<i32>} : memref<2x16xf32, #tpu.memory_space<vmem>>, vector<2x16xf32>,
      %cst_62 = arith.constant 0.000000e+00 : f32
      %98 = vector.broadcast %cst_62 : f32 to vector<2x16xf32>
      %c0_63 = arith.constant 0 : index
      %c0_64 = arith.constant 0 : index
      %99 = vector.load %arg19[%c0_63, %c0_64] : memref<2x16xf32, #tpu.memory_space<vmem>>, vector<2x16xf32>
      tpu.vector_store %arg19[%c0_63, %c0_64], %98 {strides = array<i32>} : memref<2x16xf32, #tpu.memory_space<vmem>>, vector<2x16xf32>,
      %cst_65 = arith.constant 0.000000e+00 : f32
      %100 = vector.broadcast %cst_65 : f32 to vector<2x16xf32>
      %c0_66 = arith.constant 0 : index
      %c0_67 = arith.constant 0 : index
      %101 = vector.load %arg20[%c0_66, %c0_67] : memref<2x16xf32, #tpu.memory_space<vmem>>, vector<2x16xf32>
      tpu.vector_store %arg20[%c0_66, %c0_67], %100 {strides = array<i32>} : memref<2x16xf32, #tpu.memory_space<vmem>>, vector<2x16xf32>,
    } else {
    }
    %c0 = arith.constant 0 : index
    %c0_1 = arith.constant 0 : index
    %3 = vector.load %arg17[%c0, %c0_1] : memref<2x16xf32, #tpu.memory_space<vmem>>, vector<2x16xf32>
    %c0_2 = arith.constant 0 : index
    %c0_3 = arith.constant 0 : index
    %4 = vector.load %arg18[%c0_2, %c0_3] : memref<2x16xf32, #tpu.memory_space<vmem>>, vector<2x16xf32>
    %c0_4 = arith.constant 0 : index
    %c0_5 = arith.constant 0 : index
    %5 = vector.load %arg7[%c0_4, %c0_5] : memref<16x64xf32, #tpu.memory_space<vmem>>, vector<16x64xf32>
    %cst = arith.constant dense<0.000000e+00> : vector<2x64xf32>
    %6 = tpu.matmul %3, %5, %cst {dimension_numbers = #tpu.dot_dimension_numbers<[1], [0], [0], [1], [0, 0, 1, 1], [], []>} : vector<2x16xf32>, vector<16x64xf32>, vector<2x64xf32> -> vector<2x64xf32>
    %c0_6 = arith.constant 0 : index
    %c0_7 = arith.constant 0 : index
    %7 = vector.load %arg8[%c0_6, %c0_7] : memref<1x64xf32, #tpu.memory_space<vmem>>, vector<1x64xf32>
    %8 = vector.broadcast %7 : vector<1x64xf32> to vector<2x64xf32>
    %9 = arith.addf %6, %8 : vector<2x64xf32>
    %c0_8 = arith.constant 0 : index
    %c0_9 = arith.constant 0 : index
    %c0_10 = arith.constant 0 : index
    %10 = vector.load %arg1[%c0_8, %c0_9, %c0_10] : memref<1x2x16xf32, #tpu.memory_space<vmem>>, vector<1x2x16xf32>
    %11 = vector.shape_cast %10 : vector<1x2x16xf32> to vector<2x16xf32>
    %c0_11 = arith.constant 0 : index
    %c0_12 = arith.constant 0 : index
    %12 = vector.load %arg5[%c0_11, %c0_12] : memref<16x64xf32, #tpu.memory_space<vmem>>, vector<16x64xf32>
    %cst_13 = arith.constant dense<0.000000e+00> : vector<2x64xf32>
    %13 = tpu.matmul %11, %12, %cst_13 {dimension_numbers = #tpu.dot_dimension_numbers<[1], [0], [0], [1], [0, 0, 1, 1], [], []>} : vector<2x16xf32>, vector<16x64xf32>, vector<2x64xf32> -> vector<2x64xf32>
    %14 = arith.addf %9, %13 : vector<2x64xf32>
    %c0_14 = arith.constant 0 : index
    %c0_15 = arith.constant 0 : index
    %c0_16 = arith.constant 0 : index
    %15 = vector.load %arg2[%c0_14, %c0_15, %c0_16] : memref<1x2x16xf32, #tpu.memory_space<vmem>>, vector<1x2x16xf32>
    %16 = vector.shape_cast %15 : vector<1x2x16xf32> to vector<2x16xf32>
    %c0_17 = arith.constant 0 : index
    %c0_18 = arith.constant 0 : index
    %17 = vector.load %arg6[%c0_17, %c0_18] : memref<16x64xf32, #tpu.memory_space<vmem>>, vector<16x64xf32>
    %cst_19 = arith.constant dense<0.000000e+00> : vector<2x64xf32>
    %18 = tpu.matmul %16, %17, %cst_19 {dimension_numbers = #tpu.dot_dimension_numbers<[1], [0], [0], [1], [0, 0, 1, 1], [], []>} : vector<2x16xf32>, vector<16x64xf32>, vector<2x64xf32> -> vector<2x64xf32>
    %19 = arith.addf %14, %18 : vector<2x64xf32>
    %20 = vector.extract_strided_slice %19 {offsets = [0, 0], sizes = [2, 16], strides = [1, 1]} : vector<2x64xf32> to vector<2x16xf32>
    %21 = arith.negf %20 : vector<2x16xf32>
    %22 = math.exp %21 : vector<2x16xf32>
    %cst_20 = arith.constant 1.000000e+00 : f32
    %23 = vector.broadcast %cst_20 : f32 to vector<2x16xf32>
    %24 = arith.addf %23, %22 : vector<2x16xf32>
    %25 = arith.divf %23, %24 : vector<2x16xf32>
    %26 = vector.extract_strided_slice %19 {offsets = [0, 16], sizes = [2, 16], strides = [1, 1]} : vector<2x64xf32> to vector<2x16xf32>
    %27 = arith.negf %26 : vector<2x16xf32>
    %28 = math.exp %27 : vector<2x16xf32>
    %cst_21 = arith.constant 1.000000e+00 : f32
    %29 = vector.broadcast %cst_21 : f32 to vector<2x16xf32>
    %30 = arith.addf %29, %28 : vector<2x16xf32>
    %31 = arith.divf %29, %30 : vector<2x16xf32>
    %32 = vector.extract_strided_slice %19 {offsets = [0, 32], sizes = [2, 16], strides = [1, 1]} : vector<2x64xf32> to vector<2x16xf32>
    %33 = math.tanh %32 : vector<2x16xf32>
    %34 = vector.extract_strided_slice %19 {offsets = [0, 48], sizes = [2, 16], strides = [1, 1]} : vector<2x64xf32> to vector<2x16xf32>
    %35 = arith.negf %34 : vector<2x16xf32>
    %36 = math.exp %35 : vector<2x16xf32>
    %cst_22 = arith.constant 1.000000e+00 : f32
    %37 = vector.broadcast %cst_22 : f32 to vector<2x16xf32>
    %38 = arith.addf %37, %36 : vector<2x16xf32>
    %39 = arith.divf %37, %38 : vector<2x16xf32>
    %40 = arith.mulf %31, %4 : vector<2x16xf32>
    %41 = arith.mulf %25, %33 : vector<2x16xf32>
    %42 = arith.addf %40, %41 : vector<2x16xf32>
    %43 = math.tanh %42 : vector<2x16xf32>
    %44 = arith.mulf %39, %43 : vector<2x16xf32>
    %c0_23 = arith.constant 0 : index
    %c0_24 = arith.constant 0 : index
    %45 = vector.load %arg19[%c0_23, %c0_24] : memref<2x16xf32, #tpu.memory_space<vmem>>, vector<2x16xf32>
    %c0_25 = arith.constant 0 : index
    %c0_26 = arith.constant 0 : index
    %46 = vector.load %arg20[%c0_25, %c0_26] : memref<2x16xf32, #tpu.memory_space<vmem>>, vector<2x16xf32>
    %c0_27 = arith.constant 0 : index
    %c0_28 = arith.constant 0 : index
    %47 = vector.load %arg11[%c0_27, %c0_28] : memref<16x64xf32, #tpu.memory_space<vmem>>, vector<16x64xf32>
    %cst_29 = arith.constant dense<0.000000e+00> : vector<2x64xf32>
    %48 = tpu.matmul %45, %47, %cst_29 {dimension_numbers = #tpu.dot_dimension_numbers<[1], [0], [0], [1], [0, 0, 1, 1], [], []>} : vector<2x16xf32>, vector<16x64xf32>, vector<2x64xf32> -> vector<2x64xf32>
    %c0_30 = arith.constant 0 : index
    %c0_31 = arith.constant 0 : index
    %49 = vector.load %arg12[%c0_30, %c0_31] : memref<1x64xf32, #tpu.memory_space<vmem>>, vector<1x64xf32>
    %50 = vector.broadcast %49 : vector<1x64xf32> to vector<2x64xf32>
    %51 = arith.addf %48, %50 : vector<2x64xf32>
    %c0_32 = arith.constant 0 : index
    %c0_33 = arith.constant 0 : index
    %c0_34 = arith.constant 0 : index
    %52 = vector.load %arg3[%c0_32, %c0_33, %c0_34] : memref<1x2x16xf32, #tpu.memory_space<vmem>>, vector<1x2x16xf32>
    %53 = vector.shape_cast %52 : vector<1x2x16xf32> to vector<2x16xf32>
    %c0_35 = arith.constant 0 : index
    %c0_36 = arith.constant 0 : index
    %54 = vector.load %arg9[%c0_35, %c0_36] : memref<16x64xf32, #tpu.memory_space<vmem>>, vector<16x64xf32>
    %cst_37 = arith.constant dense<0.000000e+00> : vector<2x64xf32>
    %55 = tpu.matmul %53, %54, %cst_37 {dimension_numbers = #tpu.dot_dimension_numbers<[1], [0], [0], [1], [0, 0, 1, 1], [], []>} : vector<2x16xf32>, vector<16x64xf32>, vector<2x64xf32> -> vector<2x64xf32>
    %56 = arith.addf %51, %55 : vector<2x64xf32>
    %c0_38 = arith.constant 0 : index
    %c0_39 = arith.constant 0 : index
    %c0_40 = arith.constant 0 : index
    %57 = vector.load %arg4[%c0_38, %c0_39, %c0_40] : memref<1x2x16xf32, #tpu.memory_space<vmem>>, vector<1x2x16xf32>
    %58 = vector.shape_cast %57 : vector<1x2x16xf32> to vector<2x16xf32>
    %c0_41 = arith.constant 0 : index
    %c0_42 = arith.constant 0 : index
    %59 = vector.load %arg10[%c0_41, %c0_42] : memref<16x64xf32, #tpu.memory_space<vmem>>, vector<16x64xf32>
    %cst_43 = arith.constant dense<0.000000e+00> : vector<2x64xf32>
    %60 = tpu.matmul %58, %59, %cst_43 {dimension_numbers = #tpu.dot_dimension_numbers<[1], [0], [0], [1], [0, 0, 1, 1], [], []>} : vector<2x16xf32>, vector<16x64xf32>, vector<2x64xf32> -> vector<2x64xf32>
    %61 = arith.addf %56, %60 : vector<2x64xf32>
    %62 = vector.extract_strided_slice %61 {offsets = [0, 0], sizes = [2, 16], strides = [1, 1]} : vector<2x64xf32> to vector<2x16xf32>
    %63 = arith.negf %62 : vector<2x16xf32>
    %64 = math.exp %63 : vector<2x16xf32>
    %cst_44 = arith.constant 1.000000e+00 : f32
    %65 = vector.broadcast %cst_44 : f32 to vector<2x16xf32>
    %66 = arith.addf %65, %64 : vector<2x16xf32>
    %67 = arith.divf %65, %66 : vector<2x16xf32>
    %68 = vector.extract_strided_slice %61 {offsets = [0, 16], sizes = [2, 16], strides = [1, 1]} : vector<2x64xf32> to vector<2x16xf32>
    %69 = arith.negf %68 : vector<2x16xf32>
    %70 = math.exp %69 : vector<2x16xf32>
    %cst_45 = arith.constant 1.000000e+00 : f32
    %71 = vector.broadcast %cst_45 : f32 to vector<2x16xf32>
    %72 = arith.addf %71, %70 : vector<2x16xf32>
    %73 = arith.divf %71, %72 : vector<2x16xf32>
    %74 = vector.extract_strided_slice %61 {offsets = [0, 32], sizes = [2, 16], strides = [1, 1]} : vector<2x64xf32> to vector<2x16xf32>
    %75 = math.tanh %74 : vector<2x16xf32>
    %76 = vector.extract_strided_slice %61 {offsets = [0, 48], sizes = [2, 16], strides = [1, 1]} : vector<2x64xf32> to vector<2x16xf32>
    %77 = arith.negf %76 : vector<2x16xf32>
    %78 = math.exp %77 : vector<2x16xf32>
    %cst_46 = arith.constant 1.000000e+00 : f32
    %79 = vector.broadcast %cst_46 : f32 to vector<2x16xf32>
    %80 = arith.addf %79, %78 : vector<2x16xf32>
    %81 = arith.divf %79, %80 : vector<2x16xf32>
    %82 = arith.mulf %73, %46 : vector<2x16xf32>
    %83 = arith.mulf %67, %75 : vector<2x16xf32>
    %84 = arith.addf %82, %83 : vector<2x16xf32>
    %85 = math.tanh %84 : vector<2x16xf32>
    %86 = arith.mulf %81, %85 : vector<2x16xf32>
    %c0_47 = arith.constant 0 : index
    %c0_48 = arith.constant 0 : index
    %87 = vector.load %arg17[%c0_47, %c0_48] : memref<2x16xf32, #tpu.memory_space<vmem>>, vector<2x16xf32>
    tpu.vector_store %arg17[%c0_47, %c0_48], %44 {strides = array<i32>} : memref<2x16xf32, #tpu.memory_space<vmem>>, vector<2x16xf32>,
    %c0_49 = arith.constant 0 : index
    %c0_50 = arith.constant 0 : index
    %88 = vector.load %arg18[%c0_49, %c0_50] : memref<2x16xf32, #tpu.memory_space<vmem>>, vector<2x16xf32>
    tpu.vector_store %arg18[%c0_49, %c0_50], %42 {strides = array<i32>} : memref<2x16xf32, #tpu.memory_space<vmem>>, vector<2x16xf32>,
    %c0_51 = arith.constant 0 : index
    %c0_52 = arith.constant 0 : index
    %89 = vector.load %arg19[%c0_51, %c0_52] : memref<2x16xf32, #tpu.memory_space<vmem>>, vector<2x16xf32>
    tpu.vector_store %arg19[%c0_51, %c0_52], %86 {strides = array<i32>} : memref<2x16xf32, #tpu.memory_space<vmem>>, vector<2x16xf32>,
    %c0_53 = arith.constant 0 : index
    %c0_54 = arith.constant 0 : index
    %90 = vector.load %arg20[%c0_53, %c0_54] : memref<2x16xf32, #tpu.memory_space<vmem>>, vector<2x16xf32>
    tpu.vector_store %arg20[%c0_53, %c0_54], %84 {strides = array<i32>} : memref<2x16xf32, #tpu.memory_space<vmem>>, vector<2x16xf32>,
    %c5_i32 = arith.constant 5 : i32
    %91 = arith.cmpi eq, %arg0, %c5_i32 : i32
    %92 = arith.extui %91 : i1 to i32
    %c0_i32_55 = arith.constant 0 : i32
    %93 = arith.cmpi ne, %92, %c0_i32_55 : i32
    scf.if %93 {
      %c0_56 = arith.constant 0 : index
      %c0_57 = arith.constant 0 : index
      %94 = vector.load %arg13[%c0_56, %c0_57] : memref<2x16xf32, #tpu.memory_space<vmem>>, vector<2x16xf32>
      tpu.vector_store %arg13[%c0_56, %c0_57], %44 {strides = array<i32>} : memref<2x16xf32, #tpu.memory_space<vmem>>, vector<2x16xf32>,
      %c0_58 = arith.constant 0 : index
      %c0_59 = arith.constant 0 : index
      %95 = vector.load %arg14[%c0_58, %c0_59] : memref<2x16xf32, #tpu.memory_space<vmem>>, vector<2x16xf32>
      tpu.vector_store %arg14[%c0_58, %c0_59], %42 {strides = array<i32>} : memref<2x16xf32, #tpu.memory_space<vmem>>, vector<2x16xf32>,
      %c0_60 = arith.constant 0 : index
      %c0_61 = arith.constant 0 : index
      %96 = vector.load %arg15[%c0_60, %c0_61] : memref<2x16xf32, #tpu.memory_space<vmem>>, vector<2x16xf32>
      tpu.vector_store %arg15[%c0_60, %c0_61], %86 {strides = array<i32>} : memref<2x16xf32, #tpu.memory_space<vmem>>, vector<2x16xf32>,
      %c0_62 = arith.constant 0 : index
      %c0_63 = arith.constant 0 : index
      %97 = vector.load %arg16[%c0_62, %c0_63] : memref<2x16xf32, #tpu.memory_space<vmem>>, vector<2x16xf32>
      tpu.vector_store %arg16[%c0_62, %c0_63], %84 {strides = array<i32>} : memref<2x16xf32, #tpu.memory_space<vmem>>, vector<2x16xf32>,
    } else {
    }
    return
  }
  func.func @transform_0(%arg0: i32) -> (i32, i32, i32) {
    %c0_i32 = arith.constant 0 : i32
    %c0_i32_0 = arith.constant 0 : i32
    %c0_i32_1 = arith.constant 0 : i32
    return %arg0, %c0_i32, %c0_i32_0 : i32, i32, i32
  }
  func.func @transform_1(%arg0: i32) -> (i32, i32, i32) {
    %c0_i32 = arith.constant 0 : i32
    %c0_i32_0 = arith.constant 0 : i32
    %c0_i32_1 = arith.constant 0 : i32
    return %arg0, %c0_i32, %c0_i32_0 : i32, i32, i32
  }
  func.func @transform_2(%arg0: i32) -> (i32, i32, i32) {
    %c5_i32 = arith.constant 5 : i32
    %0 = arith.subi %c5_i32, %arg0 : i32
    %c0_i32 = arith.constant 0 : i32
    %c0_i32_0 = arith.constant 0 : i32
    %c0_i32_1 = arith.constant 0 : i32
    return %0, %c0_i32, %c0_i32_0 : i32, i32, i32
  }
  func.func @transform_3(%arg0: i32) -> (i32, i32, i32) {
    %c5_i32 = arith.constant 5 : i32
    %0 = arith.subi %c5_i32, %arg0 : i32
    %c0_i32 = arith.constant 0 : i32
    %c0_i32_0 = arith.constant 0 : i32
    %c0_i32_1 = arith.constant 0 : i32
    return %0, %c0_i32, %c0_i32_0 : i32, i32, i32
  }
  func.func @transform_4(%arg0: i32) -> (i32, i32) {
    %c0_i32 = arith.constant 0 : i32
    %c0_i32_0 = arith.constant 0 : i32
    %c0_i32_1 = arith.constant 0 : i32
    return %c0_i32, %c0_i32_0 : i32, i32
  }
  func.func @transform_5(%arg0: i32) -> (i32, i32) {
    %c0_i32 = arith.constant 0 : i32
    %c0_i32_0 = arith.constant 0 : i32
    %c0_i32_1 = arith.constant 0 : i32
    return %c0_i32, %c0_i32_0 : i32, i32
  }
  func.func @transform_6(%arg0: i32) -> (i32, i32) {
    %c0_i32 = arith.constant 0 : i32
    %c0_i32_0 = arith.constant 0 : i32
    %c0_i32_1 = arith.constant 0 : i32
    return %c0_i32, %c0_i32_0 : i32, i32
  }
  func.func @transform_7(%arg0: i32) -> (i32, i32) {
    %c0_i32 = arith.constant 0 : i32
    %c0_i32_0 = arith.constant 0 : i32
    %c0_i32_1 = arith.constant 0 : i32
    return %c0_i32, %c0_i32_0 : i32, i32
  }
  func.func @transform_8(%arg0: i32) -> (i32, i32) {
    %c0_i32 = arith.constant 0 : i32
    %c0_i32_0 = arith.constant 0 : i32
    %c0_i32_1 = arith.constant 0 : i32
    return %c0_i32, %c0_i32_0 : i32, i32
  }
  func.func @transform_9(%arg0: i32) -> (i32, i32) {
    %c0_i32 = arith.constant 0 : i32
    %c0_i32_0 = arith.constant 0 : i32
    %c0_i32_1 = arith.constant 0 : i32
    return %c0_i32, %c0_i32_0 : i32, i32
  }
  func.func @transform_10(%arg0: i32) -> (i32, i32) {
    %c0_i32 = arith.constant 0 : i32
    %c0_i32_0 = arith.constant 0 : i32
    %c0_i32_1 = arith.constant 0 : i32
    return %c0_i32, %c0_i32_0 : i32, i32
  }
  func.func @transform_11(%arg0: i32) -> (i32, i32) {
    %c0_i32 = arith.constant 0 : i32
    %c0_i32_0 = arith.constant 0 : i32
    %c0_i32_1 = arith.constant 0 : i32
    return %c0_i32, %c0_i32_0 : i32, i32
  }
  func.func @transform_12(%arg0: i32) -> (i32, i32) {
    %c0_i32 = arith.constant 0 : i32
    %c0_i32_0 = arith.constant 0 : i32
    %c0_i32_1 = arith.constant 0 : i32
    return %c0_i32, %c0_i32_0 : i32, i32
  }
  func.func @transform_13(%arg0: i32) -> (i32, i32) {
    %c0_i32 = arith.constant 0 : i32
    %c0_i32_0 = arith.constant 0 : i32
    %c0_i32_1 = arith.constant 0 : i32
    return %c0_i32, %c0_i32_0 : i32, i32
  }
  func.func @transform_14(%arg0: i32) -> (i32, i32) {
    %c0_i32 = arith.constant 0 : i32
    %c0_i32_0 = arith.constant 0 : i32
    %c0_i32_1 = arith.constant 0 : i32
    return %c0_i32, %c0_i32_0 : i32, i32
  }
  func.func @transform_15(%arg0: i32) -> (i32, i32) {
    %c0_i32 = arith.constant 0 : i32
    %c0_i32_0 = arith.constant 0 : i32
    %c0_i32_1 = arith.constant 0 : i32
    return %c0_i32, %c0_i32_0 : i32, i32
  }
}

module attributes {stable_mosaic.version = 11 : i64} {
  func.func @kernel(%arg0: i32, %arg1: memref<5xi32, #tpu.memory_space<smem>>, %arg2: memref<1x2x4xf32, #tpu.memory_space<vmem>>, %arg3: memref<2x2x32xf32, #tpu.memory_space<vmem>>, %arg4: memref<2x2x32xf32, #tpu.memory_space<vmem>>, %arg5: memref<4x128xf32, #tpu.memory_space<vmem>>, %arg6: memref<32x128xf32, #tpu.memory_space<vmem>>, %arg7: memref<1x128xf32, #tpu.memory_space<vmem>>, %arg8: memref<1x32xf32, #tpu.memory_space<vmem>>, %arg9: memref<1x32xf32, #tpu.memory_space<vmem>>, %arg10: memref<4x32xf32, #tpu.memory_space<vmem>>, %arg11: memref<1x32xf32, #tpu.memory_space<vmem>>, %arg12: memref<32x128xf32, #tpu.memory_space<vmem>>, %arg13: memref<32x128xf32, #tpu.memory_space<vmem>>, %arg14: memref<1x128xf32, #tpu.memory_space<vmem>>, %arg15: memref<1x32xf32, #tpu.memory_space<vmem>>, %arg16: memref<1x32xf32, #tpu.memory_space<vmem>>, %arg17: memref<32x4xf32, #tpu.memory_space<vmem>>, %arg18: memref<1x4xf32, #tpu.memory_space<vmem>>, %arg19: memref<1x2x4xf32, #tpu.memory_space<vmem>>, %arg20: memref<2x2x32xf32, #tpu.memory_space<vmem>>, %arg21: memref<2x2x32xf32, #tpu.memory_space<vmem>>, %arg22: memref<2x4xf32, #tpu.memory_space<vmem>>) attributes {dimension_semantics = [#tpu.dimension_semantics<arbitrary>], iteration_bounds = array<i64: 5>, scalar_prefetch = 1 : i64, scratch_operands = 3 : i64, tpu.core_type = #tpu.core_type<tc>, window_params = [{transform_indices = @transform_0, window_bounds = array<i64: 1, 2, 4>}, {pipeline_mode = #tpu.pipeline_mode<synchronous>, transform_indices = @transform_1, window_bounds = array<i64: 2, 2, 32>}, {pipeline_mode = #tpu.pipeline_mode<synchronous>, transform_indices = @transform_2, window_bounds = array<i64: 2, 2, 32>}, {pipeline_mode = #tpu.pipeline_mode<synchronous>, transform_indices = @transform_3, window_bounds = array<i64: 4, 128>}, {pipeline_mode = #tpu.pipeline_mode<synchronous>, transform_indices = @transform_4, window_bounds = array<i64: 32, 128>}, {pipeline_mode = #tpu.pipeline_mode<synchronous>, transform_indices = @transform_5, window_bounds = array<i64: 1, 128>}, {pipeline_mode = #tpu.pipeline_mode<synchronous>, transform_indices = @transform_6, window_bounds = array<i64: 1, 32>}, {pipeline_mode = #tpu.pipeline_mode<synchronous>, transform_indices = @transform_7, window_bounds = array<i64: 1, 32>}, {pipeline_mode = #tpu.pipeline_mode<synchronous>, transform_indices = @transform_8, window_bounds = array<i64: 4, 32>}, {pipeline_mode = #tpu.pipeline_mode<synchronous>, transform_indices = @transform_9, window_bounds = array<i64: 1, 32>}, {pipeline_mode = #tpu.pipeline_mode<synchronous>, transform_indices = @transform_10, window_bounds = array<i64: 32, 128>}, {pipeline_mode = #tpu.pipeline_mode<synchronous>, transform_indices = @transform_11, window_bounds = array<i64: 32, 128>}, {pipeline_mode = #tpu.pipeline_mode<synchronous>, transform_indices = @transform_12, window_bounds = array<i64: 1, 128>}, {pipeline_mode = #tpu.pipeline_mode<synchronous>, transform_indices = @transform_13, window_bounds = array<i64: 1, 32>}, {pipeline_mode = #tpu.pipeline_mode<synchronous>, transform_indices = @transform_14, window_bounds = array<i64: 1, 32>}, {pipeline_mode = #tpu.pipeline_mode<synchronous>, transform_indices = @transform_15, window_bounds = array<i64: 32, 4>}, {pipeline_mode = #tpu.pipeline_mode<synchronous>, transform_indices = @transform_16, window_bounds = array<i64: 1, 4>}, {transform_indices = @transform_17, window_bounds = array<i64: 1, 2, 4>}]} {
    %c0_i32 = arith.constant 0 : i32
    %0 = arith.cmpi eq, %arg0, %c0_i32 : i32
    %1 = arith.extui %0 : i1 to i32
    %c0_i32_0 = arith.constant 0 : i32
    %2 = arith.cmpi ne, %1, %c0_i32_0 : i32
    scf.if %2 {
      %c0_82 = arith.constant 0 : index
      %c0_83 = arith.constant 0 : index
      %c0_84 = arith.constant 0 : index
      %160 = vector.load %arg3[%c0_82, %c0_83, %c0_84] : memref<2x2x32xf32, #tpu.memory_space<vmem>>, vector<2x2x32xf32>
      %c0_85 = arith.constant 0 : index
      %c0_86 = arith.constant 0 : index
      %c0_87 = arith.constant 0 : index
      %161 = vector.load %arg20[%c0_85, %c0_86, %c0_87] : memref<2x2x32xf32, #tpu.memory_space<vmem>>, vector<2x2x32xf32>
      tpu.vector_store %arg20[%c0_85, %c0_86, %c0_87], %160 {strides = array<i32>} : memref<2x2x32xf32, #tpu.memory_space<vmem>>, vector<2x2x32xf32>,
      %c0_88 = arith.constant 0 : index
      %c0_89 = arith.constant 0 : index
      %c0_90 = arith.constant 0 : index
      %162 = vector.load %arg4[%c0_88, %c0_89, %c0_90] : memref<2x2x32xf32, #tpu.memory_space<vmem>>, vector<2x2x32xf32>
      %c0_91 = arith.constant 0 : index
      %c0_92 = arith.constant 0 : index
      %c0_93 = arith.constant 0 : index
      %163 = vector.load %arg21[%c0_91, %c0_92, %c0_93] : memref<2x2x32xf32, #tpu.memory_space<vmem>>, vector<2x2x32xf32>
      tpu.vector_store %arg21[%c0_91, %c0_92, %c0_93], %162 {strides = array<i32>} : memref<2x2x32xf32, #tpu.memory_space<vmem>>, vector<2x2x32xf32>,
      %cst_94 = arith.constant 0.000000e+00 : f32
      %164 = vector.broadcast %cst_94 : f32 to vector<2x4xf32>
      %c0_95 = arith.constant 0 : index
      %c0_96 = arith.constant 0 : index
      %165 = vector.load %arg22[%c0_95, %c0_96] : memref<2x4xf32, #tpu.memory_space<vmem>>, vector<2x4xf32>
      tpu.vector_store %arg22[%c0_95, %c0_96], %164 {strides = array<i32>} : memref<2x4xf32, #tpu.memory_space<vmem>>, vector<2x4xf32>,
    } else {
    }
    %c0 = arith.constant 0 : index
    %c0_1 = arith.constant 0 : index
    %3 = vector.load %arg22[%c0, %c0_1] : memref<2x4xf32, #tpu.memory_space<vmem>>, vector<2x4xf32>
    %c0_2 = arith.constant 0 : index
    %c0_3 = arith.constant 0 : index
    %c0_4 = arith.constant 0 : index
    %4 = vector.load %arg20[%c0_2, %c0_3, %c0_4] : memref<2x2x32xf32, #tpu.memory_space<vmem>>, vector<1x2x32xf32>
    %5 = vector.shape_cast %4 : vector<1x2x32xf32> to vector<2x32xf32>
    %c0_5 = arith.constant 0 : index
    %c0_6 = arith.constant 0 : index
    %c0_7 = arith.constant 0 : index
    %6 = vector.load %arg21[%c0_5, %c0_6, %c0_7] : memref<2x2x32xf32, #tpu.memory_space<vmem>>, vector<1x2x32xf32>
    %7 = vector.shape_cast %6 : vector<1x2x32xf32> to vector<2x32xf32>
    %c0_8 = arith.constant 0 : index
    %c0_9 = arith.constant 0 : index
    %8 = vector.load %arg5[%c0_8, %c0_9] : memref<4x128xf32, #tpu.memory_space<vmem>>, vector<4x128xf32>
    %cst = arith.constant dense<0.000000e+00> : vector<2x128xf32>
    %9 = tpu.matmul %3, %8, %cst {dimension_numbers = #tpu.dot_dimension_numbers<[1], [0], [0], [1], [0, 0, 1, 1], [], []>} : vector<2x4xf32>, vector<4x128xf32>, vector<2x128xf32> -> vector<2x128xf32>
    %c0_10 = arith.constant 0 : index
    %c0_11 = arith.constant 0 : index
    %10 = vector.load %arg6[%c0_10, %c0_11] : memref<32x128xf32, #tpu.memory_space<vmem>>, vector<32x128xf32>
    %cst_12 = arith.constant dense<0.000000e+00> : vector<2x128xf32>
    %11 = tpu.matmul %5, %10, %cst_12 {dimension_numbers = #tpu.dot_dimension_numbers<[1], [0], [0], [1], [0, 0, 1, 1], [], []>} : vector<2x32xf32>, vector<32x128xf32>, vector<2x128xf32> -> vector<2x128xf32>
    %12 = arith.addf %9, %11 : vector<2x128xf32>
    %c0_13 = arith.constant 0 : index
    %c0_14 = arith.constant 0 : index
    %13 = vector.load %arg7[%c0_13, %c0_14] : memref<1x128xf32, #tpu.memory_space<vmem>>, vector<1x128xf32>
    %14 = vector.broadcast %13 : vector<1x128xf32> to vector<2x128xf32>
    %15 = arith.addf %12, %14 : vector<2x128xf32>
    %16 = vector.extract_strided_slice %15 {offsets = [0, 0], sizes = [2, 32], strides = [1, 1]} : vector<2x128xf32> to vector<2x32xf32>
    %17 = arith.negf %16 : vector<2x32xf32>
    %18 = math.exp %17 : vector<2x32xf32>
    %cst_15 = arith.constant 1.000000e+00 : f32
    %19 = vector.broadcast %cst_15 : f32 to vector<2x32xf32>
    %20 = arith.addf %19, %18 : vector<2x32xf32>
    %21 = arith.divf %19, %20 : vector<2x32xf32>
    %22 = vector.extract_strided_slice %15 {offsets = [0, 32], sizes = [2, 32], strides = [1, 1]} : vector<2x128xf32> to vector<2x32xf32>
    %23 = arith.negf %22 : vector<2x32xf32>
    %24 = math.exp %23 : vector<2x32xf32>
    %cst_16 = arith.constant 1.000000e+00 : f32
    %25 = vector.broadcast %cst_16 : f32 to vector<2x32xf32>
    %26 = arith.addf %25, %24 : vector<2x32xf32>
    %27 = arith.divf %25, %26 : vector<2x32xf32>
    %28 = vector.extract_strided_slice %15 {offsets = [0, 64], sizes = [2, 32], strides = [1, 1]} : vector<2x128xf32> to vector<2x32xf32>
    %29 = math.tanh %28 : vector<2x32xf32>
    %30 = vector.extract_strided_slice %15 {offsets = [0, 96], sizes = [2, 32], strides = [1, 1]} : vector<2x128xf32> to vector<2x32xf32>
    %31 = arith.negf %30 : vector<2x32xf32>
    %32 = math.exp %31 : vector<2x32xf32>
    %cst_17 = arith.constant 1.000000e+00 : f32
    %33 = vector.broadcast %cst_17 : f32 to vector<2x32xf32>
    %34 = arith.addf %33, %32 : vector<2x32xf32>
    %35 = arith.divf %33, %34 : vector<2x32xf32>
    %36 = arith.mulf %27, %7 : vector<2x32xf32>
    %37 = arith.mulf %21, %29 : vector<2x32xf32>
    %38 = arith.addf %36, %37 : vector<2x32xf32>
    %39 = math.tanh %38 : vector<2x32xf32>
    %40 = arith.mulf %35, %39 : vector<2x32xf32>
    %c0_18 = arith.constant 0 : index
    %c0_19 = arith.constant 0 : index
    %c0_20 = arith.constant 0 : index
    %41 = vector.load %arg20[%c0_18, %c0_19, %c0_20] : memref<2x2x32xf32, #tpu.memory_space<vmem>>, vector<1x2x32xf32>
    %42 = vector.shape_cast %41 : vector<1x2x32xf32> to vector<2x32xf32>
    %43 = vector.shape_cast %40 : vector<2x32xf32> to vector<1x2x32xf32>
    tpu.vector_store %arg20[%c0_18, %c0_19, %c0_20], %43 {strides = array<i32>} : memref<2x2x32xf32, #tpu.memory_space<vmem>>, vector<1x2x32xf32>,
    %c0_21 = arith.constant 0 : index
    %c0_22 = arith.constant 0 : index
    %c0_23 = arith.constant 0 : index
    %44 = vector.load %arg21[%c0_21, %c0_22, %c0_23] : memref<2x2x32xf32, #tpu.memory_space<vmem>>, vector<1x2x32xf32>
    %45 = vector.shape_cast %44 : vector<1x2x32xf32> to vector<2x32xf32>
    %46 = vector.shape_cast %38 : vector<2x32xf32> to vector<1x2x32xf32>
    tpu.vector_store %arg21[%c0_21, %c0_22, %c0_23], %46 {strides = array<i32>} : memref<2x2x32xf32, #tpu.memory_space<vmem>>, vector<1x2x32xf32>,
    %cst_24 = arith.constant dense<0.000000e+00> : vector<2xf32>
    %47 = vector.multi_reduction <add>, %40, %cst_24 [1] : vector<2x32xf32> to vector<2xf32>
    %48 = vector.shape_cast %47 : vector<2xf32> to vector<2x1xf32>
    %cst_25 = arith.constant 3.200000e+01 : f32
    %49 = vector.broadcast %cst_25 : f32 to vector<2x1xf32>
    %50 = arith.divf %48, %49 : vector<2x1xf32>
    %51 = vector.broadcast %50 : vector<2x1xf32> to vector<2x32xf32>
    %52 = arith.subf %40, %51 : vector<2x32xf32>
    %53 = arith.mulf %52, %52 : vector<2x32xf32>
    %cst_26 = arith.constant dense<0.000000e+00> : vector<2xf32>
    %54 = vector.multi_reduction <add>, %53, %cst_26 [1] : vector<2x32xf32> to vector<2xf32>
    %55 = vector.shape_cast %54 : vector<2xf32> to vector<2x1xf32>
    %cst_27 = arith.constant 3.200000e+01 : f32
    %56 = vector.broadcast %cst_27 : f32 to vector<2x1xf32>
    %57 = arith.divf %55, %56 : vector<2x1xf32>
    %58 = vector.broadcast %50 : vector<2x1xf32> to vector<2x32xf32>
    %59 = arith.subf %40, %58 : vector<2x32xf32>
    %cst_28 = arith.constant 9.99999974E-6 : f32
    %60 = vector.broadcast %cst_28 : f32 to vector<2x1xf32>
    %61 = arith.addf %57, %60 : vector<2x1xf32>
    %62 = math.rsqrt %61 : vector<2x1xf32>
    %63 = vector.broadcast %62 : vector<2x1xf32> to vector<2x32xf32>
    %64 = arith.mulf %59, %63 : vector<2x32xf32>
    %c0_29 = arith.constant 0 : index
    %c0_30 = arith.constant 0 : index
    %65 = vector.load %arg8[%c0_29, %c0_30] : memref<1x32xf32, #tpu.memory_space<vmem>>, vector<1x32xf32>
    %66 = vector.broadcast %65 : vector<1x32xf32> to vector<2x32xf32>
    %67 = arith.mulf %64, %66 : vector<2x32xf32>
    %c0_31 = arith.constant 0 : index
    %c0_32 = arith.constant 0 : index
    %68 = vector.load %arg9[%c0_31, %c0_32] : memref<1x32xf32, #tpu.memory_space<vmem>>, vector<1x32xf32>
    %69 = vector.broadcast %68 : vector<1x32xf32> to vector<2x32xf32>
    %70 = arith.addf %67, %69 : vector<2x32xf32>
    %c0_33 = arith.constant 0 : index
    %c0_34 = arith.constant 0 : index
    %71 = vector.load %arg10[%c0_33, %c0_34] : memref<4x32xf32, #tpu.memory_space<vmem>>, vector<4x32xf32>
    %cst_35 = arith.constant dense<0.000000e+00> : vector<2x32xf32>
    %72 = tpu.matmul %3, %71, %cst_35 {dimension_numbers = #tpu.dot_dimension_numbers<[1], [0], [0], [1], [0, 0, 1, 1], [], []>} : vector<2x4xf32>, vector<4x32xf32>, vector<2x32xf32> -> vector<2x32xf32>
    %c0_36 = arith.constant 0 : index
    %c0_37 = arith.constant 0 : index
    %73 = vector.load %arg11[%c0_36, %c0_37] : memref<1x32xf32, #tpu.memory_space<vmem>>, vector<1x32xf32>
    %74 = vector.broadcast %73 : vector<1x32xf32> to vector<2x32xf32>
    %75 = arith.addf %72, %74 : vector<2x32xf32>
    %76 = arith.addf %70, %75 : vector<2x32xf32>
    %c1 = arith.constant 1 : index
    %c0_38 = arith.constant 0 : index
    %c0_39 = arith.constant 0 : index
    %77 = vector.load %arg20[%c1, %c0_38, %c0_39] : memref<2x2x32xf32, #tpu.memory_space<vmem>>, vector<1x2x32xf32>
    %78 = vector.shape_cast %77 : vector<1x2x32xf32> to vector<2x32xf32>
    %c1_40 = arith.constant 1 : index
    %c0_41 = arith.constant 0 : index
    %c0_42 = arith.constant 0 : index
    %79 = vector.load %arg21[%c1_40, %c0_41, %c0_42] : memref<2x2x32xf32, #tpu.memory_space<vmem>>, vector<1x2x32xf32>
    %80 = vector.shape_cast %79 : vector<1x2x32xf32> to vector<2x32xf32>
    %c0_43 = arith.constant 0 : index
    %c0_44 = arith.constant 0 : index
    %81 = vector.load %arg12[%c0_43, %c0_44] : memref<32x128xf32, #tpu.memory_space<vmem>>, vector<32x128xf32>
    %cst_45 = arith.constant dense<0.000000e+00> : vector<2x128xf32>
    %82 = tpu.matmul %76, %81, %cst_45 {dimension_numbers = #tpu.dot_dimension_numbers<[1], [0], [0], [1], [0, 0, 1, 1], [], []>} : vector<2x32xf32>, vector<32x128xf32>, vector<2x128xf32> -> vector<2x128xf32>
    %c0_46 = arith.constant 0 : index
    %c0_47 = arith.constant 0 : index
    %83 = vector.load %arg13[%c0_46, %c0_47] : memref<32x128xf32, #tpu.memory_space<vmem>>, vector<32x128xf32>
    %cst_48 = arith.constant dense<0.000000e+00> : vector<2x128xf32>
    %84 = tpu.matmul %78, %83, %cst_48 {dimension_numbers = #tpu.dot_dimension_numbers<[1], [0], [0], [1], [0, 0, 1, 1], [], []>} : vector<2x32xf32>, vector<32x128xf32>, vector<2x128xf32> -> vector<2x128xf32>
    %85 = arith.addf %82, %84 : vector<2x128xf32>
    %c0_49 = arith.constant 0 : index
    %c0_50 = arith.constant 0 : index
    %86 = vector.load %arg14[%c0_49, %c0_50] : memref<1x128xf32, #tpu.memory_space<vmem>>, vector<1x128xf32>
    %87 = vector.broadcast %86 : vector<1x128xf32> to vector<2x128xf32>
    %88 = arith.addf %85, %87 : vector<2x128xf32>
    %89 = vector.extract_strided_slice %88 {offsets = [0, 0], sizes = [2, 32], strides = [1, 1]} : vector<2x128xf32> to vector<2x32xf32>
    %90 = arith.negf %89 : vector<2x32xf32>
    %91 = math.exp %90 : vector<2x32xf32>
    %cst_51 = arith.constant 1.000000e+00 : f32
    %92 = vector.broadcast %cst_51 : f32 to vector<2x32xf32>
    %93 = arith.addf %92, %91 : vector<2x32xf32>
    %94 = arith.divf %92, %93 : vector<2x32xf32>
    %95 = vector.extract_strided_slice %88 {offsets = [0, 32], sizes = [2, 32], strides = [1, 1]} : vector<2x128xf32> to vector<2x32xf32>
    %96 = arith.negf %95 : vector<2x32xf32>
    %97 = math.exp %96 : vector<2x32xf32>
    %cst_52 = arith.constant 1.000000e+00 : f32
    %98 = vector.broadcast %cst_52 : f32 to vector<2x32xf32>
    %99 = arith.addf %98, %97 : vector<2x32xf32>
    %100 = arith.divf %98, %99 : vector<2x32xf32>
    %101 = vector.extract_strided_slice %88 {offsets = [0, 64], sizes = [2, 32], strides = [1, 1]} : vector<2x128xf32> to vector<2x32xf32>
    %102 = math.tanh %101 : vector<2x32xf32>
    %103 = vector.extract_strided_slice %88 {offsets = [0, 96], sizes = [2, 32], strides = [1, 1]} : vector<2x128xf32> to vector<2x32xf32>
    %104 = arith.negf %103 : vector<2x32xf32>
    %105 = math.exp %104 : vector<2x32xf32>
    %cst_53 = arith.constant 1.000000e+00 : f32
    %106 = vector.broadcast %cst_53 : f32 to vector<2x32xf32>
    %107 = arith.addf %106, %105 : vector<2x32xf32>
    %108 = arith.divf %106, %107 : vector<2x32xf32>
    %109 = arith.mulf %100, %80 : vector<2x32xf32>
    %110 = arith.mulf %94, %102 : vector<2x32xf32>
    %111 = arith.addf %109, %110 : vector<2x32xf32>
    %112 = math.tanh %111 : vector<2x32xf32>
    %113 = arith.mulf %108, %112 : vector<2x32xf32>
    %c1_54 = arith.constant 1 : index
    %c0_55 = arith.constant 0 : index
    %c0_56 = arith.constant 0 : index
    %114 = vector.load %arg20[%c1_54, %c0_55, %c0_56] : memref<2x2x32xf32, #tpu.memory_space<vmem>>, vector<1x2x32xf32>
    %115 = vector.shape_cast %114 : vector<1x2x32xf32> to vector<2x32xf32>
    %116 = vector.shape_cast %113 : vector<2x32xf32> to vector<1x2x32xf32>
    tpu.vector_store %arg20[%c1_54, %c0_55, %c0_56], %116 {strides = array<i32>} : memref<2x2x32xf32, #tpu.memory_space<vmem>>, vector<1x2x32xf32>,
    %c1_57 = arith.constant 1 : index
    %c0_58 = arith.constant 0 : index
    %c0_59 = arith.constant 0 : index
    %117 = vector.load %arg21[%c1_57, %c0_58, %c0_59] : memref<2x2x32xf32, #tpu.memory_space<vmem>>, vector<1x2x32xf32>
    %118 = vector.shape_cast %117 : vector<1x2x32xf32> to vector<2x32xf32>
    %119 = vector.shape_cast %111 : vector<2x32xf32> to vector<1x2x32xf32>
    tpu.vector_store %arg21[%c1_57, %c0_58, %c0_59], %119 {strides = array<i32>} : memref<2x2x32xf32, #tpu.memory_space<vmem>>, vector<1x2x32xf32>,
    %cst_60 = arith.constant dense<0.000000e+00> : vector<2xf32>
    %120 = vector.multi_reduction <add>, %113, %cst_60 [1] : vector<2x32xf32> to vector<2xf32>
    %121 = vector.shape_cast %120 : vector<2xf32> to vector<2x1xf32>
    %cst_61 = arith.constant 3.200000e+01 : f32
    %122 = vector.broadcast %cst_61 : f32 to vector<2x1xf32>
    %123 = arith.divf %121, %122 : vector<2x1xf32>
    %124 = vector.broadcast %123 : vector<2x1xf32> to vector<2x32xf32>
    %125 = arith.subf %113, %124 : vector<2x32xf32>
    %126 = arith.mulf %125, %125 : vector<2x32xf32>
    %cst_62 = arith.constant dense<0.000000e+00> : vector<2xf32>
    %127 = vector.multi_reduction <add>, %126, %cst_62 [1] : vector<2x32xf32> to vector<2xf32>
    %128 = vector.shape_cast %127 : vector<2xf32> to vector<2x1xf32>
    %cst_63 = arith.constant 3.200000e+01 : f32
    %129 = vector.broadcast %cst_63 : f32 to vector<2x1xf32>
    %130 = arith.divf %128, %129 : vector<2x1xf32>
    %131 = vector.broadcast %123 : vector<2x1xf32> to vector<2x32xf32>
    %132 = arith.subf %113, %131 : vector<2x32xf32>
    %cst_64 = arith.constant 9.99999974E-6 : f32
    %133 = vector.broadcast %cst_64 : f32 to vector<2x1xf32>
    %134 = arith.addf %130, %133 : vector<2x1xf32>
    %135 = math.rsqrt %134 : vector<2x1xf32>
    %136 = vector.broadcast %135 : vector<2x1xf32> to vector<2x32xf32>
    %137 = arith.mulf %132, %136 : vector<2x32xf32>
    %c0_65 = arith.constant 0 : index
    %c0_66 = arith.constant 0 : index
    %138 = vector.load %arg15[%c0_65, %c0_66] : memref<1x32xf32, #tpu.memory_space<vmem>>, vector<1x32xf32>
    %139 = vector.broadcast %138 : vector<1x32xf32> to vector<2x32xf32>
    %140 = arith.mulf %137, %139 : vector<2x32xf32>
    %c0_67 = arith.constant 0 : index
    %c0_68 = arith.constant 0 : index
    %141 = vector.load %arg16[%c0_67, %c0_68] : memref<1x32xf32, #tpu.memory_space<vmem>>, vector<1x32xf32>
    %142 = vector.broadcast %141 : vector<1x32xf32> to vector<2x32xf32>
    %143 = arith.addf %140, %142 : vector<2x32xf32>
    %144 = arith.addf %143, %76 : vector<2x32xf32>
    %c0_69 = arith.constant 0 : index
    %c0_70 = arith.constant 0 : index
    %145 = vector.load %arg17[%c0_69, %c0_70] : memref<32x4xf32, #tpu.memory_space<vmem>>, vector<32x4xf32>
    %cst_71 = arith.constant dense<0.000000e+00> : vector<2x4xf32>
    %146 = tpu.matmul %144, %145, %cst_71 {dimension_numbers = #tpu.dot_dimension_numbers<[1], [0], [0], [1], [0, 0, 1, 1], [], []>} : vector<2x32xf32>, vector<32x4xf32>, vector<2x4xf32> -> vector<2x4xf32>
    %c0_72 = arith.constant 0 : index
    %c0_73 = arith.constant 0 : index
    %147 = vector.load %arg18[%c0_72, %c0_73] : memref<1x4xf32, #tpu.memory_space<vmem>>, vector<1x4xf32>
    %148 = vector.broadcast %147 : vector<1x4xf32> to vector<2x4xf32>
    %149 = arith.addf %146, %148 : vector<2x4xf32>
    %c0_74 = arith.constant 0 : index
    %c0_75 = arith.constant 0 : index
    %c0_76 = arith.constant 0 : index
    %150 = vector.load %arg19[%c0_74, %c0_75, %c0_76] : memref<1x2x4xf32, #tpu.memory_space<vmem>>, vector<1x2x4xf32>
    %151 = vector.shape_cast %150 : vector<1x2x4xf32> to vector<2x4xf32>
    %152 = vector.shape_cast %149 : vector<2x4xf32> to vector<1x2x4xf32>
    tpu.vector_store %arg19[%c0_74, %c0_75, %c0_76], %152 {strides = array<i32>} : memref<1x2x4xf32, #tpu.memory_space<vmem>>, vector<1x2x4xf32>,
    %153 = arith.index_cast %arg0 : i32 to index
    %154 = memref.load %arg1[%153] : memref<5xi32, #tpu.memory_space<smem>>
    %c1_i32 = arith.constant 1 : i32
    %155 = arith.cmpi eq, %154, %c1_i32 : i32
    %c0_77 = arith.constant 0 : index
    %c0_78 = arith.constant 0 : index
    %c0_79 = arith.constant 0 : index
    %156 = vector.load %arg2[%c0_77, %c0_78, %c0_79] : memref<1x2x4xf32, #tpu.memory_space<vmem>>, vector<1x2x4xf32>
    %157 = vector.shape_cast %156 : vector<1x2x4xf32> to vector<2x4xf32>
    %158 = arith.select %155, %157, %149 : vector<2x4xf32>
    %c0_80 = arith.constant 0 : index
    %c0_81 = arith.constant 0 : index
    %159 = vector.load %arg22[%c0_80, %c0_81] : memref<2x4xf32, #tpu.memory_space<vmem>>, vector<2x4xf32>
    tpu.vector_store %arg22[%c0_80, %c0_81], %158 {strides = array<i32>} : memref<2x4xf32, #tpu.memory_space<vmem>>, vector<2x4xf32>,
    return
  }
  func.func @transform_0(%arg0: i32, %arg1: memref<5xi32, #tpu.memory_space<smem>>) -> (i32, i32, i32) {
    %c0_i32 = arith.constant 0 : i32
    %c0_i32_0 = arith.constant 0 : i32
    %c0_i32_1 = arith.constant 0 : i32
    return %arg0, %c0_i32, %c0_i32_0 : i32, i32, i32
  }
  func.func @transform_1(%arg0: i32, %arg1: memref<5xi32, #tpu.memory_space<smem>>) -> (i32, i32, i32) {
    %c0_i32 = arith.constant 0 : i32
    %c0_i32_0 = arith.constant 0 : i32
    %c0_i32_1 = arith.constant 0 : i32
    %c0_i32_2 = arith.constant 0 : i32
    return %c0_i32, %c0_i32_0, %c0_i32_1 : i32, i32, i32
  }
  func.func @transform_2(%arg0: i32, %arg1: memref<5xi32, #tpu.memory_space<smem>>) -> (i32, i32, i32) {
    %c0_i32 = arith.constant 0 : i32
    %c0_i32_0 = arith.constant 0 : i32
    %c0_i32_1 = arith.constant 0 : i32
    %c0_i32_2 = arith.constant 0 : i32
    return %c0_i32, %c0_i32_0, %c0_i32_1 : i32, i32, i32
  }
  func.func @transform_3(%arg0: i32, %arg1: memref<5xi32, #tpu.memory_space<smem>>) -> (i32, i32) {
    %c0_i32 = arith.constant 0 : i32
    %c0_i32_0 = arith.constant 0 : i32
    %c0_i32_1 = arith.constant 0 : i32
    return %c0_i32, %c0_i32_0 : i32, i32
  }
  func.func @transform_4(%arg0: i32, %arg1: memref<5xi32, #tpu.memory_space<smem>>) -> (i32, i32) {
    %c0_i32 = arith.constant 0 : i32
    %c0_i32_0 = arith.constant 0 : i32
    %c0_i32_1 = arith.constant 0 : i32
    return %c0_i32, %c0_i32_0 : i32, i32
  }
  func.func @transform_5(%arg0: i32, %arg1: memref<5xi32, #tpu.memory_space<smem>>) -> (i32, i32) {
    %c0_i32 = arith.constant 0 : i32
    %c0_i32_0 = arith.constant 0 : i32
    %c0_i32_1 = arith.constant 0 : i32
    return %c0_i32, %c0_i32_0 : i32, i32
  }
  func.func @transform_6(%arg0: i32, %arg1: memref<5xi32, #tpu.memory_space<smem>>) -> (i32, i32) {
    %c0_i32 = arith.constant 0 : i32
    %c0_i32_0 = arith.constant 0 : i32
    %c0_i32_1 = arith.constant 0 : i32
    return %c0_i32, %c0_i32_0 : i32, i32
  }
  func.func @transform_7(%arg0: i32, %arg1: memref<5xi32, #tpu.memory_space<smem>>) -> (i32, i32) {
    %c0_i32 = arith.constant 0 : i32
    %c0_i32_0 = arith.constant 0 : i32
    %c0_i32_1 = arith.constant 0 : i32
    return %c0_i32, %c0_i32_0 : i32, i32
  }
  func.func @transform_8(%arg0: i32, %arg1: memref<5xi32, #tpu.memory_space<smem>>) -> (i32, i32) {
    %c0_i32 = arith.constant 0 : i32
    %c0_i32_0 = arith.constant 0 : i32
    %c0_i32_1 = arith.constant 0 : i32
    return %c0_i32, %c0_i32_0 : i32, i32
  }
  func.func @transform_9(%arg0: i32, %arg1: memref<5xi32, #tpu.memory_space<smem>>) -> (i32, i32) {
    %c0_i32 = arith.constant 0 : i32
    %c0_i32_0 = arith.constant 0 : i32
    %c0_i32_1 = arith.constant 0 : i32
    return %c0_i32, %c0_i32_0 : i32, i32
  }
  func.func @transform_10(%arg0: i32, %arg1: memref<5xi32, #tpu.memory_space<smem>>) -> (i32, i32) {
    %c0_i32 = arith.constant 0 : i32
    %c0_i32_0 = arith.constant 0 : i32
    %c0_i32_1 = arith.constant 0 : i32
    return %c0_i32, %c0_i32_0 : i32, i32
  }
  func.func @transform_11(%arg0: i32, %arg1: memref<5xi32, #tpu.memory_space<smem>>) -> (i32, i32) {
    %c0_i32 = arith.constant 0 : i32
    %c0_i32_0 = arith.constant 0 : i32
    %c0_i32_1 = arith.constant 0 : i32
    return %c0_i32, %c0_i32_0 : i32, i32
  }
  func.func @transform_12(%arg0: i32, %arg1: memref<5xi32, #tpu.memory_space<smem>>) -> (i32, i32) {
    %c0_i32 = arith.constant 0 : i32
    %c0_i32_0 = arith.constant 0 : i32
    %c0_i32_1 = arith.constant 0 : i32
    return %c0_i32, %c0_i32_0 : i32, i32
  }
  func.func @transform_13(%arg0: i32, %arg1: memref<5xi32, #tpu.memory_space<smem>>) -> (i32, i32) {
    %c0_i32 = arith.constant 0 : i32
    %c0_i32_0 = arith.constant 0 : i32
    %c0_i32_1 = arith.constant 0 : i32
    return %c0_i32, %c0_i32_0 : i32, i32
  }
  func.func @transform_14(%arg0: i32, %arg1: memref<5xi32, #tpu.memory_space<smem>>) -> (i32, i32) {
    %c0_i32 = arith.constant 0 : i32
    %c0_i32_0 = arith.constant 0 : i32
    %c0_i32_1 = arith.constant 0 : i32
    return %c0_i32, %c0_i32_0 : i32, i32
  }
  func.func @transform_15(%arg0: i32, %arg1: memref<5xi32, #tpu.memory_space<smem>>) -> (i32, i32) {
    %c0_i32 = arith.constant 0 : i32
    %c0_i32_0 = arith.constant 0 : i32
    %c0_i32_1 = arith.constant 0 : i32
    return %c0_i32, %c0_i32_0 : i32, i32
  }
  func.func @transform_16(%arg0: i32, %arg1: memref<5xi32, #tpu.memory_space<smem>>) -> (i32, i32) {
    %c0_i32 = arith.constant 0 : i32
    %c0_i32_0 = arith.constant 0 : i32
    %c0_i32_1 = arith.constant 0 : i32
    return %c0_i32, %c0_i32_0 : i32, i32
  }
  func.func @transform_17(%arg0: i32, %arg1: memref<5xi32, #tpu.memory_space<smem>>) -> (i32, i32, i32) {
    %c0_i32 = arith.constant 0 : i32
    %c0_i32_0 = arith.constant 0 : i32
    %c0_i32_1 = arith.constant 0 : i32
    return %arg0, %c0_i32, %c0_i32_0 : i32, i32, i32
  }
}

</mosaic_0001>

<llo_original>
// kernel: seq2seq_forward.4
$region0: #{seq2seq_forward.4}
  #allocation0 [shape = 'u32[]', space=smem, size = 0x4, offset = 0x4, fixed_abs, tag = 'smem constant byte address 0x4 - core index']
  #allocation1 [shape = 'u32[72,128]{1,0:T(1,128)}', space=vmem, size = 0x9000, scoped, tag = 'internal scratch']
  #allocation2 [shape = 'f32[2,16]{1,0:T(2,128)}', space=vmem, size = 0x400, scoped, tag = 'scratch operand']
  #allocation3 [shape = 'f32[2,16]{1,0:T(2,128)}', space=vmem, size = 0x400, scoped, tag = 'scratch operand']
  #allocation4 [shape = 'f32[2,16]{1,0:T(2,128)}', space=vmem, size = 0x400, scoped, tag = 'scratch operand']
  #allocation5 [shape = 'f32[2,16]{1,0:T(2,128)}', space=vmem, size = 0x400, scoped, tag = 'scratch operand']
  %s0 = inlined_call_operand.hbm [shape: f32[6,2,8], index: 0, kind: input, shape index: {}, may-alias: {0,1}]
  %s1 = inlined_call_operand.hbm [shape: f32[6,2,8], index: 1, kind: input, shape index: {}, may-alias: {0,1}]
  %s2 = inlined_call_operand.vmem [shape: f32[8,64], index: 2, kind: input, shape index: {}]
  %s3 = inlined_call_operand.vmem [shape: f32[16,64], index: 3, kind: input, shape index: {}]
  %s4 = inlined_call_operand.vmem [shape: f32[1,64], index: 4, kind: input, shape index: {}]
  %s5 = inlined_call_operand.hbm [shape: f32[8,64], index: 5, kind: input, shape index: {}]
  %s6 = inlined_call_operand.hbm [shape: f32[16,64], index: 6, kind: input, shape index: {}]
  %s7 = inlined_call_operand.vmem [shape: f32[1,64], index: 7, kind: input, shape index: {}]
  %s8 = inlined_call_operand.vmem [shape: f32[6,2,16], index: 8, kind: output, shape index: {0}]
  %s9 = inlined_call_operand.vmem [shape: f32[6,2,16], index: 9, kind: output, shape index: {1}]
  %s10 = inlined_call_operand.vmem [shape: f32[2,16], index: 10, kind: output, shape index: {2}]
  %s11 = inlined_call_operand.vmem [shape: f32[2,16], index: 11, kind: output, shape index: {3}]
  %s12 = inlined_call_operand.vmem [shape: f32[2,16], index: 12, kind: output, shape index: {4}]
  %s13 = inlined_call_operand.vmem [shape: f32[2,16], index: 13, kind: output, shape index: {5}]
  %14 = xla_tuple %s8, %s9, %s10, %s11, %s12, %s13
  %s15 = sld [smem:[#allocation0]]
  $region129: #{seq2seq_forward.4} parent=0
    _
  %s17 = ssub.s32 1, %s15
  %s18 = scalar_select 0, %s17, %s15
  $region1: #{seq2seq_forward.4} parent=0
    #allocation6 [shape = 'u8[2048]{0}', space=vmem, size = 0x800, scoped, tag = 'input window, operand 0']
    #allocation7 [shape = 's32[2]{0}', space=sflag, size = 0x8, scoped, tag = 'scoped memory for seq2seq_forward.4']
    #allocation8 [shape = 'u8[2048]{0}', space=vmem, size = 0x800, scoped, tag = 'input window, operand 1']
    #allocation9 [shape = 's32[2]{0}', space=sflag, size = 0x8, scoped, tag = 'scoped memory for seq2seq_forward.4']
    #allocation10 [shape = 'u8[4096]{0}', space=vmem, size = 0x1000, scoped, tag = 'input window, operand 5, single buffered']
    #allocation11 [shape = 'u8[8192]{0}', space=vmem, size = 0x2000, scoped, tag = 'input window, operand 6, single buffered']
    #allocation12 [shape = 's32[1]{0}', space=sflag, size = 0x4, scoped, tag = 'scoped memory for seq2seq_forward.4']
    %19 = vsyncpa [#allocation7], 0
    %s20 = scalar_lea.sflag [#allocation7], 1
    %21 = vsyncpa %s20, 0
    %22 = vsyncpa [#allocation9], 0
    %s23 = scalar_lea.sflag [#allocation9], 1
    %24 = vsyncpa %s23, 0
    %25 = vsyncpa [#allocation12], 0
    loop: start=0, step=1, limit=8
    $region2: #{seq2seq_forward.4} parent=1 // loop_pre_header
      _
    $region3: #{seq2seq_forward.4} parent=1 // loop_header
      %s27 = sphi 0, %s31
      %p28 = scmp.ge.s32.totalorder %s27, 8
      %s37 = sphi 0, %s39
      %s40 = sphi 0, %s37
      %s41 = sphi 0, %s40
      %s57 = sphi 0, %s41
      %s65 = sphi 0, %s67
      %s68 = sphi 0, %s65
      %s69 = sphi 0, %s68
      %s85 = sphi 0, %s69
      %s89 = sphi 0, %s89
      %s91 = sphi 0, %s89
      %s92 = sphi 0, %s91
      %s106 = sphi 0, %s92
      %s110 = sphi 0, %s110
      %s112 = sphi 0, %s110
      %s113 = sphi 0, %s112
      %s127 = sphi 0, %s113
      %s131 = sphi 0, %s131
      %s133 = sphi 0, %s131
      %s134 = sphi 0, %s133
      %s148 = sphi 0, %s134
      %s152 = sphi 0, %s152
      %s154 = sphi 0, %s152
      %s155 = sphi 0, %s154
      %s169 = sphi 0, %s155
      %s173 = sphi 0, %s173
      %s175 = sphi 0, %s173
      %s176 = sphi 0, %s175
      %s190 = sphi 0, %s176
      %s194 = sphi 0, %s194
      %s196 = sphi 0, %s194
      %s197 = sphi 0, %s196
      %s211 = sphi 0, %s197
      %s217 = sphi 0, %s219
      %s220 = sphi 0, %s217
      %s221 = sphi 0, %s220
      %s237 = sphi 0, %s221
      %s245 = sphi 0, %s247
      %s248 = sphi 0, %s245
      %s249 = sphi 0, %s248
      %s265 = sphi 0, %s249
      %s269 = sphi 0, %s269
      %s271 = sphi 0, %s269
      %s272 = sphi 0, %s271
      %s286 = sphi 0, %s272
      %s290 = sphi 0, %s290
      %s292 = sphi 0, %s290
      %s293 = sphi 0, %s292
      %s307 = sphi 0, %s293
      %s311 = sphi 0, %s311
      %s313 = sphi 0, %s311
      %s314 = sphi 0, %s313
      %s328 = sphi 0, %s314
      %s332 = sphi 0, %s332
      %s334 = sphi 0, %s332
      %s335 = sphi 0, %s334
      %s349 = sphi 0, %s335
    $region4: #{seq2seq_forward.4} parent=1 // loop_header_branch
      %30 = sbr.rel (%p28) target = $region8
    $region5: #{seq2seq_forward.4} parent=1 // loop_body
      %s32 = ssub.s32 %s27, 1
      %s33 = ssub.s32 %s27, 2
      %s34 = sadd.s32 %s27, 1
      %s35 = ssub.s32 %s27, %s34
      %p36 = scmp.eq.s32.totalorder %s35, 0
      %s38 = sadd.s32 %s37, 1
      %s39 = scalar_select %p36, %s37, %s38
      %p42 = pneg %p36
      %p43 = scmp.eq.s32.totalorder %s27, 5
      %p44 = por %p42, %p43
      %p45 = scmp.ne.s32.totalorder %s37, %s40
      %p46 = scmp.eq.s32.totalorder %s27, 0
      %p47 = por %p45, %p46
      %p48 = scmp.ne.s32.totalorder %s37, %s40
      %p49 = scmp.eq.s32.totalorder %s32, 5
      %p50 = por %p48, %p49
      %p51 = scmp.ne.s32.totalorder %s40, %s41
      %p52 = scmp.eq.s32.totalorder %s32, 0
      %p53 = por %p51, %p52
      %p54 = scmp.ne.s32.totalorder %s40, %s41
      %p55 = scmp.eq.s32.totalorder %s33, 5
      %p56 = por %p54, %p55
      %p58 = scmp.ne.s32.totalorder %s41, %s57
      %p59 = scmp.eq.s32.totalorder %s33, 0
      %p60 = por %p58, %p59
      %s61 = ssub.s32 5, %s27
      %s62 = ssub.s32 5, %s34
      %s63 = ssub.s32 %s61, %s62
      %p64 = scmp.eq.s32.totalorder %s63, 0
      %s66 = sadd.s32 %s65, 1
      %s67 = scalar_select %p64, %s65, %s66
      %p70 = pneg %p64
      %p71 = scmp.eq.s32.totalorder %s27, 5
      %p72 = por %p70, %p71
      %p73 = scmp.ne.s32.totalorder %s65, %s68
      %p74 = scmp.eq.s32.totalorder %s27, 0
      %p75 = por %p73, %p74
      %p76 = scmp.ne.s32.totalorder %s65, %s68
      %p77 = scmp.eq.s32.totalorder %s32, 5
      %p78 = por %p76, %p77
      %p79 = scmp.ne.s32.totalorder %s68, %s69
      %p80 = scmp.eq.s32.totalorder %s32, 0
      %p81 = por %p79, %p80
      %p82 = scmp.ne.s32.totalorder %s68, %s69
      %p83 = scmp.eq.s32.totalorder %s33, 5
      %p84 = por %p82, %p83
      %p86 = scmp.ne.s32.totalorder %s69, %s85
      %p87 = scmp.eq.s32.totalorder %s33, 0
      %p88 = por %p86, %p87
      %s90 = sadd.s32 %s89, 1
      %p93 = scmp.eq.s32.totalorder %s27, 5
      %p94 = scmp.ne.s32.totalorder %s89, %s91
      %p95 = scmp.eq.s32.totalorder %s27, 0
      %p96 = por %p94, %p95
      %p97 = scmp.ne.s32.totalorder %s89, %s91
      %p98 = scmp.eq.s32.totalorder %s32, 5
      %p99 = por %p97, %p98
      %p100 = scmp.ne.s32.totalorder %s91, %s92
      %p101 = scmp.eq.s32.totalorder %s32, 0
      %p102 = por %p100, %p101
      %p103 = scmp.ne.s32.totalorder %s91, %s92
      %p104 = scmp.eq.s32.totalorder %s33, 5
      %p105 = por %p103, %p104
      %p107 = scmp.ne.s32.totalorder %s92, %s106
      %p108 = scmp.eq.s32.totalorder %s33, 0
      %p109 = por %p107, %p108
      %s111 = sadd.s32 %s110, 1
      %p114 = scmp.eq.s32.totalorder %s27, 5
      %p115 = scmp.ne.s32.totalorder %s110, %s112
      %p116 = scmp.eq.s32.totalorder %s27, 0
      %p117 = por %p115, %p116
      %p118 = scmp.ne.s32.totalorder %s110, %s112
      %p119 = scmp.eq.s32.totalorder %s32, 5
      %p120 = por %p118, %p119
      %p121 = scmp.ne.s32.totalorder %s112, %s113
      %p122 = scmp.eq.s32.totalorder %s32, 0
      %p123 = por %p121, %p122
      %p124 = scmp.ne.s32.totalorder %s112, %s113
      %p125 = scmp.eq.s32.totalorder %s33, 5
      %p126 = por %p124, %p125
      %p128 = scmp.ne.s32.totalorder %s113, %s127
      %p129 = scmp.eq.s32.totalorder %s33, 0
      %p130 = por %p128, %p129
      %s132 = sadd.s32 %s131, 1
      %p135 = scmp.eq.s32.totalorder %s27, 5
      %p136 = scmp.ne.s32.totalorder %s131, %s133
      %p137 = scmp.eq.s32.totalorder %s27, 0
      %p138 = por %p136, %p137
      %p139 = scmp.ne.s32.totalorder %s131, %s133
      %p140 = scmp.eq.s32.totalorder %s32, 5
      %p141 = por %p139, %p140
      %p142 = scmp.ne.s32.totalorder %s133, %s134
      %p143 = scmp.eq.s32.totalorder %s32, 0
      %p144 = por %p142, %p143
      %p145 = scmp.ne.s32.totalorder %s133, %s134
      %p146 = scmp.eq.s32.totalorder %s33, 5
      %p147 = por %p145, %p146
      %p149 = scmp.ne.s32.totalorder %s134, %s148
      %p150 = scmp.eq.s32.totalorder %s33, 0
      %p151 = por %p149, %p150
      %s153 = sadd.s32 %s152, 1
      %p156 = scmp.eq.s32.totalorder %s27, 5
      %p157 = scmp.ne.s32.totalorder %s152, %s154
      %p158 = scmp.eq.s32.totalorder %s27, 0
      %p159 = por %p157, %p158
      %p160 = scmp.ne.s32.totalorder %s152, %s154
      %p161 = scmp.eq.s32.totalorder %s32, 5
      %p162 = por %p160, %p161
      %p163 = scmp.ne.s32.totalorder %s154, %s155
      %p164 = scmp.eq.s32.totalorder %s32, 0
      %p165 = por %p163, %p164
      %p166 = scmp.ne.s32.totalorder %s154, %s155
      %p167 = scmp.eq.s32.totalorder %s33, 5
      %p168 = por %p166, %p167
      %p170 = scmp.ne.s32.totalorder %s155, %s169
      %p171 = scmp.eq.s32.totalorder %s33, 0
      %p172 = por %p170, %p171
      %s174 = sadd.s32 %s173, 1
      %p177 = scmp.eq.s32.totalorder %s27, 5
      %p178 = scmp.ne.s32.totalorder %s173, %s175
      %p179 = scmp.eq.s32.totalorder %s27, 0
      %p180 = por %p178, %p179
      %p181 = scmp.ne.s32.totalorder %s173, %s175
      %p182 = scmp.eq.s32.totalorder %s32, 5
      %p183 = por %p181, %p182
      %p184 = scmp.ne.s32.totalorder %s175, %s176
      %p185 = scmp.eq.s32.totalorder %s32, 0
      %p186 = por %p184, %p185
      %p187 = scmp.ne.s32.totalorder %s175, %s176
      %p188 = scmp.eq.s32.totalorder %s33, 5
      %p189 = por %p187, %p188
      %p191 = scmp.ne.s32.totalorder %s176, %s190
      %p192 = scmp.eq.s32.totalorder %s33, 0
      %p193 = por %p191, %p192
      %s195 = sadd.s32 %s194, 1
      %p198 = scmp.eq.s32.totalorder %s27, 5
      %p199 = scmp.ne.s32.totalorder %s194, %s196
      %p200 = scmp.eq.s32.totalorder %s27, 0
      %p201 = por %p199, %p200
      %p202 = scmp.ne.s32.totalorder %s194, %s196
      %p203 = scmp.eq.s32.totalorder %s32, 5
      %p204 = por %p202, %p203
      %p205 = scmp.ne.s32.totalorder %s196, %s197
      %p206 = scmp.eq.s32.totalorder %s32, 0
      %p207 = por %p205, %p206
      %p208 = scmp.ne.s32.totalorder %s196, %s197
      %p209 = scmp.eq.s32.totalorder %s33, 5
      %p210 = por %p208, %p209
      %p212 = scmp.ne.s32.totalorder %s197, %s211
      %p213 = scmp.eq.s32.totalorder %s33, 0
      %p214 = por %p212, %p213
      %s215 = ssub.s32 %s27, %s34
      %p216 = scmp.eq.s32.totalorder %s215, 0
      %s218 = sadd.s32 %s217, 1
      %s219 = scalar_select %p216, %s217, %s218
      %p222 = pneg %p216
      %p223 = scmp.eq.s32.totalorder %s27, 5
      %p224 = por %p222, %p223
      %p225 = scmp.ne.s32.totalorder %s217, %s220
      %p226 = scmp.eq.s32.totalorder %s27, 0
      %p227 = por %p225, %p226
      %p228 = scmp.ne.s32.totalorder %s217, %s220
      %p229 = scmp.eq.s32.totalorder %s32, 5
      %p230 = por %p228, %p229
      %p231 = scmp.ne.s32.totalorder %s220, %s221
      %p232 = scmp.eq.s32.totalorder %s32, 0
      %p233 = por %p231, %p232
      %p234 = scmp.ne.s32.totalorder %s220, %s221
      %p235 = scmp.eq.s32.totalorder %s33, 5
      %p236 = por %p234, %p235
      %p238 = scmp.ne.s32.totalorder %s221, %s237
      %p239 = scmp.eq.s32.totalorder %s33, 0
      %p240 = por %p238, %p239
      %s241 = ssub.s32 5, %s27
      %s242 = ssub.s32 5, %s34
      %s243 = ssub.s32 %s241, %s242
      %p244 = scmp.eq.s32.totalorder %s243, 0
      %s246 = sadd.s32 %s245, 1
      %s247 = scalar_select %p244, %s245, %s246
      %p250 = pneg %p244
      %p251 = scmp.eq.s32.totalorder %s27, 5
      %p252 = por %p250, %p251
      %p253 = scmp.ne.s32.totalorder %s245, %s248
      %p254 = scmp.eq.s32.totalorder %s27, 0
      %p255 = por %p253, %p254
      %p256 = scmp.ne.s32.totalorder %s245, %s248
      %p257 = scmp.eq.s32.totalorder %s32, 5
      %p258 = por %p256, %p257
      %p259 = scmp.ne.s32.totalorder %s248, %s249
      %p260 = scmp.eq.s32.totalorder %s32, 0
      %p261 = por %p259, %p260
      %p262 = scmp.ne.s32.totalorder %s248, %s249
      %p263 = scmp.eq.s32.totalorder %s33, 5
      %p264 = por %p262, %p263
      %p266 = scmp.ne.s32.totalorder %s249, %s265
      %p267 = scmp.eq.s32.totalorder %s33, 0
      %p268 = por %p266, %p267
      %s270 = sadd.s32 %s269, 1
      %p273 = scmp.eq.s32.totalorder %s27, 5
      %p274 = scmp.ne.s32.totalorder %s269, %s271
      %p275 = scmp.eq.s32.totalorder %s27, 0
      %p276 = por %p274, %p275
      %p277 = scmp.ne.s32.totalorder %s269, %s271
      %p278 = scmp.eq.s32.totalorder %s32, 5
      %p279 = por %p277, %p278
      %p280 = scmp.ne.s32.totalorder %s271, %s272
      %p281 = scmp.eq.s32.totalorder %s32, 0
      %p282 = por %p280, %p281
      %p283 = scmp.ne.s32.totalorder %s271, %s272
      %p284 = scmp.eq.s32.totalorder %s33, 5
      %p285 = por %p283, %p284
      %p287 = scmp.ne.s32.totalorder %s272, %s286
      %p288 = scmp.eq.s32.totalorder %s33, 0
      %p289 = por %p287, %p288
      %s291 = sadd.s32 %s290, 1
      %p294 = scmp.eq.s32.totalorder %s27, 5
      %p295 = scmp.ne.s32.totalorder %s290, %s292
      %p296 = scmp.eq.s32.totalorder %s27, 0
      %p297 = por %p295, %p296
      %p298 = scmp.ne.s32.totalorder %s290, %s292
      %p299 = scmp.eq.s32.totalorder %s32, 5
      %p300 = por %p298, %p299
      %p301 = scmp.ne.s32.totalorder %s292, %s293
      %p302 = scmp.eq.s32.totalorder %s32, 0
      %p303 = por %p301, %p302
      %p304 = scmp.ne.s32.totalorder %s292, %s293
      %p305 = scmp.eq.s32.totalorder %s33, 5
      %p306 = por %p304, %p305
      %p308 = scmp.ne.s32.totalorder %s293, %s307
      %p309 = scmp.eq.s32.totalorder %s33, 0
      %p310 = por %p308, %p309
      %s312 = sadd.s32 %s311, 1
      %p315 = scmp.eq.s32.totalorder %s27, 5
      %p316 = scmp.ne.s32.totalorder %s311, %s313
      %p317 = scmp.eq.s32.totalorder %s27, 0
      %p318 = por %p316, %p317
      %p319 = scmp.ne.s32.totalorder %s311, %s313
      %p320 = scmp.eq.s32.totalorder %s32, 5
      %p321 = por %p319, %p320
      %p322 = scmp.ne.s32.totalorder %s313, %s314
      %p323 = scmp.eq.s32.totalorder %s32, 0
      %p324 = por %p322, %p323
      %p325 = scmp.ne.s32.totalorder %s313, %s314
      %p326 = scmp.eq.s32.totalorder %s33, 5
      %p327 = por %p325, %p326
      %p329 = scmp.ne.s32.totalorder %s314, %s328
      %p330 = scmp.eq.s32.totalorder %s33, 0
      %p331 = por %p329, %p330
      %s333 = sadd.s32 %s332, 1
      %p336 = scmp.eq.s32.totalorder %s27, 5
      %p337 = scmp.ne.s32.totalorder %s332, %s334
      %p338 = scmp.eq.s32.totalorder %s27, 0
      %p339 = por %p337, %p338
      %p340 = scmp.ne.s32.totalorder %s332, %s334
      %p341 = scmp.eq.s32.totalorder %s32, 5
      %p342 = por %p340, %p341
      %p343 = scmp.ne.s32.totalorder %s334, %s335
      %p344 = scmp.eq.s32.totalorder %s32, 0
      %p345 = por %p343, %p344
      %p346 = scmp.ne.s32.totalorder %s334, %s335
      %p347 = scmp.eq.s32.totalorder %s33, 5
      %p348 = por %p346, %p347
      %p350 = scmp.ne.s32.totalorder %s335, %s349
      %p351 = scmp.eq.s32.totalorder %s33, 0
      %p352 = por %p350, %p351
      %p353 = scmp.le.s32.totalorder 1, %s27
      %p354 = scmp.lt.s32.totalorder %s27, 7
      %p355 = pnand %p353, %p354
      %p356 = pneg %p355
      // Predicated region
      $region9: #{seq2seq_forward.4} parent=5 // pred_check
        _
      $region10: #{seq2seq_forward.4} parent=5 // pred_check_branch
        %358 = sbr.rel (%p355) target = $region12
      $region11: #{seq2seq_forward.4} parent=5 // pred_region
        %s359 = ssub.s32 %s27, 1
        // Predicated region
        $region13: #{seq2seq_forward.4} parent=11 // pred_check
          %p360 = pneg %p102
        $region14: #{seq2seq_forward.4} parent=11 // pred_check_branch
          %362 = sbr.rel (%p360) target = $region16
        $region15: #{seq2seq_forward.4} parent=11 // pred_region
          _
        $region16: #{seq2seq_forward.4} parent=11 // pred_fallthru
          _
        // Predicated region
        $region17: #{seq2seq_forward.4} parent=11 // pred_check
          %p363 = pneg %p123
        $region18: #{seq2seq_forward.4} parent=11 // pred_check_branch
          %365 = sbr.rel (%p363) target = $region20
        $region19: #{seq2seq_forward.4} parent=11 // pred_region
          _
        $region20: #{seq2seq_forward.4} parent=11 // pred_fallthru
          _
        // Predicated region
        $region21: #{seq2seq_forward.4} parent=11 // pred_check
          %p366 = pneg %p144
        $region22: #{seq2seq_forward.4} parent=11 // pred_check_branch
          %368 = sbr.rel (%p366) target = $region24
        $region23: #{seq2seq_forward.4} parent=11 // pred_region
          _
        $region24: #{seq2seq_forward.4} parent=11 // pred_fallthru
          _
        // Predicated region
        $region25: #{seq2seq_forward.4} parent=11 // pred_check
          %p369 = pneg %p165
        $region26: #{seq2seq_forward.4} parent=11 // pred_check_branch
          %371 = sbr.rel (%p369) target = $region28
        $region27: #{seq2seq_forward.4} parent=11 // pred_region
          %373 = vsyncadd [#allocation9], 0
          %s375 = sshll.u32 %s5, 4
          %s376 = int_to_ptr.hbm [resolvable:$true] %s375
          %s377 = sshll.u32 [#allocation10], 4
          %s378 = int_to_ptr.vmem [resolvable:$true] %s377
          %380 = dma.hbm_to_vmem [thread:$0]  %s376, 128, %s378, [#allocation9]
        $region28: #{seq2seq_forward.4} parent=11 // pred_fallthru
          _
        // Predicated region
        $region29: #{seq2seq_forward.4} parent=11 // pred_check
          %p381 = pneg %p186
        $region30: #{seq2seq_forward.4} parent=11 // pred_check_branch
          %383 = sbr.rel (%p381) target = $region32
        $region31: #{seq2seq_forward.4} parent=11 // pred_region
          %385 = vsyncadd [#allocation12], 0
          %s386 = sshll.u32 %s6, 4
          %s387 = int_to_ptr.hbm [resolvable:$true] %s386
          %s388 = sshll.u32 [#allocation11], 4
          %s389 = int_to_ptr.vmem [resolvable:$true] %s388
          %394 = dma.hbm_to_vmem [thread:$0]  %s387, 256, %s389, [#allocation12], 128, 128, 8
        $region32: #{seq2seq_forward.4} parent=11 // pred_fallthru
          _
        // Predicated region
        $region33: #{seq2seq_forward.4} parent=11 // pred_check
          %p395 = pneg %p207
        $region34: #{seq2seq_forward.4} parent=11 // pred_check_branch
          %397 = sbr.rel (%p395) target = $region36
        $region35: #{seq2seq_forward.4} parent=11 // pred_region
          _
        $region36: #{seq2seq_forward.4} parent=11 // pred_fallthru
          _
      $region12: #{seq2seq_forward.4} parent=5 // pred_fallthru
        _
      %p398 = scmp.lt.s32.totalorder %s27, 6
      // Predicated region
      $region37: #{seq2seq_forward.4} parent=5 // pred_check
        %p399 = pneg %p398
      $region38: #{seq2seq_forward.4} parent=5 // pred_check_branch
        %401 = sbr.rel (%p399) target = $region40
      $region39: #{seq2seq_forward.4} parent=5 // pred_region
        // Predicated region
        $region41: #{seq2seq_forward.4} parent=39 // pred_check
          %p402 = pneg %p47
        $region42: #{seq2seq_forward.4} parent=39 // pred_check_branch
          %404 = sbr.rel (%p402) target = $region44
        $region43: #{seq2seq_forward.4} parent=39 // pred_region
          %s405 = sand.u32 %s37, 1
          %s406 = scalar_lea.sflag [#allocation7], %s405
          %s407 = sand.u32 %s37, 1
          %s408 = smul.addr %s407, 2
          %s409 = scalar_lea.vmem [#allocation6], %s408
          %411 = vsyncadd %s406, 0
          %s412 = smul.addr %s27, 2
          %s413 = scalar_lea.hbm %s0, %s412
          %s415 = sshll.u32 %s413, 4
          %s416 = int_to_ptr.hbm [resolvable:$true] %s415
          %s417 = sshll.u32 %s409, 4
          %s418 = int_to_ptr.vmem [resolvable:$true] %s417
          %420 = dma.hbm_to_vmem [thread:$0]  %s416, 32, %s418, %s406
        $region44: #{seq2seq_forward.4} parent=39 // pred_fallthru
          _
        // Predicated region
        $region45: #{seq2seq_forward.4} parent=39 // pred_check
          %p421 = pneg %p75
        $region46: #{seq2seq_forward.4} parent=39 // pred_check_branch
          %423 = sbr.rel (%p421) target = $region48
        $region47: #{seq2seq_forward.4} parent=39 // pred_region
          %s424 = sand.u32 %s27, 1
          %s425 = scalar_lea.sflag [#allocation9], %s424
          %s426 = sand.u32 %s65, 1
          %s427 = smul.addr %s426, 2
          %s428 = scalar_lea.vmem [#allocation8], %s427
          %s429 = ssub.s32 5, %s27
          %431 = vsyncadd %s425, 0
          %s432 = smul.addr %s429, 2
          %s433 = scalar_lea.hbm %s1, %s432
          %s435 = sshll.u32 %s433, 4
          %s436 = int_to_ptr.hbm [resolvable:$true] %s435
          %s437 = sshll.u32 %s428, 4
          %s438 = int_to_ptr.vmem [resolvable:$true] %s437
          %440 = dma.hbm_to_vmem [thread:$0]  %s436, 32, %s438, %s425
        $region48: #{seq2seq_forward.4} parent=39 // pred_fallthru
          _
      $region40: #{seq2seq_forward.4} parent=5 // pred_fallthru
        _
      %p441 = scmp.le.s32.totalorder 1, %s27
      %p442 = scmp.lt.s32.totalorder %s27, 7
      %p443 = pnand %p441, %p442
      %p444 = pneg %p443
      // Predicated region
      $region49: #{seq2seq_forward.4} parent=5 // pred_check
        _
      $region50: #{seq2seq_forward.4} parent=5 // pred_check_branch
        %446 = sbr.rel (%p443) target = $region52
      $region51: #{seq2seq_forward.4} parent=5 // pred_region
        %s447 = ssub.s32 %s27, 1
        %s448 = sand.u32 %s40, 1
        %s449 = scalar_lea.sflag [#allocation7], %s448
        %s450 = sand.u32 %s40, 1
        %s451 = smul.addr %s450, 2
        %s452 = scalar_lea.vmem [#allocation6], %s451
        // Predicated region
        $region53: #{seq2seq_forward.4} parent=51 // pred_check
          %p453 = pneg %p53
        $region54: #{seq2seq_forward.4} parent=51 // pred_check_branch
          %455 = sbr.rel (%p453) target = $region56
        $region55: #{seq2seq_forward.4} parent=51 // pred_region
          %457 = dma.done %s449, 32
        $region56: #{seq2seq_forward.4} parent=51 // pred_fallthru
          _
        %s458 = sand.u32 %s32, 1
        %s459 = scalar_lea.sflag [#allocation9], %s458
        %s460 = sand.u32 %s68, 1
        %s461 = smul.addr %s460, 2
        %s462 = scalar_lea.vmem [#allocation8], %s461
        // Predicated region
        $region57: #{seq2seq_forward.4} parent=51 // pred_check
          %p463 = pneg %p81
        $region58: #{seq2seq_forward.4} parent=51 // pred_check_branch
          %465 = sbr.rel (%p463) target = $region60
        $region59: #{seq2seq_forward.4} parent=51 // pred_region
          %467 = dma.done %s459, 32
        $region60: #{seq2seq_forward.4} parent=51 // pred_fallthru
          _
        // Predicated region
        $region61: #{seq2seq_forward.4} parent=51 // pred_check
          %p468 = pneg %p165
        $region62: #{seq2seq_forward.4} parent=51 // pred_check_branch
          %470 = sbr.rel (%p468) target = $region64
        $region63: #{seq2seq_forward.4} parent=51 // pred_region
          %472 = dma.done [#allocation9], 128
        $region64: #{seq2seq_forward.4} parent=51 // pred_fallthru
          _
        // Predicated region
        $region65: #{seq2seq_forward.4} parent=51 // pred_check
          %p473 = pneg %p186
        $region66: #{seq2seq_forward.4} parent=51 // pred_check_branch
          %475 = sbr.rel (%p473) target = $region68
        $region67: #{seq2seq_forward.4} parent=51 // pred_region
          %477 = dma.done [#allocation12], 256
        $region68: #{seq2seq_forward.4} parent=51 // pred_fallthru
          _
        %s478 = sand.u32 %s40, 1
        %s479 = scalar_lea.sflag [#allocation7], %s478
        %s480 = sand.u32 %s40, 1
        %s481 = smul.addr %s480, 2
        %s482 = scalar_lea.vmem [#allocation6], %s481
        %p483 = pneg %p53
        %p484 = pneg %p50
        %s485 = sand.u32 %s32, 1
        %s486 = scalar_lea.sflag [#allocation9], %s485
        %s487 = sand.u32 %s68, 1
        %s488 = smul.addr %s487, 2
        %s489 = scalar_lea.vmem [#allocation8], %s488
        %p490 = pneg %p81
        %p491 = pneg %p78
        %p492 = pneg %p102
        %p493 = pneg %p99
        %p494 = pneg %p123
        %p495 = pneg %p120
        %p496 = pneg %p144
        %p497 = pneg %p141
        %p498 = pneg %p165
        %p499 = pneg %p162
        %p500 = pneg %p186
        %p501 = pneg %p183
        %p502 = pneg %p207
        %p503 = pneg %p204
        %p504 = pneg %p233
        %p505 = pneg %p230
        %p506 = scmp.lt.s32.totalorder %s32, 5
        %s507 = scalar_select %p506, %s32, 5
        %s508 = smul.addr %s507, 2
        %s509 = scalar_lea.vmem %s8, %s508
        %p510 = pneg %p261
        %p511 = pneg %p258
        %s512 = ssub.s32 5, %s32
        %p513 = scmp.lt.s32.totalorder %s512, 5
        %s514 = scalar_select %p513, %s512, 5
        %s515 = smul.addr %s514, 2
        %s516 = scalar_lea.vmem %s9, %s515
        %p517 = pneg %p282
        %p518 = pneg %p279
        %p519 = pneg %p303
        %p520 = pneg %p300
        %p521 = pneg %p324
        %p522 = pneg %p321
        %p523 = pneg %p345
        %p524 = pneg %p342
        %s525 = ssub.s32 5, %s32
        %p526 = scmp.lt.s32.totalorder %s32, 5
        %s527 = scalar_select %p526, %s32, 5
        %s528 = smul.addr %s527, 2
        %s529 = scalar_lea.vmem %s8, %s528
        %s530 = ssub.s32 5, %s32
        %p531 = scmp.lt.s32.totalorder %s530, 5
        %s532 = scalar_select %p531, %s530, 5
        %s533 = smul.addr %s532, 2
        %s534 = scalar_lea.vmem %s9, %s533
        %s535 = ssub.s32 5, %s32
        %p536 = scmp.eq.s32.totalorder %s32, 0
        // Predicated region
        $region69: #{seq2seq_forward.4} parent=51 // pred_check
          %p537 = pneg %p536
        $region70: #{seq2seq_forward.4} parent=51 // pred_check_branch
          %539 = sbr.rel (%p537) target = $region72
        $region71: #{seq2seq_forward.4} parent=51 // pred_region
          %vm540 = vcmask 123904
          %541 = vst.msk [vmem:[#allocation2] sm:$0x3] %vm540, 0.0
          %542 = vst.msk [vmem:[#allocation3] sm:$0x3] %vm540, 0.0
          %543 = vst.msk [vmem:[#allocation4] sm:$0x3] %vm540, 0.0
          %544 = vst.msk [vmem:[#allocation5] sm:$0x3] %vm540, 0.0
        $region72: #{seq2seq_forward.4} parent=51 // pred_fallthru
          _
        %v545 = vld [vmem:[#allocation2] sm:$0x3]
        %v546 = vld [vmem:[#allocation3] sm:$0x3]
        %v547 = vld [vmem:[%s3] sm:$0xff]
        %v548 = vld [vmem:[%s3 + $0x8] sm:$0xff]
        %v549 = vld [vmem:[%s4] sm:$0x1]
        %v551 = vperm.slane %v549, 0
        %vm553 = vcmask 130048
        %v555 = vsel %vm553, %v545, 0
        %557 = vmatpush.msra.mxu0 0.0
        %558 = vmatpush.msra.mxu0 0.0
        %559 = vmatpush.msra.mxu0 0.0
        %560 = vmatpush.msra.mxu0 0.0
        %561 = vmatpush.msra.mxu0 0.0
        %562 = vmatpush.msra.mxu0 0.0
        %563 = vmatpush.msra.mxu0 0.0
        %564 = vmatpush.msra.mxu0 0.0
        %565 = vmatpush.msra.mxu0 0.0
        %566 = vmatpush.msra.mxu0 0.0
        %567 = vmatpush.msra.mxu0 0.0
        %568 = vmatpush.msra.mxu0 0.0
        %569 = vmatpush.msra.mxu0 0.0
        %570 = vmatpush.msra.mxu0 0.0
        %571 = vmatpush.msra.mxu0 %v548
        %572 = vmatpush.msra.mxu0 %v547
        %573 = vmatmul.f32.gmra.mxu0 %v555
        %v574 = vpop.f32.mrf.mxu0
        %v575 = vadd.f32 %v551, %v574
        %576 = vdwg.mxu0
        %v577 = vld [vmem:[%s452] sm:$0x3]
        %v578 = vld [vmem:[%s2] sm:$0xff]
        %vm579 = vcmask 64512
        %v581 = vsel %vm579, %v577, 0
        %583 = vmatpush.msra.mxu0 0.0
        %584 = vmatpush.msra.mxu0 0.0
        %585 = vmatpush.msra.mxu0 0.0
        %586 = vmatpush.msra.mxu0 0.0
        %587 = vmatpush.msra.mxu0 0.0
        %588 = vmatpush.msra.mxu0 0.0
        %589 = vmatpush.msra.mxu0 0.0
        %590 = vmatpush.msra.mxu0 0.0
        %591 = vmatpush.msra.mxu0 0.0
        %592 = vmatpush.msra.mxu0 0.0
        %593 = vmatpush.msra.mxu0 0.0
        %594 = vmatpush.msra.mxu0 0.0
        %595 = vmatpush.msra.mxu0 0.0
        %596 = vmatpush.msra.mxu0 0.0
        %597 = vmatpush.msra.mxu0 0.0
        %598 = vmatpush.msra.mxu0 %v578
        %599 = vmatmul.f32.gmra.mxu0 %v581
        %v600 = vpop.f32.mrf.mxu0
        %v601 = vadd.f32 0.0, %v600
        %602 = vdwg.mxu0
        %v603 = vadd.f32 %v575, %v601
        %v604 = vxor.u32 %v603, 2147483648
        %v605 = vmul.f32 %v604, 1.442695
        %v606 = vpow.pop %v605
        %v607 = vadd.f32 %v606, 1.0
        %v608 = vrcp.pop %v607
        %v609 = vmul.f32 %v607, %v608
        %v610 = vsub.f32 1.0, %v609
        %v611 = vmul.f32 %v608, %v610
        %v612 = vadd.f32 %v608, %v611
        %vm613 = vweird.f32 %v607
        %vm614 = vweird.f32 %v608
        %vm615 = vmor %vm613, %vm614
        %v616 = vsel %vm615, %v608, %v612
        %v617 = vand.u32 2147483647, %v607
        %vm618 = vcmp.eq.f32.partialorder %v617, 8.507059e+37
        %v619 = vand.u32 %v607, 2147483648
        %v620 = vor.u32 1.1754944e-38, %v619
        %v621 = vsel %vm618, %v620, %v616
        %v622 = vmul.f32 1.0, %v621
        %v623 = vtanh.pop %v603
        %625 = vrot.lane.b32.xlu0 %v546, 16
        %v626 = vpop.permute.xlu0 %625
        %v628 = vmul.f32 %v622, %v626
        %630 = vrot.lane.b32.xlu0 %v623, 96
        %v631 = vpop.permute.xlu0 %630
        %v633 = vmul.f32 %v622, %v631
        %635 = vrot.lane.b32.xlu0 %v633, 16
        %v636 = vpop.permute.xlu0 %635
        %v638 = vadd.f32 %v628, %v636
        %v639 = vtanh.pop %v638
        %641 = vrot.lane.b32.xlu0 %v639, 32
        %v642 = vpop.permute.xlu0 %641
        %v644 = vmul.f32 %v622, %v642
        %v645 = vld [vmem:[#allocation4] sm:$0x3]
        %v646 = vld [vmem:[#allocation5] sm:$0x3]
        %v647 = vld [vmem:[#allocation11] sm:$0xff]
        %v648 = vld [vmem:[#allocation11 + $0x8] sm:$0xff]
        %v649 = vld [vmem:[%s7] sm:$0x1]
        %v651 = vperm.slane %v649, 0
        %v654 = vsel %vm553, %v645, 0
        %656 = vmatpush.msra.mxu0 0.0
        %657 = vmatpush.msra.mxu0 0.0
        %658 = vmatpush.msra.mxu0 0.0
        %659 = vmatpush.msra.mxu0 0.0
        %660 = vmatpush.msra.mxu0 0.0
        %661 = vmatpush.msra.mxu0 0.0
        %662 = vmatpush.msra.mxu0 0.0
        %663 = vmatpush.msra.mxu0 0.0
        %664 = vmatpush.msra.mxu0 0.0
        %665 = vmatpush.msra.mxu0 0.0
        %666 = vmatpush.msra.mxu0 0.0
        %667 = vmatpush.msra.mxu0 0.0
        %668 = vmatpush.msra.mxu0 0.0
        %669 = vmatpush.msra.mxu0 0.0
        %670 = vmatpush.msra.mxu0 %v648
        %671 = vmatpush.msra.mxu0 %v647
        %672 = vmatmul.f32.gmra.mxu0 %v654
        %v673 = vpop.f32.mrf.mxu0
        %v674 = vadd.f32 %v651, %v673
        %675 = vdwg.mxu0
        %v676 = vld [vmem:[%s462] sm:$0x3]
        %v677 = vld [vmem:[#allocation10] sm:$0xff]
        %v679 = vsel %vm579, %v676, 0
        %681 = vmatpush.msra.mxu0 0.0
        %682 = vmatpush.msra.mxu0 0.0
        %683 = vmatpush.msra.mxu0 0.0
        %684 = vmatpush.msra.mxu0 0.0
        %685 = vmatpush.msra.mxu0 0.0
        %686 = vmatpush.msra.mxu0 0.0
        %687 = vmatpush.msra.mxu0 0.0
        %688 = vmatpush.msra.mxu0 0.0
        %689 = vmatpush.msra.mxu0 0.0
        %690 = vmatpush.msra.mxu0 0.0
        %691 = vmatpush.msra.mxu0 0.0
        %692 = vmatpush.msra.mxu0 0.0
        %693 = vmatpush.msra.mxu0 0.0
        %694 = vmatpush.msra.mxu0 0.0
        %695 = vmatpush.msra.mxu0 0.0
        %696 = vmatpush.msra.mxu0 %v677
        %697 = vmatmul.f32.gmra.mxu0 %v679
        %v698 = vpop.f32.mrf.mxu0
        %v699 = vadd.f32 0.0, %v698
        %700 = vdwg.mxu0
        %v701 = vadd.f32 %v674, %v699
        %v702 = vxor.u32 %v701, 2147483648
        %v703 = vmul.f32 %v702, 1.442695
        %v704 = vpow.pop %v703
        %v705 = vadd.f32 %v704, 1.0
        %v706 = vrcp.pop %v705
        %v707 = vmul.f32 %v705, %v706
        %v708 = vsub.f32 1.0, %v707
        %v709 = vmul.f32 %v706, %v708
        %v710 = vadd.f32 %v706, %v709
        %vm711 = vweird.f32 %v705
        %vm712 = vweird.f32 %v706
        %vm713 = vmor %vm711, %vm712
        %v714 = vsel %vm713, %v706, %v710
        %v715 = vand.u32 2147483647, %v705
        %vm716 = vcmp.eq.f32.partialorder %v715, 8.507059e+37
        %v717 = vand.u32 %v705, 2147483648
        %v718 = vor.u32 1.1754944e-38, %v717
        %v719 = vsel %vm716, %v718, %v714
        %v720 = vmul.f32 1.0, %v719
        %v721 = vtanh.pop %v701
        %723 = vrot.lane.b32.xlu0 %v646, 16
        %v724 = vpop.permute.xlu0 %723
        %v726 = vmul.f32 %v720, %v724
        %728 = vrot.lane.b32.xlu0 %v721, 96
        %v729 = vpop.permute.xlu0 %728
        %v731 = vmul.f32 %v720, %v729
        %733 = vrot.lane.b32.xlu0 %v731, 16
        %v734 = vpop.permute.xlu0 %733
        %v736 = vadd.f32 %v726, %v734
        %v737 = vtanh.pop %v736
        %739 = vrot.lane.b32.xlu0 %v737, 32
        %v740 = vpop.permute.xlu0 %739
        %v742 = vmul.f32 %v720, %v740
        %744 = vrot.lane.b32.xlu0 %v644, 80
        %v745 = vpop.permute.xlu0 %744
        %vm747 = vcmask 123904
        %748 = vst.msk [vmem:[#allocation2] sm:$0x3] %vm747, %v745
        %750 = vrot.lane.b32.xlu0 %v638, 112
        %v751 = vpop.permute.xlu0 %750
        %753 = vst.msk [vmem:[#allocation3] sm:$0x3] %vm747, %v751
        %755 = vrot.lane.b32.xlu0 %v742, 80
        %v756 = vpop.permute.xlu0 %755
        %758 = vst.msk [vmem:[#allocation4] sm:$0x3] %vm747, %v756
        %760 = vrot.lane.b32.xlu0 %v736, 112
        %v761 = vpop.permute.xlu0 %760
        %763 = vst.msk [vmem:[#allocation5] sm:$0x3] %vm747, %v761
        %764 = vst.msk [vmem:[%s529] sm:$0x3] %vm747, %v745
        %765 = vst.msk [vmem:[%s534] sm:$0x3] %vm747, %v756
        %p766 = scmp.eq.s32.totalorder %s32, 5
        // Predicated region
        $region73: #{seq2seq_forward.4} parent=51 // pred_check
          %p767 = pneg %p766
        $region74: #{seq2seq_forward.4} parent=51 // pred_check_branch
          %769 = sbr.rel (%p767) target = $region76
        $region75: #{seq2seq_forward.4} parent=51 // pred_region
          %770 = vst.msk [vmem:[%s10] sm:$0x3] %vm747, %v745
          %771 = vst.msk [vmem:[%s11] sm:$0x3] %vm747, %v751
          %772 = vst.msk [vmem:[%s12] sm:$0x3] %vm747, %v756
          %773 = vst.msk [vmem:[%s13] sm:$0x3] %vm747, %v761
        $region76: #{seq2seq_forward.4} parent=51 // pred_fallthru
          _
        %p774 = scmp.lt.s32.totalorder %s32, 5
        %s775 = scalar_select %p774, %s32, 5
        %s776 = smul.addr %s775, 2
        %s777 = scalar_lea.vmem %s8, %s776
        %s778 = ssub.s32 5, %s32
        %p779 = scmp.lt.s32.totalorder %s778, 5
        %s780 = scalar_select %p779, %s778, 5
        %s781 = smul.addr %s780, 2
        %s782 = scalar_lea.vmem %s9, %s781
        // Predicated region
        $region77: #{seq2seq_forward.4} parent=51 // pred_check
          %p783 = pneg %p230
        $region78: #{seq2seq_forward.4} parent=51 // pred_check_branch
          %785 = sbr.rel (%p783) target = $region80
        $region79: #{seq2seq_forward.4} parent=51 // pred_region
          _
        $region80: #{seq2seq_forward.4} parent=51 // pred_fallthru
          _
        // Predicated region
        $region81: #{seq2seq_forward.4} parent=51 // pred_check
          %p786 = pneg %p258
        $region82: #{seq2seq_forward.4} parent=51 // pred_check_branch
          %788 = sbr.rel (%p786) target = $region84
        $region83: #{seq2seq_forward.4} parent=51 // pred_region
          %s789 = ssub.s32 5, %s32
        $region84: #{seq2seq_forward.4} parent=51 // pred_fallthru
          _
        // Predicated region
        $region85: #{seq2seq_forward.4} parent=51 // pred_check
          %p790 = pneg %p279
        $region86: #{seq2seq_forward.4} parent=51 // pred_check_branch
          %792 = sbr.rel (%p790) target = $region88
        $region87: #{seq2seq_forward.4} parent=51 // pred_region
          _
        $region88: #{seq2seq_forward.4} parent=51 // pred_fallthru
          _
        // Predicated region
        $region89: #{seq2seq_forward.4} parent=51 // pred_check
          %p793 = pneg %p300
        $region90: #{seq2seq_forward.4} parent=51 // pred_check_branch
          %795 = sbr.rel (%p793) target = $region92
        $region91: #{seq2seq_forward.4} parent=51 // pred_region
          _
        $region92: #{seq2seq_forward.4} parent=51 // pred_fallthru
          _
        // Predicated region
        $region93: #{seq2seq_forward.4} parent=51 // pred_check
          %p796 = pneg %p321
        $region94: #{seq2seq_forward.4} parent=51 // pred_check_branch
          %798 = sbr.rel (%p796) target = $region96
        $region95: #{seq2seq_forward.4} parent=51 // pred_region
          _
        $region96: #{seq2seq_forward.4} parent=51 // pred_fallthru
          _
        // Predicated region
        $region97: #{seq2seq_forward.4} parent=51 // pred_check
          %p799 = pneg %p342
        $region98: #{seq2seq_forward.4} parent=51 // pred_check_branch
          %801 = sbr.rel (%p799) target = $region100
        $region99: #{seq2seq_forward.4} parent=51 // pred_region
          _
        $region100: #{seq2seq_forward.4} parent=51 // pred_fallthru
          _
        // Predicated region
        $region101: #{seq2seq_forward.4} parent=51 // pred_check
          %p802 = pneg %p279
        $region102: #{seq2seq_forward.4} parent=51 // pred_check_branch
          %804 = sbr.rel (%p802) target = $region104
        $region103: #{seq2seq_forward.4} parent=51 // pred_region
          _
        $region104: #{seq2seq_forward.4} parent=51 // pred_fallthru
          _
        // Predicated region
        $region105: #{seq2seq_forward.4} parent=51 // pred_check
          %p805 = pneg %p300
        $region106: #{seq2seq_forward.4} parent=51 // pred_check_branch
          %807 = sbr.rel (%p805) target = $region108
        $region107: #{seq2seq_forward.4} parent=51 // pred_region
          _
        $region108: #{seq2seq_forward.4} parent=51 // pred_fallthru
          _
        // Predicated region
        $region109: #{seq2seq_forward.4} parent=51 // pred_check
          %p808 = pneg %p321
        $region110: #{seq2seq_forward.4} parent=51 // pred_check_branch
          %810 = sbr.rel (%p808) target = $region112
        $region111: #{seq2seq_forward.4} parent=51 // pred_region
          _
        $region112: #{seq2seq_forward.4} parent=51 // pred_fallthru
          _
        // Predicated region
        $region113: #{seq2seq_forward.4} parent=51 // pred_check
          %p811 = pneg %p342
        $region114: #{seq2seq_forward.4} parent=51 // pred_check_branch
          %813 = sbr.rel (%p811) target = $region116
        $region115: #{seq2seq_forward.4} parent=51 // pred_region
          _
        $region116: #{seq2seq_forward.4} parent=51 // pred_fallthru
          _
      $region52: #{seq2seq_forward.4} parent=5 // pred_fallthru
        _
      %p814 = scmp.le.s32.totalorder 2, %s27
      // Predicated region
      $region117: #{seq2seq_forward.4} parent=5 // pred_check
        %p815 = pneg %p814
      $region118: #{seq2seq_forward.4} parent=5 // pred_check_branch
        %817 = sbr.rel (%p815) target = $region120
      $region119: #{seq2seq_forward.4} parent=5 // pred_region
        %s818 = ssub.s32 %s27, 2
        // Predicated region
        $region121: #{seq2seq_forward.4} parent=119 // pred_check
          %p819 = pneg %p236
        $region122: #{seq2seq_forward.4} parent=119 // pred_check_branch
          %821 = sbr.rel (%p819) target = $region124
        $region123: #{seq2seq_forward.4} parent=119 // pred_region
          %p822 = scmp.lt.s32.totalorder %s33, 5
          %s823 = scalar_select %p822, %s33, 5
          %s824 = smul.addr %s823, 2
          %s825 = scalar_lea.vmem %s8, %s824
        $region124: #{seq2seq_forward.4} parent=119 // pred_fallthru
          _
        // Predicated region
        $region125: #{seq2seq_forward.4} parent=119 // pred_check
          %p826 = pneg %p264
        $region126: #{seq2seq_forward.4} parent=119 // pred_check_branch
          %828 = sbr.rel (%p826) target = $region128
        $region127: #{seq2seq_forward.4} parent=119 // pred_region
          %s829 = ssub.s32 5, %s33
          %p830 = scmp.lt.s32.totalorder %s829, 5
          %s831 = scalar_select %p830, %s829, 5
          %s832 = smul.addr %s831, 2
          %s833 = scalar_lea.vmem %s9, %s832
        $region128: #{seq2seq_forward.4} parent=119 // pred_fallthru
          _
      $region120: #{seq2seq_forward.4} parent=5 // pred_fallthru
        _
    $region6: #{seq2seq_forward.4} parent=1 // loop_footer
      %s31 = sadd.s32 1, %s27
    $region7: #{seq2seq_forward.4} parent=1 // loop_footer_branch
      %26 = sbr.rel target = $region3
    $region8: #{seq2seq_forward.4} parent=1 // loop_exit
      _
    %834 = vsyncpa [#allocation7], 1
    %s835 = scalar_lea.sflag [#allocation7], 1
    %836 = vsyncpa %s835, 1
    %837 = vsyncpa [#allocation9], 1
    %s838 = scalar_lea.sflag [#allocation9], 1
    %839 = vsyncpa %s838, 1
    %840 = vsyncpa [#allocation12], 1

// kernel: seq2seq_forward.5
$region0: #{seq2seq_forward.5}
  #allocation0 [shape = 'u32[]', space=smem, size = 0x4, offset = 0x4, fixed_abs, tag = 'smem constant byte address 0x4 - core index']
  #allocation1 [shape = 'u32[72,128]{1,0:T(1,128)}', space=vmem, size = 0x9000, scoped, tag = 'internal scratch']
  %s0 = inlined_call_operand.vmem [shape: f32[6,2,16], index: 0, kind: input, shape index: {}]
  %s1 = inlined_call_operand.vmem [shape: f32[6,2,16], index: 1, kind: input, shape index: {}]
  %s2 = inlined_call_operand.hbm [shape: f32[6,2,8], index: 2, kind: input, shape index: {}]
  %s3 = inlined_call_operand.vmem [shape: f32[8,16], index: 3, kind: input, shape index: {}]
  %s4 = inlined_call_operand.vmem [shape: f32[8,16], index: 4, kind: input, shape index: {}]
  %s5 = inlined_call_operand.vmem [shape: f32[1,16], index: 5, kind: input, shape index: {}]
  %s6 = inlined_call_operand.vmem [shape: f32[1,16], index: 6, kind: input, shape index: {}]
  %s7 = inlined_call_operand.vmem [shape: f32[1,16], index: 7, kind: input, shape index: {}]
  %s8 = inlined_call_operand.vmem [shape: f32[1,16], index: 8, kind: input, shape index: {}]
  %s9 = inlined_call_operand.vmem [shape: f32[1,16], index: 9, kind: input, shape index: {}]
  %s10 = inlined_call_operand.vmem [shape: f32[1,16], index: 10, kind: input, shape index: {}]
  %s11 = inlined_call_operand.vmem [shape: f32[6,2,16], index: 11, kind: output, shape index: {0}]
  %s12 = inlined_call_operand.vmem [shape: f32[6,2,16], index: 12, kind: output, shape index: {1}]
  %13 = xla_tuple %s11, %s12
  %s14 = sld [smem:[#allocation0]]
  $region89: #{seq2seq_forward.5} parent=0
    _
  %s16 = ssub.s32 1, %s14
  %s17 = scalar_select 0, %s16, %s14
  $region1: #{seq2seq_forward.5} parent=0
    #allocation2 [shape = 'u8[2048]{0}', space=vmem, size = 0x800, scoped, tag = 'input window, operand 2']
    #allocation3 [shape = 's32[2]{0}', space=sflag, size = 0x8, scoped, tag = 'scoped memory for seq2seq_forward.5']
    %18 = vsyncpa [#allocation3], 0
    %s19 = scalar_lea.sflag [#allocation3], 1
    %20 = vsyncpa %s19, 0
    loop: start=0, step=1, limit=8
    $region2: #{seq2seq_forward.5} parent=1 // loop_pre_header
      _
    $region3: #{seq2seq_forward.5} parent=1 // loop_header
      %s22 = sphi 0, %s26
      %p23 = scmp.ge.s32.totalorder %s22, 8
      %s32 = sphi 0, %s34
      %s35 = sphi 0, %s32
      %s36 = sphi 0, %s35
      %s52 = sphi 0, %s36
      %s58 = sphi 0, %s60
      %s61 = sphi 0, %s58
      %s62 = sphi 0, %s61
      %s78 = sphi 0, %s62
      %s84 = sphi 0, %s86
      %s87 = sphi 0, %s84
      %s88 = sphi 0, %s87
      %s104 = sphi 0, %s88
      %s108 = sphi 0, %s108
      %s110 = sphi 0, %s108
      %s111 = sphi 0, %s110
      %s125 = sphi 0, %s111
      %s129 = sphi 0, %s129
      %s131 = sphi 0, %s129
      %s132 = sphi 0, %s131
      %s146 = sphi 0, %s132
      %s150 = sphi 0, %s150
      %s152 = sphi 0, %s150
      %s153 = sphi 0, %s152
      %s167 = sphi 0, %s153
      %s171 = sphi 0, %s171
      %s173 = sphi 0, %s171
      %s174 = sphi 0, %s173
      %s188 = sphi 0, %s174
      %s192 = sphi 0, %s192
      %s194 = sphi 0, %s192
      %s195 = sphi 0, %s194
      %s209 = sphi 0, %s195
      %s213 = sphi 0, %s213
      %s215 = sphi 0, %s213
      %s216 = sphi 0, %s215
      %s230 = sphi 0, %s216
      %s234 = sphi 0, %s234
      %s236 = sphi 0, %s234
      %s237 = sphi 0, %s236
      %s251 = sphi 0, %s237
      %s255 = sphi 0, %s255
      %s257 = sphi 0, %s255
      %s258 = sphi 0, %s257
      %s272 = sphi 0, %s258
      %s278 = sphi 0, %s280
      %s281 = sphi 0, %s278
      %s282 = sphi 0, %s281
      %s298 = sphi 0, %s282
      %s304 = sphi 0, %s306
      %s307 = sphi 0, %s304
      %s308 = sphi 0, %s307
      %s324 = sphi 0, %s308
    $region4: #{seq2seq_forward.5} parent=1 // loop_header_branch
      %25 = sbr.rel (%p23) target = $region8
    $region5: #{seq2seq_forward.5} parent=1 // loop_body
      %s27 = ssub.s32 %s22, 1
      %s28 = ssub.s32 %s22, 2
      %s29 = sadd.s32 %s22, 1
      %s30 = ssub.s32 %s22, %s29
      %p31 = scmp.eq.s32.totalorder %s30, 0
      %s33 = sadd.s32 %s32, 1
      %s34 = scalar_select %p31, %s32, %s33
      %p37 = pneg %p31
      %p38 = scmp.eq.s32.totalorder %s22, 5
      %p39 = por %p37, %p38
      %p40 = scmp.ne.s32.totalorder %s32, %s35
      %p41 = scmp.eq.s32.totalorder %s22, 0
      %p42 = por %p40, %p41
      %p43 = scmp.ne.s32.totalorder %s32, %s35
      %p44 = scmp.eq.s32.totalorder %s27, 5
      %p45 = por %p43, %p44
      %p46 = scmp.ne.s32.totalorder %s35, %s36
      %p47 = scmp.eq.s32.totalorder %s27, 0
      %p48 = por %p46, %p47
      %p49 = scmp.ne.s32.totalorder %s35, %s36
      %p50 = scmp.eq.s32.totalorder %s28, 5
      %p51 = por %p49, %p50
      %p53 = scmp.ne.s32.totalorder %s36, %s52
      %p54 = scmp.eq.s32.totalorder %s28, 0
      %p55 = por %p53, %p54
      %s56 = ssub.s32 %s22, %s29
      %p57 = scmp.eq.s32.totalorder %s56, 0
      %s59 = sadd.s32 %s58, 1
      %s60 = scalar_select %p57, %s58, %s59
      %p63 = pneg %p57
      %p64 = scmp.eq.s32.totalorder %s22, 5
      %p65 = por %p63, %p64
      %p66 = scmp.ne.s32.totalorder %s58, %s61
      %p67 = scmp.eq.s32.totalorder %s22, 0
      %p68 = por %p66, %p67
      %p69 = scmp.ne.s32.totalorder %s58, %s61
      %p70 = scmp.eq.s32.totalorder %s27, 5
      %p71 = por %p69, %p70
      %p72 = scmp.ne.s32.totalorder %s61, %s62
      %p73 = scmp.eq.s32.totalorder %s27, 0
      %p74 = por %p72, %p73
      %p75 = scmp.ne.s32.totalorder %s61, %s62
      %p76 = scmp.eq.s32.totalorder %s28, 5
      %p77 = por %p75, %p76
      %p79 = scmp.ne.s32.totalorder %s62, %s78
      %p80 = scmp.eq.s32.totalorder %s28, 0
      %p81 = por %p79, %p80
      %s82 = ssub.s32 %s22, %s29
      %p83 = scmp.eq.s32.totalorder %s82, 0
      %s85 = sadd.s32 %s84, 1
      %s86 = scalar_select %p83, %s84, %s85
      %p89 = pneg %p83
      %p90 = scmp.eq.s32.totalorder %s22, 5
      %p91 = por %p89, %p90
      %p92 = scmp.ne.s32.totalorder %s84, %s87
      %p93 = scmp.eq.s32.totalorder %s22, 0
      %p94 = por %p92, %p93
      %p95 = scmp.ne.s32.totalorder %s84, %s87
      %p96 = scmp.eq.s32.totalorder %s27, 5
      %p97 = por %p95, %p96
      %p98 = scmp.ne.s32.totalorder %s87, %s88
      %p99 = scmp.eq.s32.totalorder %s27, 0
      %p100 = por %p98, %p99
      %p101 = scmp.ne.s32.totalorder %s87, %s88
      %p102 = scmp.eq.s32.totalorder %s28, 5
      %p103 = por %p101, %p102
      %p105 = scmp.ne.s32.totalorder %s88, %s104
      %p106 = scmp.eq.s32.totalorder %s28, 0
      %p107 = por %p105, %p106
      %s109 = sadd.s32 %s108, 1
      %p112 = scmp.eq.s32.totalorder %s22, 5
      %p113 = scmp.ne.s32.totalorder %s108, %s110
      %p114 = scmp.eq.s32.totalorder %s22, 0
      %p115 = por %p113, %p114
      %p116 = scmp.ne.s32.totalorder %s108, %s110
      %p117 = scmp.eq.s32.totalorder %s27, 5
      %p118 = por %p116, %p117
      %p119 = scmp.ne.s32.totalorder %s110, %s111
      %p120 = scmp.eq.s32.totalorder %s27, 0
      %p121 = por %p119, %p120
      %p122 = scmp.ne.s32.totalorder %s110, %s111
      %p123 = scmp.eq.s32.totalorder %s28, 5
      %p124 = por %p122, %p123
      %p126 = scmp.ne.s32.totalorder %s111, %s125
      %p127 = scmp.eq.s32.totalorder %s28, 0
      %p128 = por %p126, %p127
      %s130 = sadd.s32 %s129, 1
      %p133 = scmp.eq.s32.totalorder %s22, 5
      %p134 = scmp.ne.s32.totalorder %s129, %s131
      %p135 = scmp.eq.s32.totalorder %s22, 0
      %p136 = por %p134, %p135
      %p137 = scmp.ne.s32.totalorder %s129, %s131
      %p138 = scmp.eq.s32.totalorder %s27, 5
      %p139 = por %p137, %p138
      %p140 = scmp.ne.s32.totalorder %s131, %s132
      %p141 = scmp.eq.s32.totalorder %s27, 0
      %p142 = por %p140, %p141
      %p143 = scmp.ne.s32.totalorder %s131, %s132
      %p144 = scmp.eq.s32.totalorder %s28, 5
      %p145 = por %p143, %p144
      %p147 = scmp.ne.s32.totalorder %s132, %s146
      %p148 = scmp.eq.s32.totalorder %s28, 0
      %p149 = por %p147, %p148
      %s151 = sadd.s32 %s150, 1
      %p154 = scmp.eq.s32.totalorder %s22, 5
      %p155 = scmp.ne.s32.totalorder %s150, %s152
      %p156 = scmp.eq.s32.totalorder %s22, 0
      %p157 = por %p155, %p156
      %p158 = scmp.ne.s32.totalorder %s150, %s152
      %p159 = scmp.eq.s32.totalorder %s27, 5
      %p160 = por %p158, %p159
      %p161 = scmp.ne.s32.totalorder %s152, %s153
      %p162 = scmp.eq.s32.totalorder %s27, 0
      %p163 = por %p161, %p162
      %p164 = scmp.ne.s32.totalorder %s152, %s153
      %p165 = scmp.eq.s32.totalorder %s28, 5
      %p166 = por %p164, %p165
      %p168 = scmp.ne.s32.totalorder %s153, %s167
      %p169 = scmp.eq.s32.totalorder %s28, 0
      %p170 = por %p168, %p169
      %s172 = sadd.s32 %s171, 1
      %p175 = scmp.eq.s32.totalorder %s22, 5
      %p176 = scmp.ne.s32.totalorder %s171, %s173
      %p177 = scmp.eq.s32.totalorder %s22, 0
      %p178 = por %p176, %p177
      %p179 = scmp.ne.s32.totalorder %s171, %s173
      %p180 = scmp.eq.s32.totalorder %s27, 5
      %p181 = por %p179, %p180
      %p182 = scmp.ne.s32.totalorder %s173, %s174
      %p183 = scmp.eq.s32.totalorder %s27, 0
      %p184 = por %p182, %p183
      %p185 = scmp.ne.s32.totalorder %s173, %s174
      %p186 = scmp.eq.s32.totalorder %s28, 5
      %p187 = por %p185, %p186
      %p189 = scmp.ne.s32.totalorder %s174, %s188
      %p190 = scmp.eq.s32.totalorder %s28, 0
      %p191 = por %p189, %p190
      %s193 = sadd.s32 %s192, 1
      %p196 = scmp.eq.s32.totalorder %s22, 5
      %p197 = scmp.ne.s32.totalorder %s192, %s194
      %p198 = scmp.eq.s32.totalorder %s22, 0
      %p199 = por %p197, %p198
      %p200 = scmp.ne.s32.totalorder %s192, %s194
      %p201 = scmp.eq.s32.totalorder %s27, 5
      %p202 = por %p200, %p201
      %p203 = scmp.ne.s32.totalorder %s194, %s195
      %p204 = scmp.eq.s32.totalorder %s27, 0
      %p205 = por %p203, %p204
      %p206 = scmp.ne.s32.totalorder %s194, %s195
      %p207 = scmp.eq.s32.totalorder %s28, 5
      %p208 = por %p206, %p207
      %p210 = scmp.ne.s32.totalorder %s195, %s209
      %p211 = scmp.eq.s32.totalorder %s28, 0
      %p212 = por %p210, %p211
      %s214 = sadd.s32 %s213, 1
      %p217 = scmp.eq.s32.totalorder %s22, 5
      %p218 = scmp.ne.s32.totalorder %s213, %s215
      %p219 = scmp.eq.s32.totalorder %s22, 0
      %p220 = por %p218, %p219
      %p221 = scmp.ne.s32.totalorder %s213, %s215
      %p222 = scmp.eq.s32.totalorder %s27, 5
      %p223 = por %p221, %p222
      %p224 = scmp.ne.s32.totalorder %s215, %s216
      %p225 = scmp.eq.s32.totalorder %s27, 0
      %p226 = por %p224, %p225
      %p227 = scmp.ne.s32.totalorder %s215, %s216
      %p228 = scmp.eq.s32.totalorder %s28, 5
      %p229 = por %p227, %p228
      %p231 = scmp.ne.s32.totalorder %s216, %s230
      %p232 = scmp.eq.s32.totalorder %s28, 0
      %p233 = por %p231, %p232
      %s235 = sadd.s32 %s234, 1
      %p238 = scmp.eq.s32.totalorder %s22, 5
      %p239 = scmp.ne.s32.totalorder %s234, %s236
      %p240 = scmp.eq.s32.totalorder %s22, 0
      %p241 = por %p239, %p240
      %p242 = scmp.ne.s32.totalorder %s234, %s236
      %p243 = scmp.eq.s32.totalorder %s27, 5
      %p244 = por %p242, %p243
      %p245 = scmp.ne.s32.totalorder %s236, %s237
      %p246 = scmp.eq.s32.totalorder %s27, 0
      %p247 = por %p245, %p246
      %p248 = scmp.ne.s32.totalorder %s236, %s237
      %p249 = scmp.eq.s32.totalorder %s28, 5
      %p250 = por %p248, %p249
      %p252 = scmp.ne.s32.totalorder %s237, %s251
      %p253 = scmp.eq.s32.totalorder %s28, 0
      %p254 = por %p252, %p253
      %s256 = sadd.s32 %s255, 1
      %p259 = scmp.eq.s32.totalorder %s22, 5
      %p260 = scmp.ne.s32.totalorder %s255, %s257
      %p261 = scmp.eq.s32.totalorder %s22, 0
      %p262 = por %p260, %p261
      %p263 = scmp.ne.s32.totalorder %s255, %s257
      %p264 = scmp.eq.s32.totalorder %s27, 5
      %p265 = por %p263, %p264
      %p266 = scmp.ne.s32.totalorder %s257, %s258
      %p267 = scmp.eq.s32.totalorder %s27, 0
      %p268 = por %p266, %p267
      %p269 = scmp.ne.s32.totalorder %s257, %s258
      %p270 = scmp.eq.s32.totalorder %s28, 5
      %p271 = por %p269, %p270
      %p273 = scmp.ne.s32.totalorder %s258, %s272
      %p274 = scmp.eq.s32.totalorder %s28, 0
      %p275 = por %p273, %p274
      %s276 = ssub.s32 %s22, %s29
      %p277 = scmp.eq.s32.totalorder %s276, 0
      %s279 = sadd.s32 %s278, 1
      %s280 = scalar_select %p277, %s278, %s279
      %p283 = pneg %p277
      %p284 = scmp.eq.s32.totalorder %s22, 5
      %p285 = por %p283, %p284
      %p286 = scmp.ne.s32.totalorder %s278, %s281
      %p287 = scmp.eq.s32.totalorder %s22, 0
      %p288 = por %p286, %p287
      %p289 = scmp.ne.s32.totalorder %s278, %s281
      %p290 = scmp.eq.s32.totalorder %s27, 5
      %p291 = por %p289, %p290
      %p292 = scmp.ne.s32.totalorder %s281, %s282
      %p293 = scmp.eq.s32.totalorder %s27, 0
      %p294 = por %p292, %p293
      %p295 = scmp.ne.s32.totalorder %s281, %s282
      %p296 = scmp.eq.s32.totalorder %s28, 5
      %p297 = por %p295, %p296
      %p299 = scmp.ne.s32.totalorder %s282, %s298
      %p300 = scmp.eq.s32.totalorder %s28, 0
      %p301 = por %p299, %p300
      %s302 = ssub.s32 %s22, %s29
      %p303 = scmp.eq.s32.totalorder %s302, 0
      %s305 = sadd.s32 %s304, 1
      %s306 = scalar_select %p303, %s304, %s305
      %p309 = pneg %p303
      %p310 = scmp.eq.s32.totalorder %s22, 5
      %p311 = por %p309, %p310
      %p312 = scmp.ne.s32.totalorder %s304, %s307
      %p313 = scmp.eq.s32.totalorder %s22, 0
      %p314 = por %p312, %p313
      %p315 = scmp.ne.s32.totalorder %s304, %s307
      %p316 = scmp.eq.s32.totalorder %s27, 5
      %p317 = por %p315, %p316
      %p318 = scmp.ne.s32.totalorder %s307, %s308
      %p319 = scmp.eq.s32.totalorder %s27, 0
      %p320 = por %p318, %p319
      %p321 = scmp.ne.s32.totalorder %s307, %s308
      %p322 = scmp.eq.s32.totalorder %s28, 5
      %p323 = por %p321, %p322
      %p325 = scmp.ne.s32.totalorder %s308, %s324
      %p326 = scmp.eq.s32.totalorder %s28, 0
      %p327 = por %p325, %p326
      %p328 = scmp.le.s32.totalorder 1, %s22
      %p329 = scmp.lt.s32.totalorder %s22, 7
      %p330 = pnand %p328, %p329
      %p331 = pneg %p330
      // Predicated region
      $region9: #{seq2seq_forward.5} parent=5 // pred_check
        _
      $region10: #{seq2seq_forward.5} parent=5 // pred_check_branch
        %333 = sbr.rel (%p330) target = $region12
      $region11: #{seq2seq_forward.5} parent=5 // pred_region
        %s334 = ssub.s32 %s22, 1
        // Predicated region
        $region13: #{seq2seq_forward.5} parent=11 // pred_check
          %p335 = pneg %p121
        $region14: #{seq2seq_forward.5} parent=11 // pred_check_branch
          %337 = sbr.rel (%p335) target = $region16
        $region15: #{seq2seq_forward.5} parent=11 // pred_region
          _
        $region16: #{seq2seq_forward.5} parent=11 // pred_fallthru
          _
        // Predicated region
        $region17: #{seq2seq_forward.5} parent=11 // pred_check
          %p338 = pneg %p142
        $region18: #{seq2seq_forward.5} parent=11 // pred_check_branch
          %340 = sbr.rel (%p338) target = $region20
        $region19: #{seq2seq_forward.5} parent=11 // pred_region
          _
        $region20: #{seq2seq_forward.5} parent=11 // pred_fallthru
          _
        // Predicated region
        $region21: #{seq2seq_forward.5} parent=11 // pred_check
          %p341 = pneg %p163
        $region22: #{seq2seq_forward.5} parent=11 // pred_check_branch
          %343 = sbr.rel (%p341) target = $region24
        $region23: #{seq2seq_forward.5} parent=11 // pred_region
          _
        $region24: #{seq2seq_forward.5} parent=11 // pred_fallthru
          _
        // Predicated region
        $region25: #{seq2seq_forward.5} parent=11 // pred_check
          %p344 = pneg %p184
        $region26: #{seq2seq_forward.5} parent=11 // pred_check_branch
          %346 = sbr.rel (%p344) target = $region28
        $region27: #{seq2seq_forward.5} parent=11 // pred_region
          _
        $region28: #{seq2seq_forward.5} parent=11 // pred_fallthru
          _
        // Predicated region
        $region29: #{seq2seq_forward.5} parent=11 // pred_check
          %p347 = pneg %p205
        $region30: #{seq2seq_forward.5} parent=11 // pred_check_branch
          %349 = sbr.rel (%p347) target = $region32
        $region31: #{seq2seq_forward.5} parent=11 // pred_region
          _
        $region32: #{seq2seq_forward.5} parent=11 // pred_fallthru
          _
        // Predicated region
        $region33: #{seq2seq_forward.5} parent=11 // pred_check
          %p350 = pneg %p226
        $region34: #{seq2seq_forward.5} parent=11 // pred_check_branch
          %352 = sbr.rel (%p350) target = $region36
        $region35: #{seq2seq_forward.5} parent=11 // pred_region
          _
        $region36: #{seq2seq_forward.5} parent=11 // pred_fallthru
          _
        // Predicated region
        $region37: #{seq2seq_forward.5} parent=11 // pred_check
          %p353 = pneg %p247
        $region38: #{seq2seq_forward.5} parent=11 // pred_check_branch
          %355 = sbr.rel (%p353) target = $region40
        $region39: #{seq2seq_forward.5} parent=11 // pred_region
          _
        $region40: #{seq2seq_forward.5} parent=11 // pred_fallthru
          _
        // Predicated region
        $region41: #{seq2seq_forward.5} parent=11 // pred_check
          %p356 = pneg %p268
        $region42: #{seq2seq_forward.5} parent=11 // pred_check_branch
          %358 = sbr.rel (%p356) target = $region44
        $region43: #{seq2seq_forward.5} parent=11 // pred_region
          _
        $region44: #{seq2seq_forward.5} parent=11 // pred_fallthru
          _
      $region12: #{seq2seq_forward.5} parent=5 // pred_fallthru
        _
      %p359 = scmp.lt.s32.totalorder %s22, 6
      // Predicated region
      $region45: #{seq2seq_forward.5} parent=5 // pred_check
        %p360 = pneg %p359
      $region46: #{seq2seq_forward.5} parent=5 // pred_check_branch
        %362 = sbr.rel (%p360) target = $region48
      $region47: #{seq2seq_forward.5} parent=5 // pred_region
        // Predicated region
        $region49: #{seq2seq_forward.5} parent=47 // pred_check
          %p363 = pneg %p42
        $region50: #{seq2seq_forward.5} parent=47 // pred_check_branch
          %365 = sbr.rel (%p363) target = $region52
        $region51: #{seq2seq_forward.5} parent=47 // pred_region
          %p366 = scmp.lt.s32.totalorder %s22, 5
          %s367 = scalar_select %p366, %s22, 5
          %s368 = smul.addr %s367, 2
          %s369 = scalar_lea.vmem %s0, %s368
        $region52: #{seq2seq_forward.5} parent=47 // pred_fallthru
          _
        // Predicated region
        $region53: #{seq2seq_forward.5} parent=47 // pred_check
          %p370 = pneg %p68
        $region54: #{seq2seq_forward.5} parent=47 // pred_check_branch
          %372 = sbr.rel (%p370) target = $region56
        $region55: #{seq2seq_forward.5} parent=47 // pred_region
          %p373 = scmp.lt.s32.totalorder %s22, 5
          %s374 = scalar_select %p373, %s22, 5
          %s375 = smul.addr %s374, 2
          %s376 = scalar_lea.vmem %s1, %s375
        $region56: #{seq2seq_forward.5} parent=47 // pred_fallthru
          _
        // Predicated region
        $region57: #{seq2seq_forward.5} parent=47 // pred_check
          %p377 = pneg %p94
        $region58: #{seq2seq_forward.5} parent=47 // pred_check_branch
          %379 = sbr.rel (%p377) target = $region60
        $region59: #{seq2seq_forward.5} parent=47 // pred_region
          %s380 = sand.u32 %s84, 1
          %s381 = scalar_lea.sflag [#allocation3], %s380
          %s382 = sand.u32 %s84, 1
          %s383 = smul.addr %s382, 2
          %s384 = scalar_lea.vmem [#allocation2], %s383
          %386 = vsyncadd %s381, 0
          %s387 = smul.addr %s22, 2
          %s388 = scalar_lea.hbm %s2, %s387
          %s390 = sshll.u32 %s388, 4
          %s391 = int_to_ptr.hbm [resolvable:$true] %s390
          %s392 = sshll.u32 %s384, 4
          %s393 = int_to_ptr.vmem [resolvable:$true] %s392
          %395 = dma.hbm_to_vmem [thread:$0]  %s391, 32, %s393, %s381
        $region60: #{seq2seq_forward.5} parent=47 // pred_fallthru
          _
      $region48: #{seq2seq_forward.5} parent=5 // pred_fallthru
        _
      %p396 = scmp.le.s32.totalorder 1, %s22
      %p397 = scmp.lt.s32.totalorder %s22, 7
      %p398 = pnand %p396, %p397
      %p399 = pneg %p398
      // Predicated region
      $region61: #{seq2seq_forward.5} parent=5 // pred_check
        _
      $region62: #{seq2seq_forward.5} parent=5 // pred_check_branch
        %401 = sbr.rel (%p398) target = $region64
      $region63: #{seq2seq_forward.5} parent=5 // pred_region
        %s402 = ssub.s32 %s22, 1
        %s403 = sand.u32 %s87, 1
        %s404 = scalar_lea.sflag [#allocation3], %s403
        %s405 = sand.u32 %s87, 1
        %s406 = smul.addr %s405, 2
        %s407 = scalar_lea.vmem [#allocation2], %s406
        // Predicated region
        $region65: #{seq2seq_forward.5} parent=63 // pred_check
          %p408 = pneg %p100
        $region66: #{seq2seq_forward.5} parent=63 // pred_check_branch
          %410 = sbr.rel (%p408) target = $region68
        $region67: #{seq2seq_forward.5} parent=63 // pred_region
          %412 = dma.done %s404, 32
        $region68: #{seq2seq_forward.5} parent=63 // pred_fallthru
          _
        %p413 = scmp.lt.s32.totalorder %s27, 5
        %s414 = scalar_select %p413, %s27, 5
        %s415 = smul.addr %s414, 2
        %s416 = scalar_lea.vmem %s0, %s415
        %p417 = pneg %p48
        %p418 = pneg %p45
        %p419 = scmp.lt.s32.totalorder %s27, 5
        %s420 = scalar_select %p419, %s27, 5
        %s421 = smul.addr %s420, 2
        %s422 = scalar_lea.vmem %s1, %s421
        %p423 = pneg %p74
        %p424 = pneg %p71
        %s425 = sand.u32 %s87, 1
        %s426 = scalar_lea.sflag [#allocation3], %s425
        %s427 = sand.u32 %s87, 1
        %s428 = smul.addr %s427, 2
        %s429 = scalar_lea.vmem [#allocation2], %s428
        %p430 = pneg %p100
        %p431 = pneg %p97
        %p432 = pneg %p121
        %p433 = pneg %p118
        %p434 = pneg %p142
        %p435 = pneg %p139
        %p436 = pneg %p163
        %p437 = pneg %p160
        %p438 = pneg %p184
        %p439 = pneg %p181
        %p440 = pneg %p205
        %p441 = pneg %p202
        %p442 = pneg %p226
        %p443 = pneg %p223
        %p444 = pneg %p247
        %p445 = pneg %p244
        %p446 = pneg %p268
        %p447 = pneg %p265
        %p448 = pneg %p294
        %p449 = pneg %p291
        %p450 = scmp.lt.s32.totalorder %s27, 5
        %s451 = scalar_select %p450, %s27, 5
        %s452 = smul.addr %s451, 2
        %s453 = scalar_lea.vmem %s11, %s452
        %p454 = pneg %p320
        %p455 = pneg %p317
        %p456 = scmp.lt.s32.totalorder %s27, 5
        %s457 = scalar_select %p456, %s27, 5
        %s458 = smul.addr %s457, 2
        %s459 = scalar_lea.vmem %s12, %s458
        %p460 = scmp.lt.s32.totalorder %s27, 5
        %s461 = scalar_select %p460, %s27, 5
        %s462 = smul.addr %s461, 2
        %s463 = scalar_lea.vmem %s0, %s462
        %p464 = scmp.lt.s32.totalorder %s27, 5
        %s465 = scalar_select %p464, %s27, 5
        %s466 = smul.addr %s465, 2
        %s467 = scalar_lea.vmem %s1, %s466
        %p468 = scmp.lt.s32.totalorder %s27, 5
        %s469 = scalar_select %p468, %s27, 5
        %s470 = smul.addr %s469, 2
        %s471 = scalar_lea.vmem %s11, %s470
        %p472 = scmp.lt.s32.totalorder %s27, 5
        %s473 = scalar_select %p472, %s27, 5
        %s474 = smul.addr %s473, 2
        %s475 = scalar_lea.vmem %s12, %s474
        %v476 = vld [vmem:[%s463] sm:$0x3]
        %v477 = vld [vmem:[%s467] sm:$0x3]
        %vm478 = vcmask 123904
        %v479 = vsel %vm478, %v476, 0.0
        %480 = vadd.xlane.f32.xlu0 %v479
        %v481 = vpop.xlane.xlu0 %480
        %v482 = vsel %vm478, %v477, 0.0
        %483 = vadd.xlane.f32.xlu0 %v482
        %v484 = vpop.xlane.xlu0 %483
        %v485 = vadd.f32 %v481, %v484
        %v486 = vmul.f32 %v485, 0.03125
        %v487 = vsub.f32 %v476, %v486
        %v488 = vmul.f32 %v487, %v487
        %v489 = vsel %vm478, %v488, 0.0
        %490 = vadd.xlane.f32.xlu0 %v489
        %v491 = vpop.xlane.xlu0 %490
        %v492 = vsub.f32 %v477, %v486
        %v493 = vmul.f32 %v492, %v492
        %v494 = vsel %vm478, %v493, 0.0
        %495 = vadd.xlane.f32.xlu0 %v494
        %v496 = vpop.xlane.xlu0 %495
        %v497 = vadd.f32 %v491, %v496
        %v498 = vmul.f32 %v497, 0.03125
        %v499 = vadd.f32 %v498, 1e-05
        %v500 = vrsqrt.pop %v499
        %v501 = vmul.f32 %v500, %v499
        %v502 = vmul.f32 %v501, %v500
        %v503 = vmul.f32 0.5, %v502
        %v504 = vsub.f32 1.5, %v503
        %v505 = vmul.f32 %v500, %v504
        %vm506 = vweird.f32 %v499
        %vm507 = vweird.f32 %v500
        %vm508 = vmor %vm506, %vm507
        %v509 = vsel %vm508, %v500, %v505
        %v510 = vmul.f32 %v487, %v509
        %v511 = vld [vmem:[%s7] sm:$0x1]
        %v513 = vperm.slane %v511, 0
        %v515 = vmul.f32 %v510, %v513
        %v516 = vld [vmem:[%s9] sm:$0x1]
        %v518 = vperm.slane %v516, 0
        %v520 = vadd.f32 %v515, %v518
        %v521 = vmul.f32 %v492, %v509
        %v522 = vld [vmem:[%s8] sm:$0x1]
        %v524 = vperm.slane %v522, 0
        %v526 = vmul.f32 %v521, %v524
        %v527 = vld [vmem:[%s10] sm:$0x1]
        %v529 = vperm.slane %v527, 0
        %v531 = vadd.f32 %v526, %v529
        %v532 = vld [vmem:[%s407] sm:$0x3]
        %v533 = vld [vmem:[%s3] sm:$0xff]
        %v534 = vld [vmem:[%s5] sm:$0x1]
        %v536 = vperm.slane %v534, 0
        %vm538 = vcmask 64512
        %v540 = vsel %vm538, %v532, 0
        %542 = vmatpush.msra.mxu0 0.0
        %543 = vmatpush.msra.mxu0 0.0
        %544 = vmatpush.msra.mxu0 0.0
        %545 = vmatpush.msra.mxu0 0.0
        %546 = vmatpush.msra.mxu0 0.0
        %547 = vmatpush.msra.mxu0 0.0
        %548 = vmatpush.msra.mxu0 0.0
        %549 = vmatpush.msra.mxu0 0.0
        %550 = vmatpush.msra.mxu0 0.0
        %551 = vmatpush.msra.mxu0 0.0
        %552 = vmatpush.msra.mxu0 0.0
        %553 = vmatpush.msra.mxu0 0.0
        %554 = vmatpush.msra.mxu0 0.0
        %555 = vmatpush.msra.mxu0 0.0
        %556 = vmatpush.msra.mxu0 0.0
        %557 = vmatpush.msra.mxu0 %v533
        %558 = vmatmul.f32.gmra.mxu0 %v540
        %v559 = vpop.f32.mrf.mxu0
        %v560 = vadd.f32 %v536, %v559
        %561 = vdwg.mxu0
        %v562 = vld [vmem:[%s4] sm:$0xff]
        %v563 = vld [vmem:[%s6] sm:$0x1]
        %v565 = vperm.slane %v563, 0
        %567 = vmatpush.msra.mxu0 0.0
        %568 = vmatpush.msra.mxu0 0.0
        %569 = vmatpush.msra.mxu0 0.0
        %570 = vmatpush.msra.mxu0 0.0
        %571 = vmatpush.msra.mxu0 0.0
        %572 = vmatpush.msra.mxu0 0.0
        %573 = vmatpush.msra.mxu0 0.0
        %574 = vmatpush.msra.mxu0 0.0
        %575 = vmatpush.msra.mxu0 0.0
        %576 = vmatpush.msra.mxu0 0.0
        %577 = vmatpush.msra.mxu0 0.0
        %578 = vmatpush.msra.mxu0 0.0
        %579 = vmatpush.msra.mxu0 0.0
        %580 = vmatpush.msra.mxu0 0.0
        %581 = vmatpush.msra.mxu0 0.0
        %582 = vmatpush.msra.mxu0 %v562
        %583 = vmatmul.f32.gmra.mxu0 %v540
        %v584 = vpop.f32.mrf.mxu0
        %v585 = vadd.f32 %v565, %v584
        %586 = vdwg.mxu0
        %v587 = vadd.f32 %v520, %v560
        %588 = vst.msk [vmem:[%s471] sm:$0x3] %vm478, %v587
        %v589 = vadd.f32 %v531, %v585
        %590 = vst.msk [vmem:[%s475] sm:$0x3] %vm478, %v589
        %p591 = scmp.lt.s32.totalorder %s27, 5
        %s592 = scalar_select %p591, %s27, 5
        %s593 = smul.addr %s592, 2
        %s594 = scalar_lea.vmem %s11, %s593
        %p595 = scmp.lt.s32.totalorder %s27, 5
        %s596 = scalar_select %p595, %s27, 5
        %s597 = smul.addr %s596, 2
        %s598 = scalar_lea.vmem %s12, %s597
        // Predicated region
        $region69: #{seq2seq_forward.5} parent=63 // pred_check
          %p599 = pneg %p291
        $region70: #{seq2seq_forward.5} parent=63 // pred_check_branch
          %601 = sbr.rel (%p599) target = $region72
        $region71: #{seq2seq_forward.5} parent=63 // pred_region
          _
        $region72: #{seq2seq_forward.5} parent=63 // pred_fallthru
          _
        // Predicated region
        $region73: #{seq2seq_forward.5} parent=63 // pred_check
          %p602 = pneg %p317
        $region74: #{seq2seq_forward.5} parent=63 // pred_check_branch
          %604 = sbr.rel (%p602) target = $region76
        $region75: #{seq2seq_forward.5} parent=63 // pred_region
          _
        $region76: #{seq2seq_forward.5} parent=63 // pred_fallthru
          _
      $region64: #{seq2seq_forward.5} parent=5 // pred_fallthru
        _
      %p605 = scmp.le.s32.totalorder 2, %s22
      // Predicated region
      $region77: #{seq2seq_forward.5} parent=5 // pred_check
        %p606 = pneg %p605
      $region78: #{seq2seq_forward.5} parent=5 // pred_check_branch
        %608 = sbr.rel (%p606) target = $region80
      $region79: #{seq2seq_forward.5} parent=5 // pred_region
        %s609 = ssub.s32 %s22, 2
        // Predicated region
        $region81: #{seq2seq_forward.5} parent=79 // pred_check
          %p610 = pneg %p297
        $region82: #{seq2seq_forward.5} parent=79 // pred_check_branch
          %612 = sbr.rel (%p610) target = $region84
        $region83: #{seq2seq_forward.5} parent=79 // pred_region
          %p613 = scmp.lt.s32.totalorder %s28, 5
          %s614 = scalar_select %p613, %s28, 5
          %s615 = smul.addr %s614, 2
          %s616 = scalar_lea.vmem %s11, %s615
        $region84: #{seq2seq_forward.5} parent=79 // pred_fallthru
          _
        // Predicated region
        $region85: #{seq2seq_forward.5} parent=79 // pred_check
          %p617 = pneg %p323
        $region86: #{seq2seq_forward.5} parent=79 // pred_check_branch
          %619 = sbr.rel (%p617) target = $region88
        $region87: #{seq2seq_forward.5} parent=79 // pred_region
          %p620 = scmp.lt.s32.totalorder %s28, 5
          %s621 = scalar_select %p620, %s28, 5
          %s622 = smul.addr %s621, 2
          %s623 = scalar_lea.vmem %s12, %s622
        $region88: #{seq2seq_forward.5} parent=79 // pred_fallthru
          _
      $region80: #{seq2seq_forward.5} parent=5 // pred_fallthru
        _
    $region6: #{seq2seq_forward.5} parent=1 // loop_footer
      %s26 = sadd.s32 1, %s22
    $region7: #{seq2seq_forward.5} parent=1 // loop_footer_branch
      %21 = sbr.rel target = $region3
    $region8: #{seq2seq_forward.5} parent=1 // loop_exit
      _
    %624 = vsyncpa [#allocation3], 1
    %s625 = scalar_lea.sflag [#allocation3], 1
    %626 = vsyncpa %s625, 1

// kernel: seq2seq_forward.6
$region0: #{seq2seq_forward.6}
  #allocation0 [shape = 'u32[]', space=smem, size = 0x4, offset = 0x4, fixed_abs, tag = 'smem constant byte address 0x4 - core index']
  #allocation1 [shape = 'u32[72,128]{1,0:T(1,128)}', space=vmem, size = 0x9000, scoped, tag = 'internal scratch']
  #allocation2 [shape = 'f32[2,16]{1,0:T(2,128)}', space=vmem, size = 0x400, scoped, tag = 'scratch operand']
  #allocation3 [shape = 'f32[2,16]{1,0:T(2,128)}', space=vmem, size = 0x400, scoped, tag = 'scratch operand']
  #allocation4 [shape = 'f32[2,16]{1,0:T(2,128)}', space=vmem, size = 0x400, scoped, tag = 'scratch operand']
  #allocation5 [shape = 'f32[2,16]{1,0:T(2,128)}', space=vmem, size = 0x400, scoped, tag = 'scratch operand']
  %s0 = inlined_call_operand.vmem [shape: f32[6,2,16], index: 0, kind: input, shape index: {}, may-alias: {0,2}]
  %s1 = inlined_call_operand.vmem [shape: f32[6,2,16], index: 1, kind: input, shape index: {}, may-alias: {1,3}]
  %s2 = inlined_call_operand.vmem [shape: f32[6,2,16], index: 2, kind: input, shape index: {}, may-alias: {0,2}]
  %s3 = inlined_call_operand.vmem [shape: f32[6,2,16], index: 3, kind: input, shape index: {}, may-alias: {1,3}]
  %s4 = inlined_call_operand.vmem [shape: f32[16,64], index: 4, kind: input, shape index: {}]
  %s5 = inlined_call_operand.vmem [shape: f32[16,64], index: 5, kind: input, shape index: {}]
  %s6 = inlined_call_operand.vmem [shape: f32[16,64], index: 6, kind: input, shape index: {}]
  %s7 = inlined_call_operand.vmem [shape: f32[1,64], index: 7, kind: input, shape index: {}]
  %s8 = inlined_call_operand.vmem [shape: f32[16,64], index: 8, kind: input, shape index: {}]
  %s9 = inlined_call_operand.vmem [shape: f32[16,64], index: 9, kind: input, shape index: {}]
  %s10 = inlined_call_operand.vmem [shape: f32[16,64], index: 10, kind: input, shape index: {}]
  %s11 = inlined_call_operand.vmem [shape: f32[1,64], index: 11, kind: input, shape index: {}]
  %s12 = inlined_call_operand.vmem [shape: f32[2,16], index: 12, kind: output, shape index: {0}]
  %s13 = inlined_call_operand.vmem [shape: f32[2,16], index: 13, kind: output, shape index: {1}]
  %s14 = inlined_call_operand.vmem [shape: f32[2,16], index: 14, kind: output, shape index: {2}]
  %s15 = inlined_call_operand.vmem [shape: f32[2,16], index: 15, kind: output, shape index: {3}]
  %16 = xla_tuple %s12, %s13, %s14, %s15
  %s17 = sld [smem:[#allocation0]]
  $region113: #{seq2seq_forward.6} parent=0
    _
  %s19 = ssub.s32 1, %s17
  %s20 = scalar_select 0, %s19, %s17
  loop: start=0, step=1, limit=8
  $region2: #{seq2seq_forward.6} parent=0 // loop_pre_header
    _
  $region3: #{seq2seq_forward.6} parent=0 // loop_header
    %s22 = sphi 0, %s26
    %p23 = scmp.ge.s32.totalorder %s22, 8
    %s32 = sphi 0, %s34
    %s35 = sphi 0, %s32
    %s36 = sphi 0, %s35
    %s52 = sphi 0, %s36
    %s58 = sphi 0, %s60
    %s61 = sphi 0, %s58
    %s62 = sphi 0, %s61
    %s78 = sphi 0, %s62
    %s86 = sphi 0, %s88
    %s89 = sphi 0, %s86
    %s90 = sphi 0, %s89
    %s106 = sphi 0, %s90
    %s114 = sphi 0, %s116
    %s117 = sphi 0, %s114
    %s118 = sphi 0, %s117
    %s134 = sphi 0, %s118
    %s138 = sphi 0, %s138
    %s140 = sphi 0, %s138
    %s141 = sphi 0, %s140
    %s155 = sphi 0, %s141
    %s159 = sphi 0, %s159
    %s161 = sphi 0, %s159
    %s162 = sphi 0, %s161
    %s176 = sphi 0, %s162
    %s180 = sphi 0, %s180
    %s182 = sphi 0, %s180
    %s183 = sphi 0, %s182
    %s197 = sphi 0, %s183
    %s201 = sphi 0, %s201
    %s203 = sphi 0, %s201
    %s204 = sphi 0, %s203
    %s218 = sphi 0, %s204
    %s222 = sphi 0, %s222
    %s224 = sphi 0, %s222
    %s225 = sphi 0, %s224
    %s239 = sphi 0, %s225
    %s243 = sphi 0, %s243
    %s245 = sphi 0, %s243
    %s246 = sphi 0, %s245
    %s260 = sphi 0, %s246
    %s264 = sphi 0, %s264
    %s266 = sphi 0, %s264
    %s267 = sphi 0, %s266
    %s281 = sphi 0, %s267
    %s285 = sphi 0, %s285
    %s287 = sphi 0, %s285
    %s288 = sphi 0, %s287
    %s302 = sphi 0, %s288
    %s306 = sphi 0, %s306
    %s308 = sphi 0, %s306
    %s309 = sphi 0, %s308
    %s323 = sphi 0, %s309
    %s327 = sphi 0, %s327
    %s329 = sphi 0, %s327
    %s330 = sphi 0, %s329
    %s344 = sphi 0, %s330
    %s348 = sphi 0, %s348
    %s350 = sphi 0, %s348
    %s351 = sphi 0, %s350
    %s365 = sphi 0, %s351
    %s369 = sphi 0, %s369
    %s371 = sphi 0, %s369
    %s372 = sphi 0, %s371
    %s386 = sphi 0, %s372
  $region4: #{seq2seq_forward.6} parent=0 // loop_header_branch
    %25 = sbr.rel (%p23) target = $region8
  $region5: #{seq2seq_forward.6} parent=0 // loop_body
    %s27 = ssub.s32 %s22, 1
    %s28 = ssub.s32 %s22, 2
    %s29 = sadd.s32 %s22, 1
    %s30 = ssub.s32 %s22, %s29
    %p31 = scmp.eq.s32.totalorder %s30, 0
    %s33 = sadd.s32 %s32, 1
    %s34 = scalar_select %p31, %s32, %s33
    %p37 = pneg %p31
    %p38 = scmp.eq.s32.totalorder %s22, 5
    %p39 = por %p37, %p38
    %p40 = scmp.ne.s32.totalorder %s32, %s35
    %p41 = scmp.eq.s32.totalorder %s22, 0
    %p42 = por %p40, %p41
    %p43 = scmp.ne.s32.totalorder %s32, %s35
    %p44 = scmp.eq.s32.totalorder %s27, 5
    %p45 = por %p43, %p44
    %p46 = scmp.ne.s32.totalorder %s35, %s36
    %p47 = scmp.eq.s32.totalorder %s27, 0
    %p48 = por %p46, %p47
    %p49 = scmp.ne.s32.totalorder %s35, %s36
    %p50 = scmp.eq.s32.totalorder %s28, 5
    %p51 = por %p49, %p50
    %p53 = scmp.ne.s32.totalorder %s36, %s52
    %p54 = scmp.eq.s32.totalorder %s28, 0
    %p55 = por %p53, %p54
    %s56 = ssub.s32 %s22, %s29
    %p57 = scmp.eq.s32.totalorder %s56, 0
    %s59 = sadd.s32 %s58, 1
    %s60 = scalar_select %p57, %s58, %s59
    %p63 = pneg %p57
    %p64 = scmp.eq.s32.totalorder %s22, 5
    %p65 = por %p63, %p64
    %p66 = scmp.ne.s32.totalorder %s58, %s61
    %p67 = scmp.eq.s32.totalorder %s22, 0
    %p68 = por %p66, %p67
    %p69 = scmp.ne.s32.totalorder %s58, %s61
    %p70 = scmp.eq.s32.totalorder %s27, 5
    %p71 = por %p69, %p70
    %p72 = scmp.ne.s32.totalorder %s61, %s62
    %p73 = scmp.eq.s32.totalorder %s27, 0
    %p74 = por %p72, %p73
    %p75 = scmp.ne.s32.totalorder %s61, %s62
    %p76 = scmp.eq.s32.totalorder %s28, 5
    %p77 = por %p75, %p76
    %p79 = scmp.ne.s32.totalorder %s62, %s78
    %p80 = scmp.eq.s32.totalorder %s28, 0
    %p81 = por %p79, %p80
    %s82 = ssub.s32 5, %s22
    %s83 = ssub.s32 5, %s29
    %s84 = ssub.s32 %s82, %s83
    %p85 = scmp.eq.s32.totalorder %s84, 0
    %s87 = sadd.s32 %s86, 1
    %s88 = scalar_select %p85, %s86, %s87
    %p91 = pneg %p85
    %p92 = scmp.eq.s32.totalorder %s22, 5
    %p93 = por %p91, %p92
    %p94 = scmp.ne.s32.totalorder %s86, %s89
    %p95 = scmp.eq.s32.totalorder %s22, 0
    %p96 = por %p94, %p95
    %p97 = scmp.ne.s32.totalorder %s86, %s89
    %p98 = scmp.eq.s32.totalorder %s27, 5
    %p99 = por %p97, %p98
    %p100 = scmp.ne.s32.totalorder %s89, %s90
    %p101 = scmp.eq.s32.totalorder %s27, 0
    %p102 = por %p100, %p101
    %p103 = scmp.ne.s32.totalorder %s89, %s90
    %p104 = scmp.eq.s32.totalorder %s28, 5
    %p105 = por %p103, %p104
    %p107 = scmp.ne.s32.totalorder %s90, %s106
    %p108 = scmp.eq.s32.totalorder %s28, 0
    %p109 = por %p107, %p108
    %s110 = ssub.s32 5, %s22
    %s111 = ssub.s32 5, %s29
    %s112 = ssub.s32 %s110, %s111
    %p113 = scmp.eq.s32.totalorder %s112, 0
    %s115 = sadd.s32 %s114, 1
    %s116 = scalar_select %p113, %s114, %s115
    %p119 = pneg %p113
    %p120 = scmp.eq.s32.totalorder %s22, 5
    %p121 = por %p119, %p120
    %p122 = scmp.ne.s32.totalorder %s114, %s117
    %p123 = scmp.eq.s32.totalorder %s22, 0
    %p124 = por %p122, %p123
    %p125 = scmp.ne.s32.totalorder %s114, %s117
    %p126 = scmp.eq.s32.totalorder %s27, 5
    %p127 = por %p125, %p126
    %p128 = scmp.ne.s32.totalorder %s117, %s118
    %p129 = scmp.eq.s32.totalorder %s27, 0
    %p130 = por %p128, %p129
    %p131 = scmp.ne.s32.totalorder %s117, %s118
    %p132 = scmp.eq.s32.totalorder %s28, 5
    %p133 = por %p131, %p132
    %p135 = scmp.ne.s32.totalorder %s118, %s134
    %p136 = scmp.eq.s32.totalorder %s28, 0
    %p137 = por %p135, %p136
    %s139 = sadd.s32 %s138, 1
    %p142 = scmp.eq.s32.totalorder %s22, 5
    %p143 = scmp.ne.s32.totalorder %s138, %s140
    %p144 = scmp.eq.s32.totalorder %s22, 0
    %p145 = por %p143, %p144
    %p146 = scmp.ne.s32.totalorder %s138, %s140
    %p147 = scmp.eq.s32.totalorder %s27, 5
    %p148 = por %p146, %p147
    %p149 = scmp.ne.s32.totalorder %s140, %s141
    %p150 = scmp.eq.s32.totalorder %s27, 0
    %p151 = por %p149, %p150
    %p152 = scmp.ne.s32.totalorder %s140, %s141
    %p153 = scmp.eq.s32.totalorder %s28, 5
    %p154 = por %p152, %p153
    %p156 = scmp.ne.s32.totalorder %s141, %s155
    %p157 = scmp.eq.s32.totalorder %s28, 0
    %p158 = por %p156, %p157
    %s160 = sadd.s32 %s159, 1
    %p163 = scmp.eq.s32.totalorder %s22, 5
    %p164 = scmp.ne.s32.totalorder %s159, %s161
    %p165 = scmp.eq.s32.totalorder %s22, 0
    %p166 = por %p164, %p165
    %p167 = scmp.ne.s32.totalorder %s159, %s161
    %p168 = scmp.eq.s32.totalorder %s27, 5
    %p169 = por %p167, %p168
    %p170 = scmp.ne.s32.totalorder %s161, %s162
    %p171 = scmp.eq.s32.totalorder %s27, 0
    %p172 = por %p170, %p171
    %p173 = scmp.ne.s32.totalorder %s161, %s162
    %p174 = scmp.eq.s32.totalorder %s28, 5
    %p175 = por %p173, %p174
    %p177 = scmp.ne.s32.totalorder %s162, %s176
    %p178 = scmp.eq.s32.totalorder %s28, 0
    %p179 = por %p177, %p178
    %s181 = sadd.s32 %s180, 1
    %p184 = scmp.eq.s32.totalorder %s22, 5
    %p185 = scmp.ne.s32.totalorder %s180, %s182
    %p186 = scmp.eq.s32.totalorder %s22, 0
    %p187 = por %p185, %p186
    %p188 = scmp.ne.s32.totalorder %s180, %s182
    %p189 = scmp.eq.s32.totalorder %s27, 5
    %p190 = por %p188, %p189
    %p191 = scmp.ne.s32.totalorder %s182, %s183
    %p192 = scmp.eq.s32.totalorder %s27, 0
    %p193 = por %p191, %p192
    %p194 = scmp.ne.s32.totalorder %s182, %s183
    %p195 = scmp.eq.s32.totalorder %s28, 5
    %p196 = por %p194, %p195
    %p198 = scmp.ne.s32.totalorder %s183, %s197
    %p199 = scmp.eq.s32.totalorder %s28, 0
    %p200 = por %p198, %p199
    %s202 = sadd.s32 %s201, 1
    %p205 = scmp.eq.s32.totalorder %s22, 5
    %p206 = scmp.ne.s32.totalorder %s201, %s203
    %p207 = scmp.eq.s32.totalorder %s22, 0
    %p208 = por %p206, %p207
    %p209 = scmp.ne.s32.totalorder %s201, %s203
    %p210 = scmp.eq.s32.totalorder %s27, 5
    %p211 = por %p209, %p210
    %p212 = scmp.ne.s32.totalorder %s203, %s204
    %p213 = scmp.eq.s32.totalorder %s27, 0
    %p214 = por %p212, %p213
    %p215 = scmp.ne.s32.totalorder %s203, %s204
    %p216 = scmp.eq.s32.totalorder %s28, 5
    %p217 = por %p215, %p216
    %p219 = scmp.ne.s32.totalorder %s204, %s218
    %p220 = scmp.eq.s32.totalorder %s28, 0
    %p221 = por %p219, %p220
    %s223 = sadd.s32 %s222, 1
    %p226 = scmp.eq.s32.totalorder %s22, 5
    %p227 = scmp.ne.s32.totalorder %s222, %s224
    %p228 = scmp.eq.s32.totalorder %s22, 0
    %p229 = por %p227, %p228
    %p230 = scmp.ne.s32.totalorder %s222, %s224
    %p231 = scmp.eq.s32.totalorder %s27, 5
    %p232 = por %p230, %p231
    %p233 = scmp.ne.s32.totalorder %s224, %s225
    %p234 = scmp.eq.s32.totalorder %s27, 0
    %p235 = por %p233, %p234
    %p236 = scmp.ne.s32.totalorder %s224, %s225
    %p237 = scmp.eq.s32.totalorder %s28, 5
    %p238 = por %p236, %p237
    %p240 = scmp.ne.s32.totalorder %s225, %s239
    %p241 = scmp.eq.s32.totalorder %s28, 0
    %p242 = por %p240, %p241
    %s244 = sadd.s32 %s243, 1
    %p247 = scmp.eq.s32.totalorder %s22, 5
    %p248 = scmp.ne.s32.totalorder %s243, %s245
    %p249 = scmp.eq.s32.totalorder %s22, 0
    %p250 = por %p248, %p249
    %p251 = scmp.ne.s32.totalorder %s243, %s245
    %p252 = scmp.eq.s32.totalorder %s27, 5
    %p253 = por %p251, %p252
    %p254 = scmp.ne.s32.totalorder %s245, %s246
    %p255 = scmp.eq.s32.totalorder %s27, 0
    %p256 = por %p254, %p255
    %p257 = scmp.ne.s32.totalorder %s245, %s246
    %p258 = scmp.eq.s32.totalorder %s28, 5
    %p259 = por %p257, %p258
    %p261 = scmp.ne.s32.totalorder %s246, %s260
    %p262 = scmp.eq.s32.totalorder %s28, 0
    %p263 = por %p261, %p262
    %s265 = sadd.s32 %s264, 1
    %p268 = scmp.eq.s32.totalorder %s22, 5
    %p269 = scmp.ne.s32.totalorder %s264, %s266
    %p270 = scmp.eq.s32.totalorder %s22, 0
    %p271 = por %p269, %p270
    %p272 = scmp.ne.s32.totalorder %s264, %s266
    %p273 = scmp.eq.s32.totalorder %s27, 5
    %p274 = por %p272, %p273
    %p275 = scmp.ne.s32.totalorder %s266, %s267
    %p276 = scmp.eq.s32.totalorder %s27, 0
    %p277 = por %p275, %p276
    %p278 = scmp.ne.s32.totalorder %s266, %s267
    %p279 = scmp.eq.s32.totalorder %s28, 5
    %p280 = por %p278, %p279
    %p282 = scmp.ne.s32.totalorder %s267, %s281
    %p283 = scmp.eq.s32.totalorder %s28, 0
    %p284 = por %p282, %p283
    %s286 = sadd.s32 %s285, 1
    %p289 = scmp.eq.s32.totalorder %s22, 5
    %p290 = scmp.ne.s32.totalorder %s285, %s287
    %p291 = scmp.eq.s32.totalorder %s22, 0
    %p292 = por %p290, %p291
    %p293 = scmp.ne.s32.totalorder %s285, %s287
    %p294 = scmp.eq.s32.totalorder %s27, 5
    %p295 = por %p293, %p294
    %p296 = scmp.ne.s32.totalorder %s287, %s288
    %p297 = scmp.eq.s32.totalorder %s27, 0
    %p298 = por %p296, %p297
    %p299 = scmp.ne.s32.totalorder %s287, %s288
    %p300 = scmp.eq.s32.totalorder %s28, 5
    %p301 = por %p299, %p300
    %p303 = scmp.ne.s32.totalorder %s288, %s302
    %p304 = scmp.eq.s32.totalorder %s28, 0
    %p305 = por %p303, %p304
    %s307 = sadd.s32 %s306, 1
    %p310 = scmp.eq.s32.totalorder %s22, 5
    %p311 = scmp.ne.s32.totalorder %s306, %s308
    %p312 = scmp.eq.s32.totalorder %s22, 0
    %p313 = por %p311, %p312
    %p314 = scmp.ne.s32.totalorder %s306, %s308
    %p315 = scmp.eq.s32.totalorder %s27, 5
    %p316 = por %p314, %p315
    %p317 = scmp.ne.s32.totalorder %s308, %s309
    %p318 = scmp.eq.s32.totalorder %s27, 0
    %p319 = por %p317, %p318
    %p320 = scmp.ne.s32.totalorder %s308, %s309
    %p321 = scmp.eq.s32.totalorder %s28, 5
    %p322 = por %p320, %p321
    %p324 = scmp.ne.s32.totalorder %s309, %s323
    %p325 = scmp.eq.s32.totalorder %s28, 0
    %p326 = por %p324, %p325
    %s328 = sadd.s32 %s327, 1
    %p331 = scmp.eq.s32.totalorder %s22, 5
    %p332 = scmp.ne.s32.totalorder %s327, %s329
    %p333 = scmp.eq.s32.totalorder %s22, 0
    %p334 = por %p332, %p333
    %p335 = scmp.ne.s32.totalorder %s327, %s329
    %p336 = scmp.eq.s32.totalorder %s27, 5
    %p337 = por %p335, %p336
    %p338 = scmp.ne.s32.totalorder %s329, %s330
    %p339 = scmp.eq.s32.totalorder %s27, 0
    %p340 = por %p338, %p339
    %p341 = scmp.ne.s32.totalorder %s329, %s330
    %p342 = scmp.eq.s32.totalorder %s28, 5
    %p343 = por %p341, %p342
    %p345 = scmp.ne.s32.totalorder %s330, %s344
    %p346 = scmp.eq.s32.totalorder %s28, 0
    %p347 = por %p345, %p346
    %s349 = sadd.s32 %s348, 1
    %p352 = scmp.eq.s32.totalorder %s22, 5
    %p353 = scmp.ne.s32.totalorder %s348, %s350
    %p354 = scmp.eq.s32.totalorder %s22, 0
    %p355 = por %p353, %p354
    %p356 = scmp.ne.s32.totalorder %s348, %s350
    %p357 = scmp.eq.s32.totalorder %s27, 5
    %p358 = por %p356, %p357
    %p359 = scmp.ne.s32.totalorder %s350, %s351
    %p360 = scmp.eq.s32.totalorder %s27, 0
    %p361 = por %p359, %p360
    %p362 = scmp.ne.s32.totalorder %s350, %s351
    %p363 = scmp.eq.s32.totalorder %s28, 5
    %p364 = por %p362, %p363
    %p366 = scmp.ne.s32.totalorder %s351, %s365
    %p367 = scmp.eq.s32.totalorder %s28, 0
    %p368 = por %p366, %p367
    %s370 = sadd.s32 %s369, 1
    %p373 = scmp.eq.s32.totalorder %s22, 5
    %p374 = scmp.ne.s32.totalorder %s369, %s371
    %p375 = scmp.eq.s32.totalorder %s22, 0
    %p376 = por %p374, %p375
    %p377 = scmp.ne.s32.totalorder %s369, %s371
    %p378 = scmp.eq.s32.totalorder %s27, 5
    %p379 = por %p377, %p378
    %p380 = scmp.ne.s32.totalorder %s371, %s372
    %p381 = scmp.eq.s32.totalorder %s27, 0
    %p382 = por %p380, %p381
    %p383 = scmp.ne.s32.totalorder %s371, %s372
    %p384 = scmp.eq.s32.totalorder %s28, 5
    %p385 = por %p383, %p384
    %p387 = scmp.ne.s32.totalorder %s372, %s386
    %p388 = scmp.eq.s32.totalorder %s28, 0
    %p389 = por %p387, %p388
    %p390 = scmp.le.s32.totalorder 1, %s22
    %p391 = scmp.lt.s32.totalorder %s22, 7
    %p392 = pnand %p390, %p391
    %p393 = pneg %p392
    // Predicated region
    $region9: #{seq2seq_forward.6} parent=5 // pred_check
      _
    $region10: #{seq2seq_forward.6} parent=5 // pred_check_branch
      %395 = sbr.rel (%p392) target = $region12
    $region11: #{seq2seq_forward.6} parent=5 // pred_region
      %s396 = ssub.s32 %s22, 1
      // Predicated region
      $region13: #{seq2seq_forward.6} parent=11 // pred_check
        %p397 = pneg %p151
      $region14: #{seq2seq_forward.6} parent=11 // pred_check_branch
        %399 = sbr.rel (%p397) target = $region16
      $region15: #{seq2seq_forward.6} parent=11 // pred_region
        _
      $region16: #{seq2seq_forward.6} parent=11 // pred_fallthru
        _
      // Predicated region
      $region17: #{seq2seq_forward.6} parent=11 // pred_check
        %p400 = pneg %p172
      $region18: #{seq2seq_forward.6} parent=11 // pred_check_branch
        %402 = sbr.rel (%p400) target = $region20
      $region19: #{seq2seq_forward.6} parent=11 // pred_region
        _
      $region20: #{seq2seq_forward.6} parent=11 // pred_fallthru
        _
      // Predicated region
      $region21: #{seq2seq_forward.6} parent=11 // pred_check
        %p403 = pneg %p193
      $region22: #{seq2seq_forward.6} parent=11 // pred_check_branch
        %405 = sbr.rel (%p403) target = $region24
      $region23: #{seq2seq_forward.6} parent=11 // pred_region
        _
      $region24: #{seq2seq_forward.6} parent=11 // pred_fallthru
        _
      // Predicated region
      $region25: #{seq2seq_forward.6} parent=11 // pred_check
        %p406 = pneg %p214
      $region26: #{seq2seq_forward.6} parent=11 // pred_check_branch
        %408 = sbr.rel (%p406) target = $region28
      $region27: #{seq2seq_forward.6} parent=11 // pred_region
        _
      $region28: #{seq2seq_forward.6} parent=11 // pred_fallthru
        _
      // Predicated region
      $region29: #{seq2seq_forward.6} parent=11 // pred_check
        %p409 = pneg %p235
      $region30: #{seq2seq_forward.6} parent=11 // pred_check_branch
        %411 = sbr.rel (%p409) target = $region32
      $region31: #{seq2seq_forward.6} parent=11 // pred_region
        _
      $region32: #{seq2seq_forward.6} parent=11 // pred_fallthru
        _
      // Predicated region
      $region33: #{seq2seq_forward.6} parent=11 // pred_check
        %p412 = pneg %p256
      $region34: #{seq2seq_forward.6} parent=11 // pred_check_branch
        %414 = sbr.rel (%p412) target = $region36
      $region35: #{seq2seq_forward.6} parent=11 // pred_region
        _
      $region36: #{seq2seq_forward.6} parent=11 // pred_fallthru
        _
      // Predicated region
      $region37: #{seq2seq_forward.6} parent=11 // pred_check
        %p415 = pneg %p277
      $region38: #{seq2seq_forward.6} parent=11 // pred_check_branch
        %417 = sbr.rel (%p415) target = $region40
      $region39: #{seq2seq_forward.6} parent=11 // pred_region
        _
      $region40: #{seq2seq_forward.6} parent=11 // pred_fallthru
        _
      // Predicated region
      $region41: #{seq2seq_forward.6} parent=11 // pred_check
        %p418 = pneg %p298
      $region42: #{seq2seq_forward.6} parent=11 // pred_check_branch
        %420 = sbr.rel (%p418) target = $region44
      $region43: #{seq2seq_forward.6} parent=11 // pred_region
        _
      $region44: #{seq2seq_forward.6} parent=11 // pred_fallthru
        _
    $region12: #{seq2seq_forward.6} parent=5 // pred_fallthru
      _
    %p421 = scmp.lt.s32.totalorder %s22, 6
    // Predicated region
    $region45: #{seq2seq_forward.6} parent=5 // pred_check
      %p422 = pneg %p421
    $region46: #{seq2seq_forward.6} parent=5 // pred_check_branch
      %424 = sbr.rel (%p422) target = $region48
    $region47: #{seq2seq_forward.6} parent=5 // pred_region
      // Predicated region
      $region49: #{seq2seq_forward.6} parent=47 // pred_check
        %p425 = pneg %p42
      $region50: #{seq2seq_forward.6} parent=47 // pred_check_branch
        %427 = sbr.rel (%p425) target = $region52
      $region51: #{seq2seq_forward.6} parent=47 // pred_region
        %p428 = scmp.lt.s32.totalorder %s22, 5
        %s429 = scalar_select %p428, %s22, 5
        %s430 = smul.addr %s429, 2
        %s431 = scalar_lea.vmem %s0, %s430
      $region52: #{seq2seq_forward.6} parent=47 // pred_fallthru
        _
      // Predicated region
      $region53: #{seq2seq_forward.6} parent=47 // pred_check
        %p432 = pneg %p68
      $region54: #{seq2seq_forward.6} parent=47 // pred_check_branch
        %434 = sbr.rel (%p432) target = $region56
      $region55: #{seq2seq_forward.6} parent=47 // pred_region
        %p435 = scmp.lt.s32.totalorder %s22, 5
        %s436 = scalar_select %p435, %s22, 5
        %s437 = smul.addr %s436, 2
        %s438 = scalar_lea.vmem %s1, %s437
      $region56: #{seq2seq_forward.6} parent=47 // pred_fallthru
        _
      // Predicated region
      $region57: #{seq2seq_forward.6} parent=47 // pred_check
        %p439 = pneg %p96
      $region58: #{seq2seq_forward.6} parent=47 // pred_check_branch
        %441 = sbr.rel (%p439) target = $region60
      $region59: #{seq2seq_forward.6} parent=47 // pred_region
        %s442 = ssub.s32 5, %s22
        %p443 = scmp.lt.s32.totalorder %s442, 5
        %s444 = scalar_select %p443, %s442, 5
        %s445 = smul.addr %s444, 2
        %s446 = scalar_lea.vmem %s2, %s445
        %s447 = ssub.s32 5, %s22
      $region60: #{seq2seq_forward.6} parent=47 // pred_fallthru
        _
      // Predicated region
      $region61: #{seq2seq_forward.6} parent=47 // pred_check
        %p448 = pneg %p124
      $region62: #{seq2seq_forward.6} parent=47 // pred_check_branch
        %450 = sbr.rel (%p448) target = $region64
      $region63: #{seq2seq_forward.6} parent=47 // pred_region
        %s451 = ssub.s32 5, %s22
        %p452 = scmp.lt.s32.totalorder %s451, 5
        %s453 = scalar_select %p452, %s451, 5
        %s454 = smul.addr %s453, 2
        %s455 = scalar_lea.vmem %s3, %s454
        %s456 = ssub.s32 5, %s22
      $region64: #{seq2seq_forward.6} parent=47 // pred_fallthru
        _
    $region48: #{seq2seq_forward.6} parent=5 // pred_fallthru
      _
    %p457 = scmp.le.s32.totalorder 1, %s22
    %p458 = scmp.lt.s32.totalorder %s22, 7
    %p459 = pnand %p457, %p458
    %p460 = pneg %p459
    // Predicated region
    $region65: #{seq2seq_forward.6} parent=5 // pred_check
      _
    $region66: #{seq2seq_forward.6} parent=5 // pred_check_branch
      %462 = sbr.rel (%p459) target = $region68
    $region67: #{seq2seq_forward.6} parent=5 // pred_region
      %s463 = ssub.s32 %s22, 1
      %p464 = scmp.lt.s32.totalorder %s27, 5
      %s465 = scalar_select %p464, %s27, 5
      %s466 = smul.addr %s465, 2
      %s467 = scalar_lea.vmem %s0, %s466
      %p468 = pneg %p48
      %p469 = pneg %p45
      %p470 = scmp.lt.s32.totalorder %s27, 5
      %s471 = scalar_select %p470, %s27, 5
      %s472 = smul.addr %s471, 2
      %s473 = scalar_lea.vmem %s1, %s472
      %p474 = pneg %p74
      %p475 = pneg %p71
      %s476 = ssub.s32 5, %s27
      %p477 = scmp.lt.s32.totalorder %s476, 5
      %s478 = scalar_select %p477, %s476, 5
      %s479 = smul.addr %s478, 2
      %s480 = scalar_lea.vmem %s2, %s479
      %p481 = pneg %p102
      %p482 = pneg %p99
      %s483 = ssub.s32 5, %s27
      %p484 = scmp.lt.s32.totalorder %s483, 5
      %s485 = scalar_select %p484, %s483, 5
      %s486 = smul.addr %s485, 2
      %s487 = scalar_lea.vmem %s3, %s486
      %p488 = pneg %p130
      %p489 = pneg %p127
      %p490 = pneg %p151
      %p491 = pneg %p148
      %p492 = pneg %p172
      %p493 = pneg %p169
      %p494 = pneg %p193
      %p495 = pneg %p190
      %p496 = pneg %p214
      %p497 = pneg %p211
      %p498 = pneg %p235
      %p499 = pneg %p232
      %p500 = pneg %p256
      %p501 = pneg %p253
      %p502 = pneg %p277
      %p503 = pneg %p274
      %p504 = pneg %p298
      %p505 = pneg %p295
      %p506 = pneg %p319
      %p507 = pneg %p316
      %p508 = pneg %p340
      %p509 = pneg %p337
      %p510 = pneg %p361
      %p511 = pneg %p358
      %p512 = pneg %p382
      %p513 = pneg %p379
      %p514 = scmp.lt.s32.totalorder %s27, 5
      %s515 = scalar_select %p514, %s27, 5
      %s516 = smul.addr %s515, 2
      %s517 = scalar_lea.vmem %s0, %s516
      %p518 = scmp.lt.s32.totalorder %s27, 5
      %s519 = scalar_select %p518, %s27, 5
      %s520 = smul.addr %s519, 2
      %s521 = scalar_lea.vmem %s1, %s520
      %s522 = ssub.s32 5, %s27
      %p523 = scmp.lt.s32.totalorder %s522, 5
      %s524 = scalar_select %p523, %s522, 5
      %s525 = smul.addr %s524, 2
      %s526 = scalar_lea.vmem %s2, %s525
      %s527 = ssub.s32 5, %s27
      %s528 = ssub.s32 5, %s27
      %p529 = scmp.lt.s32.totalorder %s528, 5
      %s530 = scalar_select %p529, %s528, 5
      %s531 = smul.addr %s530, 2
      %s532 = scalar_lea.vmem %s3, %s531
      %s533 = ssub.s32 5, %s27
      %p534 = scmp.eq.s32.totalorder %s27, 0
      // Predicated region
      $region69: #{seq2seq_forward.6} parent=67 // pred_check
        %p535 = pneg %p534
      $region70: #{seq2seq_forward.6} parent=67 // pred_check_branch
        %537 = sbr.rel (%p535) target = $region72
      $region71: #{seq2seq_forward.6} parent=67 // pred_region
        %vm538 = vcmask 123904
        %539 = vst.msk [vmem:[#allocation2] sm:$0x3] %vm538, 0.0
        %540 = vst.msk [vmem:[#allocation3] sm:$0x3] %vm538, 0.0
        %541 = vst.msk [vmem:[#allocation4] sm:$0x3] %vm538, 0.0
        %542 = vst.msk [vmem:[#allocation5] sm:$0x3] %vm538, 0.0
      $region72: #{seq2seq_forward.6} parent=67 // pred_fallthru
        _
      %v543 = vld [vmem:[#allocation2] sm:$0x3]
      %v544 = vld [vmem:[#allocation3] sm:$0x3]
      %v545 = vld [vmem:[%s6] sm:$0xff]
      %v546 = vld [vmem:[%s6 + $0x8] sm:$0xff]
      %v547 = vld [vmem:[%s7] sm:$0x1]
      %v549 = vperm.slane %v547, 0
      %vm551 = vcmask 130048
      %v553 = vsel %vm551, %v543, 0
      %555 = vmatpush.msra.mxu0 0.0
      %556 = vmatpush.msra.mxu0 0.0
      %557 = vmatpush.msra.mxu0 0.0
      %558 = vmatpush.msra.mxu0 0.0
      %559 = vmatpush.msra.mxu0 0.0
      %560 = vmatpush.msra.mxu0 0.0
      %561 = vmatpush.msra.mxu0 0.0
      %562 = vmatpush.msra.mxu0 0.0
      %563 = vmatpush.msra.mxu0 0.0
      %564 = vmatpush.msra.mxu0 0.0
      %565 = vmatpush.msra.mxu0 0.0
      %566 = vmatpush.msra.mxu0 0.0
      %567 = vmatpush.msra.mxu0 0.0
      %568 = vmatpush.msra.mxu0 0.0
      %569 = vmatpush.msra.mxu0 %v546
      %570 = vmatpush.msra.mxu0 %v545
      %571 = vmatmul.f32.gmra.mxu0 %v553
      %v572 = vpop.f32.mrf.mxu0
      %v573 = vadd.f32 %v549, %v572
      %574 = vdwg.mxu0
      %v575 = vld [vmem:[%s517] sm:$0x3]
      %v576 = vld [vmem:[%s4] sm:$0xff]
      %v577 = vld [vmem:[%s4 + $0x8] sm:$0xff]
      %v579 = vsel %vm551, %v575, 0
      %581 = vmatpush.msra.mxu0 0.0
      %582 = vmatpush.msra.mxu0 0.0
      %583 = vmatpush.msra.mxu0 0.0
      %584 = vmatpush.msra.mxu0 0.0
      %585 = vmatpush.msra.mxu0 0.0
      %586 = vmatpush.msra.mxu0 0.0
      %587 = vmatpush.msra.mxu0 0.0
      %588 = vmatpush.msra.mxu0 0.0
      %589 = vmatpush.msra.mxu0 0.0
      %590 = vmatpush.msra.mxu0 0.0
      %591 = vmatpush.msra.mxu0 0.0
      %592 = vmatpush.msra.mxu0 0.0
      %593 = vmatpush.msra.mxu0 0.0
      %594 = vmatpush.msra.mxu0 0.0
      %595 = vmatpush.msra.mxu0 %v577
      %596 = vmatpush.msra.mxu0 %v576
      %597 = vmatmul.f32.gmra.mxu0 %v579
      %v598 = vpop.f32.mrf.mxu0
      %v599 = vadd.f32 0.0, %v598
      %600 = vdwg.mxu0
      %v601 = vadd.f32 %v573, %v599
      %v602 = vld [vmem:[%s521] sm:$0x3]
      %v603 = vld [vmem:[%s5] sm:$0xff]
      %v604 = vld [vmem:[%s5 + $0x8] sm:$0xff]
      %v606 = vsel %vm551, %v602, 0
      %608 = vmatpush.msra.mxu0 0.0
      %609 = vmatpush.msra.mxu0 0.0
      %610 = vmatpush.msra.mxu0 0.0
      %611 = vmatpush.msra.mxu0 0.0
      %612 = vmatpush.msra.mxu0 0.0
      %613 = vmatpush.msra.mxu0 0.0
      %614 = vmatpush.msra.mxu0 0.0
      %615 = vmatpush.msra.mxu0 0.0
      %616 = vmatpush.msra.mxu0 0.0
      %617 = vmatpush.msra.mxu0 0.0
      %618 = vmatpush.msra.mxu0 0.0
      %619 = vmatpush.msra.mxu0 0.0
      %620 = vmatpush.msra.mxu0 0.0
      %621 = vmatpush.msra.mxu0 0.0
      %622 = vmatpush.msra.mxu0 %v604
      %623 = vmatpush.msra.mxu0 %v603
      %624 = vmatmul.f32.gmra.mxu0 %v606
      %v625 = vpop.f32.mrf.mxu0
      %v626 = vadd.f32 0.0, %v625
      %627 = vdwg.mxu0
      %v628 = vadd.f32 %v601, %v626
      %v629 = vxor.u32 %v628, 2147483648
      %v630 = vmul.f32 %v629, 1.442695
      %v631 = vpow.pop %v630
      %v632 = vadd.f32 %v631, 1.0
      %v633 = vrcp.pop %v632
      %v634 = vmul.f32 %v632, %v633
      %v635 = vsub.f32 1.0, %v634
      %v636 = vmul.f32 %v633, %v635
      %v637 = vadd.f32 %v633, %v636
      %vm638 = vweird.f32 %v632
      %vm639 = vweird.f32 %v633
      %vm640 = vmor %vm638, %vm639
      %v641 = vsel %vm640, %v633, %v637
      %v642 = vand.u32 2147483647, %v632
      %vm643 = vcmp.eq.f32.partialorder %v642, 8.507059e+37
      %v644 = vand.u32 %v632, 2147483648
      %v645 = vor.u32 1.1754944e-38, %v644
      %v646 = vsel %vm643, %v645, %v641
      %v647 = vmul.f32 1.0, %v646
      %v648 = vtanh.pop %v628
      %650 = vrot.lane.b32.xlu0 %v544, 16
      %v651 = vpop.permute.xlu0 %650
      %v653 = vmul.f32 %v647, %v651
      %655 = vrot.lane.b32.xlu0 %v648, 96
      %v656 = vpop.permute.xlu0 %655
      %v658 = vmul.f32 %v647, %v656
      %660 = vrot.lane.b32.xlu0 %v658, 16
      %v661 = vpop.permute.xlu0 %660
      %v663 = vadd.f32 %v653, %v661
      %v664 = vtanh.pop %v663
      %666 = vrot.lane.b32.xlu0 %v664, 32
      %v667 = vpop.permute.xlu0 %666
      %v669 = vmul.f32 %v647, %v667
      %v670 = vld [vmem:[#allocation4] sm:$0x3]
      %v671 = vld [vmem:[#allocation5] sm:$0x3]
      %v672 = vld [vmem:[%s10] sm:$0xff]
      %v673 = vld [vmem:[%s10 + $0x8] sm:$0xff]
      %v674 = vld [vmem:[%s11] sm:$0x1]
      %v676 = vperm.slane %v674, 0
      %v679 = vsel %vm551, %v670, 0
      %681 = vmatpush.msra.mxu0 0.0
      %682 = vmatpush.msra.mxu0 0.0
      %683 = vmatpush.msra.mxu0 0.0
      %684 = vmatpush.msra.mxu0 0.0
      %685 = vmatpush.msra.mxu0 0.0
      %686 = vmatpush.msra.mxu0 0.0
      %687 = vmatpush.msra.mxu0 0.0
      %688 = vmatpush.msra.mxu0 0.0
      %689 = vmatpush.msra.mxu0 0.0
      %690 = vmatpush.msra.mxu0 0.0
      %691 = vmatpush.msra.mxu0 0.0
      %692 = vmatpush.msra.mxu0 0.0
      %693 = vmatpush.msra.mxu0 0.0
      %694 = vmatpush.msra.mxu0 0.0
      %695 = vmatpush.msra.mxu0 %v673
      %696 = vmatpush.msra.mxu0 %v672
      %697 = vmatmul.f32.gmra.mxu0 %v679
      %v698 = vpop.f32.mrf.mxu0
      %v699 = vadd.f32 %v676, %v698
      %700 = vdwg.mxu0
      %v701 = vld [vmem:[%s526] sm:$0x3]
      %v702 = vld [vmem:[%s8] sm:$0xff]
      %v703 = vld [vmem:[%s8 + $0x8] sm:$0xff]
      %v705 = vsel %vm551, %v701, 0
      %707 = vmatpush.msra.mxu0 0.0
      %708 = vmatpush.msra.mxu0 0.0
      %709 = vmatpush.msra.mxu0 0.0
      %710 = vmatpush.msra.mxu0 0.0
      %711 = vmatpush.msra.mxu0 0.0
      %712 = vmatpush.msra.mxu0 0.0
      %713 = vmatpush.msra.mxu0 0.0
      %714 = vmatpush.msra.mxu0 0.0
      %715 = vmatpush.msra.mxu0 0.0
      %716 = vmatpush.msra.mxu0 0.0
      %717 = vmatpush.msra.mxu0 0.0
      %718 = vmatpush.msra.mxu0 0.0
      %719 = vmatpush.msra.mxu0 0.0
      %720 = vmatpush.msra.mxu0 0.0
      %721 = vmatpush.msra.mxu0 %v703
      %722 = vmatpush.msra.mxu0 %v702
      %723 = vmatmul.f32.gmra.mxu0 %v705
      %v724 = vpop.f32.mrf.mxu0
      %v725 = vadd.f32 0.0, %v724
      %726 = vdwg.mxu0
      %v727 = vadd.f32 %v699, %v725
      %v728 = vld [vmem:[%s532] sm:$0x3]
      %v729 = vld [vmem:[%s9] sm:$0xff]
      %v730 = vld [vmem:[%s9 + $0x8] sm:$0xff]
      %v732 = vsel %vm551, %v728, 0
      %734 = vmatpush.msra.mxu0 0.0
      %735 = vmatpush.msra.mxu0 0.0
      %736 = vmatpush.msra.mxu0 0.0
      %737 = vmatpush.msra.mxu0 0.0
      %738 = vmatpush.msra.mxu0 0.0
      %739 = vmatpush.msra.mxu0 0.0
      %740 = vmatpush.msra.mxu0 0.0
      %741 = vmatpush.msra.mxu0 0.0
      %742 = vmatpush.msra.mxu0 0.0
      %743 = vmatpush.msra.mxu0 0.0
      %744 = vmatpush.msra.mxu0 0.0
      %745 = vmatpush.msra.mxu0 0.0
      %746 = vmatpush.msra.mxu0 0.0
      %747 = vmatpush.msra.mxu0 0.0
      %748 = vmatpush.msra.mxu0 %v730
      %749 = vmatpush.msra.mxu0 %v729
      %750 = vmatmul.f32.gmra.mxu0 %v732
      %v751 = vpop.f32.mrf.mxu0
      %v752 = vadd.f32 0.0, %v751
      %753 = vdwg.mxu0
      %v754 = vadd.f32 %v727, %v752
      %v755 = vxor.u32 %v754, 2147483648
      %v756 = vmul.f32 %v755, 1.442695
      %v757 = vpow.pop %v756
      %v758 = vadd.f32 %v757, 1.0
      %v759 = vrcp.pop %v758
      %v760 = vmul.f32 %v758, %v759
      %v761 = vsub.f32 1.0, %v760
      %v762 = vmul.f32 %v759, %v761
      %v763 = vadd.f32 %v759, %v762
      %vm764 = vweird.f32 %v758
      %vm765 = vweird.f32 %v759
      %vm766 = vmor %vm764, %vm765
      %v767 = vsel %vm766, %v759, %v763
      %v768 = vand.u32 2147483647, %v758
      %vm769 = vcmp.eq.f32.partialorder %v768, 8.507059e+37
      %v770 = vand.u32 %v758, 2147483648
      %v771 = vor.u32 1.1754944e-38, %v770
      %v772 = vsel %vm769, %v771, %v767
      %v773 = vmul.f32 1.0, %v772
      %v774 = vtanh.pop %v754
      %776 = vrot.lane.b32.xlu0 %v671, 16
      %v777 = vpop.permute.xlu0 %776
      %v779 = vmul.f32 %v773, %v777
      %781 = vrot.lane.b32.xlu0 %v774, 96
      %v782 = vpop.permute.xlu0 %781
      %v784 = vmul.f32 %v773, %v782
      %786 = vrot.lane.b32.xlu0 %v784, 16
      %v787 = vpop.permute.xlu0 %786
      %v789 = vadd.f32 %v779, %v787
      %v790 = vtanh.pop %v789
      %792 = vrot.lane.b32.xlu0 %v790, 32
      %v793 = vpop.permute.xlu0 %792
      %v795 = vmul.f32 %v773, %v793
      %797 = vrot.lane.b32.xlu0 %v669, 80
      %v798 = vpop.permute.xlu0 %797
      %vm800 = vcmask 123904
      %801 = vst.msk [vmem:[#allocation2] sm:$0x3] %vm800, %v798
      %803 = vrot.lane.b32.xlu0 %v663, 112
      %v804 = vpop.permute.xlu0 %803
      %806 = vst.msk [vmem:[#allocation3] sm:$0x3] %vm800, %v804
      %808 = vrot.lane.b32.xlu0 %v795, 80
      %v809 = vpop.permute.xlu0 %808
      %811 = vst.msk [vmem:[#allocation4] sm:$0x3] %vm800, %v809
      %813 = vrot.lane.b32.xlu0 %v789, 112
      %v814 = vpop.permute.xlu0 %813
      %816 = vst.msk [vmem:[#allocation5] sm:$0x3] %vm800, %v814
      %p817 = scmp.eq.s32.totalorder %s27, 5
      // Predicated region
      $region73: #{seq2seq_forward.6} parent=67 // pred_check
        %p818 = pneg %p817
      $region74: #{seq2seq_forward.6} parent=67 // pred_check_branch
        %820 = sbr.rel (%p818) target = $region76
      $region75: #{seq2seq_forward.6} parent=67 // pred_region
        %821 = vst.msk [vmem:[%s12] sm:$0x3] %vm800, %v798
        %822 = vst.msk [vmem:[%s13] sm:$0x3] %vm800, %v804
        %823 = vst.msk [vmem:[%s14] sm:$0x3] %vm800, %v809
        %824 = vst.msk [vmem:[%s15] sm:$0x3] %vm800, %v814
      $region76: #{seq2seq_forward.6} parent=67 // pred_fallthru
        _
      // Predicated region
      $region77: #{seq2seq_forward.6} parent=67 // pred_check
        %p825 = pneg %p316
      $region78: #{seq2seq_forward.6} parent=67 // pred_check_branch
        %827 = sbr.rel (%p825) target = $region80
      $region79: #{seq2seq_forward.6} parent=67 // pred_region
        _
      $region80: #{seq2seq_forward.6} parent=67 // pred_fallthru
        _
      // Predicated region
      $region81: #{seq2seq_forward.6} parent=67 // pred_check
        %p828 = pneg %p337
      $region82: #{seq2seq_forward.6} parent=67 // pred_check_branch
        %830 = sbr.rel (%p828) target = $region84
      $region83: #{seq2seq_forward.6} parent=67 // pred_region
        _
      $region84: #{seq2seq_forward.6} parent=67 // pred_fallthru
        _
      // Predicated region
      $region85: #{seq2seq_forward.6} parent=67 // pred_check
        %p831 = pneg %p358
      $region86: #{seq2seq_forward.6} parent=67 // pred_check_branch
        %833 = sbr.rel (%p831) target = $region88
      $region87: #{seq2seq_forward.6} parent=67 // pred_region
        _
      $region88: #{seq2seq_forward.6} parent=67 // pred_fallthru
        _
      // Predicated region
      $region89: #{seq2seq_forward.6} parent=67 // pred_check
        %p834 = pneg %p379
      $region90: #{seq2seq_forward.6} parent=67 // pred_check_branch
        %836 = sbr.rel (%p834) target = $region92
      $region91: #{seq2seq_forward.6} parent=67 // pred_region
        _
      $region92: #{seq2seq_forward.6} parent=67 // pred_fallthru
        _
      // Predicated region
      $region93: #{seq2seq_forward.6} parent=67 // pred_check
        %p837 = pneg %p316
      $region94: #{seq2seq_forward.6} parent=67 // pred_check_branch
        %839 = sbr.rel (%p837) target = $region96
      $region95: #{seq2seq_forward.6} parent=67 // pred_region
        _
      $region96: #{seq2seq_forward.6} parent=67 // pred_fallthru
        _
      // Predicated region
      $region97: #{seq2seq_forward.6} parent=67 // pred_check
        %p840 = pneg %p337
      $region98: #{seq2seq_forward.6} parent=67 // pred_check_branch
        %842 = sbr.rel (%p840) target = $region100
      $region99: #{seq2seq_forward.6} parent=67 // pred_region
        _
      $region100: #{seq2seq_forward.6} parent=67 // pred_fallthru
        _
      // Predicated region
      $region101: #{seq2seq_forward.6} parent=67 // pred_check
        %p843 = pneg %p358
      $region102: #{seq2seq_forward.6} parent=67 // pred_check_branch
        %845 = sbr.rel (%p843) target = $region104
      $region103: #{seq2seq_forward.6} parent=67 // pred_region
        _
      $region104: #{seq2seq_forward.6} parent=67 // pred_fallthru
        _
      // Predicated region
      $region105: #{seq2seq_forward.6} parent=67 // pred_check
        %p846 = pneg %p379
      $region106: #{seq2seq_forward.6} parent=67 // pred_check_branch
        %848 = sbr.rel (%p846) target = $region108
      $region107: #{seq2seq_forward.6} parent=67 // pred_region
        _
      $region108: #{seq2seq_forward.6} parent=67 // pred_fallthru
        _
    $region68: #{seq2seq_forward.6} parent=5 // pred_fallthru
      _
    %p849 = scmp.le.s32.totalorder 2, %s22
    // Predicated region
    $region109: #{seq2seq_forward.6} parent=5 // pred_check
      %p850 = pneg %p849
    $region110: #{seq2seq_forward.6} parent=5 // pred_check_branch
      %852 = sbr.rel (%p850) target = $region112
    $region111: #{seq2seq_forward.6} parent=5 // pred_region
      %s853 = ssub.s32 %s22, 2
    $region112: #{seq2seq_forward.6} parent=5 // pred_fallthru
      _
  $region6: #{seq2seq_forward.6} parent=0 // loop_footer
    %s26 = sadd.s32 1, %s22
  $region7: #{seq2seq_forward.6} parent=0 // loop_footer_branch
    %21 = sbr.rel target = $region3
  $region8: #{seq2seq_forward.6} parent=0 // loop_exit
    _

// kernel: seq2seq_forward.7
$region0: #{seq2seq_forward.7}
  #allocation0 [shape = 'u32[]', space=smem, size = 0x4, offset = 0x4, fixed_abs, tag = 'smem constant byte address 0x4 - core index']
  #allocation1 [shape = 'u32[72,128]{1,0:T(1,128)}', space=vmem, size = 0x9000, scoped, tag = 'internal scratch']
  #allocation2 [shape = 'f32[2,2,32]{2,1,0:T(2,128)}', space=vmem, size = 0x800, scoped, tag = 'scratch operand']
  #allocation3 [shape = 'f32[2,2,32]{2,1,0:T(2,128)}', space=vmem, size = 0x800, scoped, tag = 'scratch operand']
  #allocation4 [shape = 'f32[2,4]{1,0:T(2,128)}', space=vmem, size = 0x400, scoped, tag = 'scratch operand']
  #allocation5 [shape = 's32[1]{0}', space=sflag, size = 0x4, scoped, tag = 'scoped memory for seq2seq_forward.7']
  #allocation6 [shape = 'u8[512]{0}', space=smem, size = 0x200, scoped, tag = 'prefetched SMEM operand 0']
  %s0 = inlined_call_operand.vmem [shape: s32[5], index: 0, kind: input, shape index: {}]
  %s1 = inlined_call_operand.vmem [shape: f32[5,2,4], index: 1, kind: input, shape index: {}]
  %s2 = inlined_call_operand.vmem [shape: f32[2,2,32], index: 2, kind: input, shape index: {}]
  %s3 = inlined_call_operand.vmem [shape: f32[2,2,32], index: 3, kind: input, shape index: {}]
  %s4 = inlined_call_operand.vmem [shape: f32[4,128], index: 4, kind: input, shape index: {}]
  %s5 = inlined_call_operand.vmem [shape: f32[32,128], index: 5, kind: input, shape index: {}]
  %s6 = inlined_call_operand.vmem [shape: f32[1,128], index: 6, kind: input, shape index: {}]
  %s7 = inlined_call_operand.vmem [shape: f32[1,32], index: 7, kind: input, shape index: {}]
  %s8 = inlined_call_operand.vmem [shape: f32[1,32], index: 8, kind: input, shape index: {}]
  %s9 = inlined_call_operand.vmem [shape: f32[4,32], index: 9, kind: input, shape index: {}]
  %s10 = inlined_call_operand.vmem [shape: f32[1,32], index: 10, kind: input, shape index: {}]
  %s11 = inlined_call_operand.vmem [shape: f32[32,128], index: 11, kind: input, shape index: {}]
  %s12 = inlined_call_operand.vmem [shape: f32[32,128], index: 12, kind: input, shape index: {}]
  %s13 = inlined_call_operand.vmem [shape: f32[1,128], index: 13, kind: input, shape index: {}]
  %s14 = inlined_call_operand.vmem [shape: f32[1,32], index: 14, kind: input, shape index: {}]
  %s15 = inlined_call_operand.vmem [shape: f32[1,32], index: 15, kind: input, shape index: {}]
  %s16 = inlined_call_operand.vmem [shape: f32[32,4], index: 16, kind: input, shape index: {}]
  %s17 = inlined_call_operand.vmem [shape: f32[1,4], index: 17, kind: input, shape index: {}]
  %s18 = inlined_call_operand.vmem [shape: f32[5,2,4], index: 18, kind: output, shape index: {}]
  %s19 = sld [smem:[#allocation0]]
  $region105: #{seq2seq_forward.7} parent=0
    _
  %s21 = ssub.s32 1, %s19
  %s22 = scalar_select 0, %s21, %s19
  %s24 = sshll.u32 %s0, 4
  %s25 = int_to_ptr.vmem [resolvable:$true] %s24
  %27 = dma.vmem_to_smem %s25, 16, [#allocation6], [#allocation5]
  %29 = dma.done [#allocation5], 16
  %30 = sfence
  loop: start=0, step=1, limit=7
  $region2: #{seq2seq_forward.7} parent=0 // loop_pre_header
    _
  $region3: #{seq2seq_forward.7} parent=0 // loop_header
    %s32 = sphi 0, %s36
    %p33 = scmp.ge.s32.totalorder %s32, 7
    %s42 = sphi 0, %s44
    %s45 = sphi 0, %s42
    %s46 = sphi 0, %s45
    %s62 = sphi 0, %s46
    %s66 = sphi 0, %s66
    %s68 = sphi 0, %s66
    %s69 = sphi 0, %s68
    %s83 = sphi 0, %s69
    %s87 = sphi 0, %s87
    %s89 = sphi 0, %s87
    %s90 = sphi 0, %s89
    %s104 = sphi 0, %s90
    %s108 = sphi 0, %s108
    %s110 = sphi 0, %s108
    %s111 = sphi 0, %s110
    %s125 = sphi 0, %s111
    %s129 = sphi 0, %s129
    %s131 = sphi 0, %s129
    %s132 = sphi 0, %s131
    %s146 = sphi 0, %s132
    %s150 = sphi 0, %s150
    %s152 = sphi 0, %s150
    %s153 = sphi 0, %s152
    %s167 = sphi 0, %s153
    %s171 = sphi 0, %s171
    %s173 = sphi 0, %s171
    %s174 = sphi 0, %s173
    %s188 = sphi 0, %s174
    %s192 = sphi 0, %s192
    %s194 = sphi 0, %s192
    %s195 = sphi 0, %s194
    %s209 = sphi 0, %s195
    %s213 = sphi 0, %s213
    %s215 = sphi 0, %s213
    %s216 = sphi 0, %s215
    %s230 = sphi 0, %s216
    %s234 = sphi 0, %s234
    %s236 = sphi 0, %s234
    %s237 = sphi 0, %s236
    %s251 = sphi 0, %s237
    %s255 = sphi 0, %s255
    %s257 = sphi 0, %s255
    %s258 = sphi 0, %s257
    %s272 = sphi 0, %s258
    %s276 = sphi 0, %s276
    %s278 = sphi 0, %s276
    %s279 = sphi 0, %s278
    %s293 = sphi 0, %s279
    %s297 = sphi 0, %s297
    %s299 = sphi 0, %s297
    %s300 = sphi 0, %s299
    %s314 = sphi 0, %s300
    %s318 = sphi 0, %s318
    %s320 = sphi 0, %s318
    %s321 = sphi 0, %s320
    %s335 = sphi 0, %s321
    %s339 = sphi 0, %s339
    %s341 = sphi 0, %s339
    %s342 = sphi 0, %s341
    %s356 = sphi 0, %s342
    %s360 = sphi 0, %s360
    %s362 = sphi 0, %s360
    %s363 = sphi 0, %s362
    %s377 = sphi 0, %s363
    %s381 = sphi 0, %s381
    %s383 = sphi 0, %s381
    %s384 = sphi 0, %s383
    %s398 = sphi 0, %s384
    %s404 = sphi 0, %s406
    %s407 = sphi 0, %s404
    %s408 = sphi 0, %s407
    %s424 = sphi 0, %s408
  $region4: #{seq2seq_forward.7} parent=0 // loop_header_branch
    %35 = sbr.rel (%p33) target = $region8
  $region5: #{seq2seq_forward.7} parent=0 // loop_body
    %s37 = ssub.s32 %s32, 1
    %s38 = ssub.s32 %s32, 2
    %s39 = sadd.s32 %s32, 1
    %s40 = ssub.s32 %s32, %s39
    %p41 = scmp.eq.s32.totalorder %s40, 0
    %s43 = sadd.s32 %s42, 1
    %s44 = scalar_select %p41, %s42, %s43
    %p47 = pneg %p41
    %p48 = scmp.eq.s32.totalorder %s32, 4
    %p49 = por %p47, %p48
    %p50 = scmp.ne.s32.totalorder %s42, %s45
    %p51 = scmp.eq.s32.totalorder %s32, 0
    %p52 = por %p50, %p51
    %p53 = scmp.ne.s32.totalorder %s42, %s45
    %p54 = scmp.eq.s32.totalorder %s37, 4
    %p55 = por %p53, %p54
    %p56 = scmp.ne.s32.totalorder %s45, %s46
    %p57 = scmp.eq.s32.totalorder %s37, 0
    %p58 = por %p56, %p57
    %p59 = scmp.ne.s32.totalorder %s45, %s46
    %p60 = scmp.eq.s32.totalorder %s38, 4
    %p61 = por %p59, %p60
    %p63 = scmp.ne.s32.totalorder %s46, %s62
    %p64 = scmp.eq.s32.totalorder %s38, 0
    %p65 = por %p63, %p64
    %s67 = sadd.s32 %s66, 1
    %p70 = scmp.eq.s32.totalorder %s32, 4
    %p71 = scmp.ne.s32.totalorder %s66, %s68
    %p72 = scmp.eq.s32.totalorder %s32, 0
    %p73 = por %p71, %p72
    %p74 = scmp.ne.s32.totalorder %s66, %s68
    %p75 = scmp.eq.s32.totalorder %s37, 4
    %p76 = por %p74, %p75
    %p77 = scmp.ne.s32.totalorder %s68, %s69
    %p78 = scmp.eq.s32.totalorder %s37, 0
    %p79 = por %p77, %p78
    %p80 = scmp.ne.s32.totalorder %s68, %s69
    %p81 = scmp.eq.s32.totalorder %s38, 4
    %p82 = por %p80, %p81
    %p84 = scmp.ne.s32.totalorder %s69, %s83
    %p85 = scmp.eq.s32.totalorder %s38, 0
    %p86 = por %p84, %p85
    %s88 = sadd.s32 %s87, 1
    %p91 = scmp.eq.s32.totalorder %s32, 4
    %p92 = scmp.ne.s32.totalorder %s87, %s89
    %p93 = scmp.eq.s32.totalorder %s32, 0
    %p94 = por %p92, %p93
    %p95 = scmp.ne.s32.totalorder %s87, %s89
    %p96 = scmp.eq.s32.totalorder %s37, 4
    %p97 = por %p95, %p96
    %p98 = scmp.ne.s32.totalorder %s89, %s90
    %p99 = scmp.eq.s32.totalorder %s37, 0
    %p100 = por %p98, %p99
    %p101 = scmp.ne.s32.totalorder %s89, %s90
    %p102 = scmp.eq.s32.totalorder %s38, 4
    %p103 = por %p101, %p102
    %p105 = scmp.ne.s32.totalorder %s90, %s104
    %p106 = scmp.eq.s32.totalorder %s38, 0
    %p107 = por %p105, %p106
    %s109 = sadd.s32 %s108, 1
    %p112 = scmp.eq.s32.totalorder %s32, 4
    %p113 = scmp.ne.s32.totalorder %s108, %s110
    %p114 = scmp.eq.s32.totalorder %s32, 0
    %p115 = por %p113, %p114
    %p116 = scmp.ne.s32.totalorder %s108, %s110
    %p117 = scmp.eq.s32.totalorder %s37, 4
    %p118 = por %p116, %p117
    %p119 = scmp.ne.s32.totalorder %s110, %s111
    %p120 = scmp.eq.s32.totalorder %s37, 0
    %p121 = por %p119, %p120
    %p122 = scmp.ne.s32.totalorder %s110, %s111
    %p123 = scmp.eq.s32.totalorder %s38, 4
    %p124 = por %p122, %p123
    %p126 = scmp.ne.s32.totalorder %s111, %s125
    %p127 = scmp.eq.s32.totalorder %s38, 0
    %p128 = por %p126, %p127
    %s130 = sadd.s32 %s129, 1
    %p133 = scmp.eq.s32.totalorder %s32, 4
    %p134 = scmp.ne.s32.totalorder %s129, %s131
    %p135 = scmp.eq.s32.totalorder %s32, 0
    %p136 = por %p134, %p135
    %p137 = scmp.ne.s32.totalorder %s129, %s131
    %p138 = scmp.eq.s32.totalorder %s37, 4
    %p139 = por %p137, %p138
    %p140 = scmp.ne.s32.totalorder %s131, %s132
    %p141 = scmp.eq.s32.totalorder %s37, 0
    %p142 = por %p140, %p141
    %p143 = scmp.ne.s32.totalorder %s131, %s132
    %p144 = scmp.eq.s32.totalorder %s38, 4
    %p145 = por %p143, %p144
    %p147 = scmp.ne.s32.totalorder %s132, %s146
    %p148 = scmp.eq.s32.totalorder %s38, 0
    %p149 = por %p147, %p148
    %s151 = sadd.s32 %s150, 1
    %p154 = scmp.eq.s32.totalorder %s32, 4
    %p155 = scmp.ne.s32.totalorder %s150, %s152
    %p156 = scmp.eq.s32.totalorder %s32, 0
    %p157 = por %p155, %p156
    %p158 = scmp.ne.s32.totalorder %s150, %s152
    %p159 = scmp.eq.s32.totalorder %s37, 4
    %p160 = por %p158, %p159
    %p161 = scmp.ne.s32.totalorder %s152, %s153
    %p162 = scmp.eq.s32.totalorder %s37, 0
    %p163 = por %p161, %p162
    %p164 = scmp.ne.s32.totalorder %s152, %s153
    %p165 = scmp.eq.s32.totalorder %s38, 4
    %p166 = por %p164, %p165
    %p168 = scmp.ne.s32.totalorder %s153, %s167
    %p169 = scmp.eq.s32.totalorder %s38, 0
    %p170 = por %p168, %p169
    %s172 = sadd.s32 %s171, 1
    %p175 = scmp.eq.s32.totalorder %s32, 4
    %p176 = scmp.ne.s32.totalorder %s171, %s173
    %p177 = scmp.eq.s32.totalorder %s32, 0
    %p178 = por %p176, %p177
    %p179 = scmp.ne.s32.totalorder %s171, %s173
    %p180 = scmp.eq.s32.totalorder %s37, 4
    %p181 = por %p179, %p180
    %p182 = scmp.ne.s32.totalorder %s173, %s174
    %p183 = scmp.eq.s32.totalorder %s37, 0
    %p184 = por %p182, %p183
    %p185 = scmp.ne.s32.totalorder %s173, %s174
    %p186 = scmp.eq.s32.totalorder %s38, 4
    %p187 = por %p185, %p186
    %p189 = scmp.ne.s32.totalorder %s174, %s188
    %p190 = scmp.eq.s32.totalorder %s38, 0
    %p191 = por %p189, %p190
    %s193 = sadd.s32 %s192, 1
    %p196 = scmp.eq.s32.totalorder %s32, 4
    %p197 = scmp.ne.s32.totalorder %s192, %s194
    %p198 = scmp.eq.s32.totalorder %s32, 0
    %p199 = por %p197, %p198
    %p200 = scmp.ne.s32.totalorder %s192, %s194
    %p201 = scmp.eq.s32.totalorder %s37, 4
    %p202 = por %p200, %p201
    %p203 = scmp.ne.s32.totalorder %s194, %s195
    %p204 = scmp.eq.s32.totalorder %s37, 0
    %p205 = por %p203, %p204
    %p206 = scmp.ne.s32.totalorder %s194, %s195
    %p207 = scmp.eq.s32.totalorder %s38, 4
    %p208 = por %p206, %p207
    %p210 = scmp.ne.s32.totalorder %s195, %s209
    %p211 = scmp.eq.s32.totalorder %s38, 0
    %p212 = por %p210, %p211
    %s214 = sadd.s32 %s213, 1
    %p217 = scmp.eq.s32.totalorder %s32, 4
    %p218 = scmp.ne.s32.totalorder %s213, %s215
    %p219 = scmp.eq.s32.totalorder %s32, 0
    %p220 = por %p218, %p219
    %p221 = scmp.ne.s32.totalorder %s213, %s215
    %p222 = scmp.eq.s32.totalorder %s37, 4
    %p223 = por %p221, %p222
    %p224 = scmp.ne.s32.totalorder %s215, %s216
    %p225 = scmp.eq.s32.totalorder %s37, 0
    %p226 = por %p224, %p225
    %p227 = scmp.ne.s32.totalorder %s215, %s216
    %p228 = scmp.eq.s32.totalorder %s38, 4
    %p229 = por %p227, %p228
    %p231 = scmp.ne.s32.totalorder %s216, %s230
    %p232 = scmp.eq.s32.totalorder %s38, 0
    %p233 = por %p231, %p232
    %s235 = sadd.s32 %s234, 1
    %p238 = scmp.eq.s32.totalorder %s32, 4
    %p239 = scmp.ne.s32.totalorder %s234, %s236
    %p240 = scmp.eq.s32.totalorder %s32, 0
    %p241 = por %p239, %p240
    %p242 = scmp.ne.s32.totalorder %s234, %s236
    %p243 = scmp.eq.s32.totalorder %s37, 4
    %p244 = por %p242, %p243
    %p245 = scmp.ne.s32.totalorder %s236, %s237
    %p246 = scmp.eq.s32.totalorder %s37, 0
    %p247 = por %p245, %p246
    %p248 = scmp.ne.s32.totalorder %s236, %s237
    %p249 = scmp.eq.s32.totalorder %s38, 4
    %p250 = por %p248, %p249
    %p252 = scmp.ne.s32.totalorder %s237, %s251
    %p253 = scmp.eq.s32.totalorder %s38, 0
    %p254 = por %p252, %p253
    %s256 = sadd.s32 %s255, 1
    %p259 = scmp.eq.s32.totalorder %s32, 4
    %p260 = scmp.ne.s32.totalorder %s255, %s257
    %p261 = scmp.eq.s32.totalorder %s32, 0
    %p262 = por %p260, %p261
    %p263 = scmp.ne.s32.totalorder %s255, %s257
    %p264 = scmp.eq.s32.totalorder %s37, 4
    %p265 = por %p263, %p264
    %p266 = scmp.ne.s32.totalorder %s257, %s258
    %p267 = scmp.eq.s32.totalorder %s37, 0
    %p268 = por %p266, %p267
    %p269 = scmp.ne.s32.totalorder %s257, %s258
    %p270 = scmp.eq.s32.totalorder %s38, 4
    %p271 = por %p269, %p270
    %p273 = scmp.ne.s32.totalorder %s258, %s272
    %p274 = scmp.eq.s32.totalorder %s38, 0
    %p275 = por %p273, %p274
    %s277 = sadd.s32 %s276, 1
    %p280 = scmp.eq.s32.totalorder %s32, 4
    %p281 = scmp.ne.s32.totalorder %s276, %s278
    %p282 = scmp.eq.s32.totalorder %s32, 0
    %p283 = por %p281, %p282
    %p284 = scmp.ne.s32.totalorder %s276, %s278
    %p285 = scmp.eq.s32.totalorder %s37, 4
    %p286 = por %p284, %p285
    %p287 = scmp.ne.s32.totalorder %s278, %s279
    %p288 = scmp.eq.s32.totalorder %s37, 0
    %p289 = por %p287, %p288
    %p290 = scmp.ne.s32.totalorder %s278, %s279
    %p291 = scmp.eq.s32.totalorder %s38, 4
    %p292 = por %p290, %p291
    %p294 = scmp.ne.s32.totalorder %s279, %s293
    %p295 = scmp.eq.s32.totalorder %s38, 0
    %p296 = por %p294, %p295
    %s298 = sadd.s32 %s297, 1
    %p301 = scmp.eq.s32.totalorder %s32, 4
    %p302 = scmp.ne.s32.totalorder %s297, %s299
    %p303 = scmp.eq.s32.totalorder %s32, 0
    %p304 = por %p302, %p303
    %p305 = scmp.ne.s32.totalorder %s297, %s299
    %p306 = scmp.eq.s32.totalorder %s37, 4
    %p307 = por %p305, %p306
    %p308 = scmp.ne.s32.totalorder %s299, %s300
    %p309 = scmp.eq.s32.totalorder %s37, 0
    %p310 = por %p308, %p309
    %p311 = scmp.ne.s32.totalorder %s299, %s300
    %p312 = scmp.eq.s32.totalorder %s38, 4
    %p313 = por %p311, %p312
    %p315 = scmp.ne.s32.totalorder %s300, %s314
    %p316 = scmp.eq.s32.totalorder %s38, 0
    %p317 = por %p315, %p316
    %s319 = sadd.s32 %s318, 1
    %p322 = scmp.eq.s32.totalorder %s32, 4
    %p323 = scmp.ne.s32.totalorder %s318, %s320
    %p324 = scmp.eq.s32.totalorder %s32, 0
    %p325 = por %p323, %p324
    %p326 = scmp.ne.s32.totalorder %s318, %s320
    %p327 = scmp.eq.s32.totalorder %s37, 4
    %p328 = por %p326, %p327
    %p329 = scmp.ne.s32.totalorder %s320, %s321
    %p330 = scmp.eq.s32.totalorder %s37, 0
    %p331 = por %p329, %p330
    %p332 = scmp.ne.s32.totalorder %s320, %s321
    %p333 = scmp.eq.s32.totalorder %s38, 4
    %p334 = por %p332, %p333
    %p336 = scmp.ne.s32.totalorder %s321, %s335
    %p337 = scmp.eq.s32.totalorder %s38, 0
    %p338 = por %p336, %p337
    %s340 = sadd.s32 %s339, 1
    %p343 = scmp.eq.s32.totalorder %s32, 4
    %p344 = scmp.ne.s32.totalorder %s339, %s341
    %p345 = scmp.eq.s32.totalorder %s32, 0
    %p346 = por %p344, %p345
    %p347 = scmp.ne.s32.totalorder %s339, %s341
    %p348 = scmp.eq.s32.totalorder %s37, 4
    %p349 = por %p347, %p348
    %p350 = scmp.ne.s32.totalorder %s341, %s342
    %p351 = scmp.eq.s32.totalorder %s37, 0
    %p352 = por %p350, %p351
    %p353 = scmp.ne.s32.totalorder %s341, %s342
    %p354 = scmp.eq.s32.totalorder %s38, 4
    %p355 = por %p353, %p354
    %p357 = scmp.ne.s32.totalorder %s342, %s356
    %p358 = scmp.eq.s32.totalorder %s38, 0
    %p359 = por %p357, %p358
    %s361 = sadd.s32 %s360, 1
    %p364 = scmp.eq.s32.totalorder %s32, 4
    %p365 = scmp.ne.s32.totalorder %s360, %s362
    %p366 = scmp.eq.s32.totalorder %s32, 0
    %p367 = por %p365, %p366
    %p368 = scmp.ne.s32.totalorder %s360, %s362
    %p369 = scmp.eq.s32.totalorder %s37, 4
    %p370 = por %p368, %p369
    %p371 = scmp.ne.s32.totalorder %s362, %s363
    %p372 = scmp.eq.s32.totalorder %s37, 0
    %p373 = por %p371, %p372
    %p374 = scmp.ne.s32.totalorder %s362, %s363
    %p375 = scmp.eq.s32.totalorder %s38, 4
    %p376 = por %p374, %p375
    %p378 = scmp.ne.s32.totalorder %s363, %s377
    %p379 = scmp.eq.s32.totalorder %s38, 0
    %p380 = por %p378, %p379
    %s382 = sadd.s32 %s381, 1
    %p385 = scmp.eq.s32.totalorder %s32, 4
    %p386 = scmp.ne.s32.totalorder %s381, %s383
    %p387 = scmp.eq.s32.totalorder %s32, 0
    %p388 = por %p386, %p387
    %p389 = scmp.ne.s32.totalorder %s381, %s383
    %p390 = scmp.eq.s32.totalorder %s37, 4
    %p391 = por %p389, %p390
    %p392 = scmp.ne.s32.totalorder %s383, %s384
    %p393 = scmp.eq.s32.totalorder %s37, 0
    %p394 = por %p392, %p393
    %p395 = scmp.ne.s32.totalorder %s383, %s384
    %p396 = scmp.eq.s32.totalorder %s38, 4
    %p397 = por %p395, %p396
    %p399 = scmp.ne.s32.totalorder %s384, %s398
    %p400 = scmp.eq.s32.totalorder %s38, 0
    %p401 = por %p399, %p400
    %s402 = ssub.s32 %s32, %s39
    %p403 = scmp.eq.s32.totalorder %s402, 0
    %s405 = sadd.s32 %s404, 1
    %s406 = scalar_select %p403, %s404, %s405
    %p409 = pneg %p403
    %p410 = scmp.eq.s32.totalorder %s32, 4
    %p411 = por %p409, %p410
    %p412 = scmp.ne.s32.totalorder %s404, %s407
    %p413 = scmp.eq.s32.totalorder %s32, 0
    %p414 = por %p412, %p413
    %p415 = scmp.ne.s32.totalorder %s404, %s407
    %p416 = scmp.eq.s32.totalorder %s37, 4
    %p417 = por %p415, %p416
    %p418 = scmp.ne.s32.totalorder %s407, %s408
    %p419 = scmp.eq.s32.totalorder %s37, 0
    %p420 = por %p418, %p419
    %p421 = scmp.ne.s32.totalorder %s407, %s408
    %p422 = scmp.eq.s32.totalorder %s38, 4
    %p423 = por %p421, %p422
    %p425 = scmp.ne.s32.totalorder %s408, %s424
    %p426 = scmp.eq.s32.totalorder %s38, 0
    %p427 = por %p425, %p426
    %p428 = scmp.le.s32.totalorder 1, %s32
    %p429 = scmp.lt.s32.totalorder %s32, 6
    %p430 = pnand %p428, %p429
    %p431 = pneg %p430
    // Predicated region
    $region9: #{seq2seq_forward.7} parent=5 // pred_check
      _
    $region10: #{seq2seq_forward.7} parent=5 // pred_check_branch
      %433 = sbr.rel (%p430) target = $region12
    $region11: #{seq2seq_forward.7} parent=5 // pred_region
      %s434 = ssub.s32 %s32, 1
      // Predicated region
      $region13: #{seq2seq_forward.7} parent=11 // pred_check
        %p435 = pneg %p79
      $region14: #{seq2seq_forward.7} parent=11 // pred_check_branch
        %437 = sbr.rel (%p435) target = $region16
      $region15: #{seq2seq_forward.7} parent=11 // pred_region
        _
      $region16: #{seq2seq_forward.7} parent=11 // pred_fallthru
        _
      // Predicated region
      $region17: #{seq2seq_forward.7} parent=11 // pred_check
        %p438 = pneg %p100
      $region18: #{seq2seq_forward.7} parent=11 // pred_check_branch
        %440 = sbr.rel (%p438) target = $region20
      $region19: #{seq2seq_forward.7} parent=11 // pred_region
        _
      $region20: #{seq2seq_forward.7} parent=11 // pred_fallthru
        _
      // Predicated region
      $region21: #{seq2seq_forward.7} parent=11 // pred_check
        %p441 = pneg %p121
      $region22: #{seq2seq_forward.7} parent=11 // pred_check_branch
        %443 = sbr.rel (%p441) target = $region24
      $region23: #{seq2seq_forward.7} parent=11 // pred_region
        _
      $region24: #{seq2seq_forward.7} parent=11 // pred_fallthru
        _
      // Predicated region
      $region25: #{seq2seq_forward.7} parent=11 // pred_check
        %p444 = pneg %p142
      $region26: #{seq2seq_forward.7} parent=11 // pred_check_branch
        %446 = sbr.rel (%p444) target = $region28
      $region27: #{seq2seq_forward.7} parent=11 // pred_region
        _
      $region28: #{seq2seq_forward.7} parent=11 // pred_fallthru
        _
      // Predicated region
      $region29: #{seq2seq_forward.7} parent=11 // pred_check
        %p447 = pneg %p163
      $region30: #{seq2seq_forward.7} parent=11 // pred_check_branch
        %449 = sbr.rel (%p447) target = $region32
      $region31: #{seq2seq_forward.7} parent=11 // pred_region
        _
      $region32: #{seq2seq_forward.7} parent=11 // pred_fallthru
        _
      // Predicated region
      $region33: #{seq2seq_forward.7} parent=11 // pred_check
        %p450 = pneg %p184
      $region34: #{seq2seq_forward.7} parent=11 // pred_check_branch
        %452 = sbr.rel (%p450) target = $region36
      $region35: #{seq2seq_forward.7} parent=11 // pred_region
        _
      $region36: #{seq2seq_forward.7} parent=11 // pred_fallthru
        _
      // Predicated region
      $region37: #{seq2seq_forward.7} parent=11 // pred_check
        %p453 = pneg %p205
      $region38: #{seq2seq_forward.7} parent=11 // pred_check_branch
        %455 = sbr.rel (%p453) target = $region40
      $region39: #{seq2seq_forward.7} parent=11 // pred_region
        _
      $region40: #{seq2seq_forward.7} parent=11 // pred_fallthru
        _
      // Predicated region
      $region41: #{seq2seq_forward.7} parent=11 // pred_check
        %p456 = pneg %p226
      $region42: #{seq2seq_forward.7} parent=11 // pred_check_branch
        %458 = sbr.rel (%p456) target = $region44
      $region43: #{seq2seq_forward.7} parent=11 // pred_region
        _
      $region44: #{seq2seq_forward.7} parent=11 // pred_fallthru
        _
      // Predicated region
      $region45: #{seq2seq_forward.7} parent=11 // pred_check
        %p459 = pneg %p247
      $region46: #{seq2seq_forward.7} parent=11 // pred_check_branch
        %461 = sbr.rel (%p459) target = $region48
      $region47: #{seq2seq_forward.7} parent=11 // pred_region
        _
      $region48: #{seq2seq_forward.7} parent=11 // pred_fallthru
        _
      // Predicated region
      $region49: #{seq2seq_forward.7} parent=11 // pred_check
        %p462 = pneg %p268
      $region50: #{seq2seq_forward.7} parent=11 // pred_check_branch
        %464 = sbr.rel (%p462) target = $region52
      $region51: #{seq2seq_forward.7} parent=11 // pred_region
        _
      $region52: #{seq2seq_forward.7} parent=11 // pred_fallthru
        _
      // Predicated region
      $region53: #{seq2seq_forward.7} parent=11 // pred_check
        %p465 = pneg %p289
      $region54: #{seq2seq_forward.7} parent=11 // pred_check_branch
        %467 = sbr.rel (%p465) target = $region56
      $region55: #{seq2seq_forward.7} parent=11 // pred_region
        _
      $region56: #{seq2seq_forward.7} parent=11 // pred_fallthru
        _
      // Predicated region
      $region57: #{seq2seq_forward.7} parent=11 // pred_check
        %p468 = pneg %p310
      $region58: #{seq2seq_forward.7} parent=11 // pred_check_branch
        %470 = sbr.rel (%p468) target = $region60
      $region59: #{seq2seq_forward.7} parent=11 // pred_region
        _
      $region60: #{seq2seq_forward.7} parent=11 // pred_fallthru
        _
      // Predicated region
      $region61: #{seq2seq_forward.7} parent=11 // pred_check
        %p471 = pneg %p331
      $region62: #{seq2seq_forward.7} parent=11 // pred_check_branch
        %473 = sbr.rel (%p471) target = $region64
      $region63: #{seq2seq_forward.7} parent=11 // pred_region
        _
      $region64: #{seq2seq_forward.7} parent=11 // pred_fallthru
        _
      // Predicated region
      $region65: #{seq2seq_forward.7} parent=11 // pred_check
        %p474 = pneg %p352
      $region66: #{seq2seq_forward.7} parent=11 // pred_check_branch
        %476 = sbr.rel (%p474) target = $region68
      $region67: #{seq2seq_forward.7} parent=11 // pred_region
        _
      $region68: #{seq2seq_forward.7} parent=11 // pred_fallthru
        _
      // Predicated region
      $region69: #{seq2seq_forward.7} parent=11 // pred_check
        %p477 = pneg %p373
      $region70: #{seq2seq_forward.7} parent=11 // pred_check_branch
        %479 = sbr.rel (%p477) target = $region72
      $region71: #{seq2seq_forward.7} parent=11 // pred_region
        _
      $region72: #{seq2seq_forward.7} parent=11 // pred_fallthru
        _
      // Predicated region
      $region73: #{seq2seq_forward.7} parent=11 // pred_check
        %p480 = pneg %p394
      $region74: #{seq2seq_forward.7} parent=11 // pred_check_branch
        %482 = sbr.rel (%p480) target = $region76
      $region75: #{seq2seq_forward.7} parent=11 // pred_region
        _
      $region76: #{seq2seq_forward.7} parent=11 // pred_fallthru
        _
    $region12: #{seq2seq_forward.7} parent=5 // pred_fallthru
      _
    %p483 = scmp.lt.s32.totalorder %s32, 5
    // Predicated region
    $region77: #{seq2seq_forward.7} parent=5 // pred_check
      %p484 = pneg %p483
    $region78: #{seq2seq_forward.7} parent=5 // pred_check_branch
      %486 = sbr.rel (%p484) target = $region80
    $region79: #{seq2seq_forward.7} parent=5 // pred_region
      // Predicated region
      $region81: #{seq2seq_forward.7} parent=79 // pred_check
        %p487 = pneg %p52
      $region82: #{seq2seq_forward.7} parent=79 // pred_check_branch
        %489 = sbr.rel (%p487) target = $region84
      $region83: #{seq2seq_forward.7} parent=79 // pred_region
        %p490 = scmp.lt.s32.totalorder %s32, 4
        %s491 = scalar_select %p490, %s32, 4
        %s492 = smul.addr %s491, 2
        %s493 = scalar_lea.vmem %s1, %s492
      $region84: #{seq2seq_forward.7} parent=79 // pred_fallthru
        _
    $region80: #{seq2seq_forward.7} parent=5 // pred_fallthru
      _
    %p494 = scmp.le.s32.totalorder 1, %s32
    %p495 = scmp.lt.s32.totalorder %s32, 6
    %p496 = pnand %p494, %p495
    %p497 = pneg %p496
    // Predicated region
    $region85: #{seq2seq_forward.7} parent=5 // pred_check
      _
    $region86: #{seq2seq_forward.7} parent=5 // pred_check_branch
      %499 = sbr.rel (%p496) target = $region88
    $region87: #{seq2seq_forward.7} parent=5 // pred_region
      %s500 = ssub.s32 %s32, 1
      %p501 = scmp.lt.s32.totalorder %s37, 4
      %s502 = scalar_select %p501, %s37, 4
      %s503 = smul.addr %s502, 2
      %s504 = scalar_lea.vmem %s1, %s503
      %p505 = pneg %p58
      %p506 = pneg %p55
      %p507 = pneg %p79
      %p508 = pneg %p76
      %p509 = pneg %p100
      %p510 = pneg %p97
      %p511 = pneg %p121
      %p512 = pneg %p118
      %p513 = pneg %p142
      %p514 = pneg %p139
      %p515 = pneg %p163
      %p516 = pneg %p160
      %p517 = pneg %p184
      %p518 = pneg %p181
      %p519 = pneg %p205
      %p520 = pneg %p202
      %p521 = pneg %p226
      %p522 = pneg %p223
      %p523 = pneg %p247
      %p524 = pneg %p244
      %p525 = pneg %p268
      %p526 = pneg %p265
      %p527 = pneg %p289
      %p528 = pneg %p286
      %p529 = pneg %p310
      %p530 = pneg %p307
      %p531 = pneg %p331
      %p532 = pneg %p328
      %p533 = pneg %p352
      %p534 = pneg %p349
      %p535 = pneg %p373
      %p536 = pneg %p370
      %p537 = pneg %p394
      %p538 = pneg %p391
      %p539 = pneg %p420
      %p540 = pneg %p417
      %p541 = scmp.lt.s32.totalorder %s37, 4
      %s542 = scalar_select %p541, %s37, 4
      %s543 = smul.addr %s542, 2
      %s544 = scalar_lea.vmem %s18, %s543
      %p545 = scmp.lt.s32.totalorder %s37, 4
      %s546 = scalar_select %p545, %s37, 4
      %s547 = smul.addr %s546, 2
      %s548 = scalar_lea.vmem %s1, %s547
      %p549 = scmp.lt.s32.totalorder %s37, 4
      %s550 = scalar_select %p549, %s37, 4
      %s551 = smul.addr %s550, 2
      %s552 = scalar_lea.vmem %s18, %s551
      %p553 = scmp.eq.s32.totalorder %s37, 0
      // Predicated region
      $region89: #{seq2seq_forward.7} parent=87 // pred_check
        %p554 = pneg %p553
      $region90: #{seq2seq_forward.7} parent=87 // pred_check_branch
        %556 = sbr.rel (%p554) target = $region92
      $region91: #{seq2seq_forward.7} parent=87 // pred_region
        %v557 = vld [vmem:[%s2] sm:$0x3]
        %v558 = vld [vmem:[%s2 + $0x2] sm:$0x3]
        %vm559 = vcmask 254976
        %560 = vst.msk [vmem:[#allocation2] sm:$0x3] %vm559, %v557
        %561 = vst.msk [vmem:[#allocation2 + $0x2] sm:$0x3] %vm559, %v558
        %v562 = vld [vmem:[%s3] sm:$0x3]
        %v563 = vld [vmem:[%s3 + $0x2] sm:$0x3]
        %564 = vst.msk [vmem:[#allocation3] sm:$0x3] %vm559, %v562
        %565 = vst.msk [vmem:[#allocation3 + $0x2] sm:$0x3] %vm559, %v563
        %vm566 = vcmask 25600
        %567 = vst.msk [vmem:[#allocation4] sm:$0x3] %vm566, 0.0
      $region92: #{seq2seq_forward.7} parent=87 // pred_fallthru
        _
      %v568 = vld [vmem:[#allocation4] sm:$0x3]
      %v569 = vld [vmem:[#allocation2] sm:$0x3]
      %v570 = vld [vmem:[#allocation3] sm:$0x3]
      %v571 = vld [vmem:[%s4] sm:$0xf]
      %v572 = vld [vmem:[%s5] sm:$0xff]
      %v573 = vld [vmem:[%s5 + $0x8] sm:$0xff]
      %v574 = vld [vmem:[%s5 + $0x10] sm:$0xff]
      %v575 = vld [vmem:[%s5 + $0x18] sm:$0xff]
      %vm576 = vcmask 261120
      %v578 = vsel %vm576, %v569, 0
      %580 = vmatpush.msra.mxu0 0.0
      %581 = vmatpush.msra.mxu0 0.0
      %582 = vmatpush.msra.mxu0 0.0
      %583 = vmatpush.msra.mxu0 0.0
      %584 = vmatpush.msra.mxu0 0.0
      %585 = vmatpush.msra.mxu0 0.0
      %586 = vmatpush.msra.mxu0 0.0
      %587 = vmatpush.msra.mxu0 0.0
      %588 = vmatpush.msra.mxu0 0.0
      %589 = vmatpush.msra.mxu0 0.0
      %590 = vmatpush.msra.mxu0 0.0
      %591 = vmatpush.msra.mxu0 0.0
      %592 = vmatpush.msra.mxu0 %v575
      %593 = vmatpush.msra.mxu0 %v574
      %594 = vmatpush.msra.mxu0 %v573
      %595 = vmatpush.msra.mxu0 %v572
      %596 = vmatmul.f32.gmra.mxu0 %v578
      %v597 = vpop.f32.mrf.mxu0
      %v598 = vadd.f32 0.0, %v597
      %599 = vdwg.mxu0
      %vm600 = vcmask 31744
      %v602 = vsel %vm600, %v568, 0
      %vm604 = vcmask 1043456
      %v606 = vsel %vm604, %v571, 0
      %608 = vmatpush.msra.mxu0 0.0
      %609 = vmatpush.msra.mxu0 0.0
      %610 = vmatpush.msra.mxu0 0.0
      %611 = vmatpush.msra.mxu0 0.0
      %612 = vmatpush.msra.mxu0 0.0
      %613 = vmatpush.msra.mxu0 0.0
      %614 = vmatpush.msra.mxu0 0.0
      %615 = vmatpush.msra.mxu0 0.0
      %616 = vmatpush.msra.mxu0 0.0
      %617 = vmatpush.msra.mxu0 0.0
      %618 = vmatpush.msra.mxu0 0.0
      %619 = vmatpush.msra.mxu0 0.0
      %620 = vmatpush.msra.mxu0 0.0
      %621 = vmatpush.msra.mxu0 0.0
      %622 = vmatpush.msra.mxu0 0.0
      %623 = vmatpush.msra.mxu0 %v606
      %624 = vmatmul.f32.gmra.mxu0 %v602
      %v625 = vpop.f32.mrf.mxu0
      %v626 = vadd.f32 %v598, %v625
      %627 = vdwg.mxu0
      %v628 = vld [vmem:[%s6] sm:$0x1]
      %v630 = vperm.slane %v628, 0
      %v632 = vadd.f32 %v626, %v630
      %v633 = vxor.u32 %v632, 2147483648
      %v634 = vmul.f32 %v633, 1.442695
      %v635 = vpow.pop %v634
      %v636 = vadd.f32 %v635, 1.0
      %v637 = vrcp.pop %v636
      %v638 = vmul.f32 %v636, %v637
      %v639 = vsub.f32 1.0, %v638
      %v640 = vmul.f32 %v637, %v639
      %v641 = vadd.f32 %v637, %v640
      %vm642 = vweird.f32 %v636
      %vm643 = vweird.f32 %v637
      %vm644 = vmor %vm642, %vm643
      %v645 = vsel %vm644, %v637, %v641
      %v646 = vand.u32 2147483647, %v636
      %vm647 = vcmp.eq.f32.partialorder %v646, 8.507059e+37
      %v648 = vand.u32 %v636, 2147483648
      %v649 = vor.u32 1.1754944e-38, %v648
      %v650 = vsel %vm647, %v649, %v645
      %v651 = vmul.f32 1.0, %v650
      %v652 = vtanh.pop %v632
      %654 = vrot.lane.b32.xlu0 %v570, 32
      %v655 = vpop.permute.xlu0 %654
      %v657 = vmul.f32 %v651, %v655
      %659 = vrot.lane.b32.xlu0 %v652, 64
      %v660 = vpop.permute.xlu0 %659
      %v662 = vmul.f32 %v651, %v660
      %664 = vrot.lane.b32.xlu0 %v662, 32
      %v665 = vpop.permute.xlu0 %664
      %v667 = vadd.f32 %v657, %v665
      %v668 = vtanh.pop %v667
      %670 = vrot.lane.b32.xlu0 %v668, 64
      %v671 = vpop.permute.xlu0 %670
      %v673 = vmul.f32 %v651, %v671
      %675 = vrot.lane.b32.xlu0 %v673, 32
      %v676 = vpop.permute.xlu0 %675
      %vm678 = vcmask 254976
      %679 = vst.msk [vmem:[#allocation2] sm:$0x3] %vm678, %v676
      %681 = vrot.lane.b32.xlu0 %v667, 96
      %v682 = vpop.permute.xlu0 %681
      %684 = vst.msk [vmem:[#allocation3] sm:$0x3] %vm678, %v682
      %v685 = vsel %vm678, %v676, 0.0
      %686 = vadd.xlane.f32.xlu0 %v685
      %v687 = vpop.xlane.xlu0 %686
      %v688 = vrcp.pop 32.0
      %v689 = vmul.f32 32.0, %v688
      %v690 = vsub.f32 1.0, %v689
      %v691 = vmul.f32 %v688, %v690
      %v692 = vadd.f32 %v688, %v691
      %vm693 = vweird.f32 %v688
      %v694 = vsel %vm693, %v688, %v692
      %v695 = vmul.f32 %v687, %v694
      %v696 = vsub.f32 %v673, %v695
      %v697 = vmul.f32 %v696, %v696
      %699 = vrot.lane.b32.xlu0 %v697, 32
      %v700 = vpop.permute.xlu0 %699
      %v702 = vsel %vm678, %v700, 0.0
      %703 = vadd.xlane.f32.xlu0 %v702
      %v704 = vpop.xlane.xlu0 %703
      %v705 = vmul.f32 %v704, %v694
      %v706 = vadd.f32 %v705, 1e-05
      %v707 = vrsqrt.pop %v706
      %v708 = vmul.f32 %v707, %v706
      %v709 = vmul.f32 %v708, %v707
      %v710 = vmul.f32 0.5, %v709
      %v711 = vsub.f32 1.5, %v710
      %v712 = vmul.f32 %v707, %v711
      %vm713 = vweird.f32 %v706
      %vm714 = vweird.f32 %v707
      %vm715 = vmor %vm713, %vm714
      %v716 = vsel %vm715, %v707, %v712
      %v717 = vmul.f32 %v696, %v716
      %v718 = vld [vmem:[%s7] sm:$0x1]
      %v720 = vperm.slane %v718, 0
      %721 = vrot.lane.b32.xlu0 %v720, 96
      %v722 = vpop.permute.xlu0 %721
      %v724 = vmul.f32 %v717, %v722
      %v725 = vld [vmem:[%s8] sm:$0x1]
      %v727 = vperm.slane %v725, 0
      %728 = vrot.lane.b32.xlu0 %v727, 96
      %v729 = vpop.permute.xlu0 %728
      %v731 = vadd.f32 %v724, %v729
      %v732 = vld [vmem:[%s9] sm:$0xf]
      %v733 = vld [vmem:[%s10] sm:$0x1]
      %v735 = vperm.slane %v733, 0
      %v738 = vsel %vm604, %v732, 0
      %740 = vmatpush.msra.mxu0 0.0
      %741 = vmatpush.msra.mxu0 0.0
      %742 = vmatpush.msra.mxu0 0.0
      %743 = vmatpush.msra.mxu0 0.0
      %744 = vmatpush.msra.mxu0 0.0
      %745 = vmatpush.msra.mxu0 0.0
      %746 = vmatpush.msra.mxu0 0.0
      %747 = vmatpush.msra.mxu0 0.0
      %748 = vmatpush.msra.mxu0 0.0
      %749 = vmatpush.msra.mxu0 0.0
      %750 = vmatpush.msra.mxu0 0.0
      %751 = vmatpush.msra.mxu0 0.0
      %752 = vmatpush.msra.mxu0 0.0
      %753 = vmatpush.msra.mxu0 0.0
      %754 = vmatpush.msra.mxu0 0.0
      %755 = vmatpush.msra.mxu0 %v738
      %756 = vmatmul.f32.gmra.mxu0 %v602
      %v757 = vpop.f32.mrf.mxu0
      %v758 = vadd.f32 %v735, %v757
      %759 = vdwg.mxu0
      %761 = vrot.lane.b32.xlu0 %v758, 96
      %v762 = vpop.permute.xlu0 %761
      %v764 = vadd.f32 %v731, %v762
      %s765 = scalar_lea.vmem [#allocation2], 2
      %v766 = vld [vmem:[%s765] sm:$0x3]
      %s767 = scalar_lea.vmem [#allocation3], 2
      %v768 = vld [vmem:[%s767] sm:$0x3]
      %v769 = vld [vmem:[%s11] sm:$0xff]
      %v770 = vld [vmem:[%s11 + $0x8] sm:$0xff]
      %v771 = vld [vmem:[%s11 + $0x10] sm:$0xff]
      %v772 = vld [vmem:[%s11 + $0x18] sm:$0xff]
      %v773 = vld [vmem:[%s12] sm:$0xff]
      %v774 = vld [vmem:[%s12 + $0x8] sm:$0xff]
      %v775 = vld [vmem:[%s12 + $0x10] sm:$0xff]
      %v776 = vld [vmem:[%s12 + $0x18] sm:$0xff]
      %v778 = vsel %vm576, %v766, 0
      %780 = vmatpush.msra.mxu0 0.0
      %781 = vmatpush.msra.mxu0 0.0
      %782 = vmatpush.msra.mxu0 0.0
      %783 = vmatpush.msra.mxu0 0.0
      %784 = vmatpush.msra.mxu0 0.0
      %785 = vmatpush.msra.mxu0 0.0
      %786 = vmatpush.msra.mxu0 0.0
      %787 = vmatpush.msra.mxu0 0.0
      %788 = vmatpush.msra.mxu0 0.0
      %789 = vmatpush.msra.mxu0 0.0
      %790 = vmatpush.msra.mxu0 0.0
      %791 = vmatpush.msra.mxu0 0.0
      %792 = vmatpush.msra.mxu0 %v776
      %793 = vmatpush.msra.mxu0 %v775
      %794 = vmatpush.msra.mxu0 %v774
      %795 = vmatpush.msra.mxu0 %v773
      %796 = vmatmul.f32.gmra.mxu0 %v778
      %v797 = vpop.f32.mrf.mxu0
      %v798 = vadd.f32 0.0, %v797
      %799 = vdwg.mxu0
      %801 = vrot.lane.b32.xlu0 %v764, 32
      %v802 = vpop.permute.xlu0 %801
      %v803 = vsel %vm576, %v802, 0
      %805 = vmatpush.msra.mxu0 0.0
      %806 = vmatpush.msra.mxu0 0.0
      %807 = vmatpush.msra.mxu0 0.0
      %808 = vmatpush.msra.mxu0 0.0
      %809 = vmatpush.msra.mxu0 0.0
      %810 = vmatpush.msra.mxu0 0.0
      %811 = vmatpush.msra.mxu0 0.0
      %812 = vmatpush.msra.mxu0 0.0
      %813 = vmatpush.msra.mxu0 0.0
      %814 = vmatpush.msra.mxu0 0.0
      %815 = vmatpush.msra.mxu0 0.0
      %816 = vmatpush.msra.mxu0 0.0
      %817 = vmatpush.msra.mxu0 %v772
      %818 = vmatpush.msra.mxu0 %v771
      %819 = vmatpush.msra.mxu0 %v770
      %820 = vmatpush.msra.mxu0 %v769
      %821 = vmatmul.f32.gmra.mxu0 %v803
      %v822 = vpop.f32.mrf.mxu0
      %v823 = vadd.f32 %v798, %v822
      %824 = vdwg.mxu0
      %v825 = vld [vmem:[%s13] sm:$0x1]
      %v827 = vperm.slane %v825, 0
      %v829 = vadd.f32 %v823, %v827
      %v830 = vxor.u32 %v829, 2147483648
      %v831 = vmul.f32 %v830, 1.442695
      %v832 = vpow.pop %v831
      %v833 = vadd.f32 %v832, 1.0
      %v834 = vrcp.pop %v833
      %v835 = vmul.f32 %v833, %v834
      %v836 = vsub.f32 1.0, %v835
      %v837 = vmul.f32 %v834, %v836
      %v838 = vadd.f32 %v834, %v837
      %vm839 = vweird.f32 %v833
      %vm840 = vweird.f32 %v834
      %vm841 = vmor %vm839, %vm840
      %v842 = vsel %vm841, %v834, %v838
      %v843 = vand.u32 2147483647, %v833
      %vm844 = vcmp.eq.f32.partialorder %v843, 8.507059e+37
      %v845 = vand.u32 %v833, 2147483648
      %v846 = vor.u32 1.1754944e-38, %v845
      %v847 = vsel %vm844, %v846, %v842
      %v848 = vmul.f32 1.0, %v847
      %v849 = vtanh.pop %v829
      %851 = vrot.lane.b32.xlu0 %v768, 32
      %v852 = vpop.permute.xlu0 %851
      %v854 = vmul.f32 %v848, %v852
      %856 = vrot.lane.b32.xlu0 %v849, 64
      %v857 = vpop.permute.xlu0 %856
      %v859 = vmul.f32 %v848, %v857
      %861 = vrot.lane.b32.xlu0 %v859, 32
      %v862 = vpop.permute.xlu0 %861
      %v864 = vadd.f32 %v854, %v862
      %v865 = vtanh.pop %v864
      %867 = vrot.lane.b32.xlu0 %v865, 64
      %v868 = vpop.permute.xlu0 %867
      %v870 = vmul.f32 %v848, %v868
      %872 = vrot.lane.b32.xlu0 %v870, 32
      %v873 = vpop.permute.xlu0 %872
      %875 = vst.msk [vmem:[%s765] sm:$0x3] %vm678, %v873
      %877 = vrot.lane.b32.xlu0 %v864, 96
      %v878 = vpop.permute.xlu0 %877
      %880 = vst.msk [vmem:[%s767] sm:$0x3] %vm678, %v878
      %v881 = vsel %vm678, %v873, 0.0
      %882 = vadd.xlane.f32.xlu0 %v881
      %v883 = vpop.xlane.xlu0 %882
      %v884 = vmul.f32 %v883, %v694
      %v885 = vsub.f32 %v870, %v884
      %v886 = vmul.f32 %v885, %v885
      %888 = vrot.lane.b32.xlu0 %v886, 32
      %v889 = vpop.permute.xlu0 %888
      %v891 = vsel %vm678, %v889, 0.0
      %892 = vadd.xlane.f32.xlu0 %v891
      %v893 = vpop.xlane.xlu0 %892
      %v894 = vmul.f32 %v893, %v694
      %v895 = vadd.f32 %v894, 1e-05
      %v896 = vrsqrt.pop %v895
      %v897 = vmul.f32 %v896, %v895
      %v898 = vmul.f32 %v897, %v896
      %v899 = vmul.f32 0.5, %v898
      %v900 = vsub.f32 1.5, %v899
      %v901 = vmul.f32 %v896, %v900
      %vm902 = vweird.f32 %v895
      %vm903 = vweird.f32 %v896
      %vm904 = vmor %vm902, %vm903
      %v905 = vsel %vm904, %v896, %v901
      %v906 = vmul.f32 %v885, %v905
      %v907 = vld [vmem:[%s14] sm:$0x1]
      %v909 = vperm.slane %v907, 0
      %910 = vrot.lane.b32.xlu0 %v909, 96
      %v911 = vpop.permute.xlu0 %910
      %v913 = vmul.f32 %v906, %v911
      %v914 = vld [vmem:[%s15] sm:$0x1]
      %v916 = vperm.slane %v914, 0
      %917 = vrot.lane.b32.xlu0 %v916, 96
      %v918 = vpop.permute.xlu0 %917
      %v920 = vadd.f32 %v913, %v918
      %v921 = vadd.f32 %v920, %v764
      %v922 = vld [vmem:[%s16] sm:$0xff]
      %v923 = vld [vmem:[%s16 + $0x8] sm:$0xff]
      %v924 = vld [vmem:[%s16 + $0x10] sm:$0xff]
      %v925 = vld [vmem:[%s16 + $0x18] sm:$0xff]
      %v926 = vld [vmem:[%s17] sm:$0x1]
      %v928 = vperm.slane %v926, 0
      %931 = vrot.lane.b32.xlu0 %v921, 32
      %v932 = vpop.permute.xlu0 %931
      %v933 = vsel %vm576, %v932, 0
      %935 = vmatpush.msra.mxu0 0.0
      %936 = vmatpush.msra.mxu0 0.0
      %937 = vmatpush.msra.mxu0 0.0
      %938 = vmatpush.msra.mxu0 0.0
      %939 = vmatpush.msra.mxu0 0.0
      %940 = vmatpush.msra.mxu0 0.0
      %941 = vmatpush.msra.mxu0 0.0
      %942 = vmatpush.msra.mxu0 0.0
      %943 = vmatpush.msra.mxu0 0.0
      %944 = vmatpush.msra.mxu0 0.0
      %945 = vmatpush.msra.mxu0 0.0
      %946 = vmatpush.msra.mxu0 0.0
      %947 = vmatpush.msra.mxu0 %v925
      %948 = vmatpush.msra.mxu0 %v924
      %949 = vmatpush.msra.mxu0 %v923
      %950 = vmatpush.msra.mxu0 %v922
      %951 = vmatmul.f32.gmra.mxu0 %v933
      %v952 = vpop.f32.mrf.mxu0
      %v953 = vadd.f32 %v928, %v952
      %954 = vdwg.mxu0
      %vm955 = vcmask 25600
      %956 = vst.msk [vmem:[%s552] sm:$0x3] %vm955, %v953
      %s957 = sld [smem:[#allocation6 + %s37]]
      %p958 = scmp.eq.s32.totalorder %s957, 1
      %v959 = vld [vmem:[%s548] sm:$0x3]
      %s960 = scalar_select %p958, 1, 0
      %v961 = vstv %s960
      %vm962 = vcmp.eq.s32.totalorder %v961, 1
      %v963 = vsel %vm962, %v959, %v953
      %964 = vst.msk [vmem:[#allocation4] sm:$0x3] %vm955, %v963
      %p965 = scmp.lt.s32.totalorder %s37, 4
      %s966 = scalar_select %p965, %s37, 4
      %s967 = smul.addr %s966, 2
      %s968 = scalar_lea.vmem %s18, %s967
      // Predicated region
      $region93: #{seq2seq_forward.7} parent=87 // pred_check
        %p969 = pneg %p417
      $region94: #{seq2seq_forward.7} parent=87 // pred_check_branch
        %971 = sbr.rel (%p969) target = $region96
      $region95: #{seq2seq_forward.7} parent=87 // pred_region
        _
      $region96: #{seq2seq_forward.7} parent=87 // pred_fallthru
        _
    $region88: #{seq2seq_forward.7} parent=5 // pred_fallthru
      _
    %p972 = scmp.le.s32.totalorder 2, %s32
    // Predicated region
    $region97: #{seq2seq_forward.7} parent=5 // pred_check
      %p973 = pneg %p972
    $region98: #{seq2seq_forward.7} parent=5 // pred_check_branch
      %975 = sbr.rel (%p973) target = $region100
    $region99: #{seq2seq_forward.7} parent=5 // pred_region
      %s976 = ssub.s32 %s32, 2
      // Predicated region
      $region101: #{seq2seq_forward.7} parent=99 // pred_check
        %p977 = pneg %p423
      $region102: #{seq2seq_forward.7} parent=99 // pred_check_branch
        %979 = sbr.rel (%p977) target = $region104
      $region103: #{seq2seq_forward.7} parent=99 // pred_region
        %p980 = scmp.lt.s32.totalorder %s38, 4
        %s981 = scalar_select %p980, %s38, 4
        %s982 = smul.addr %s981, 2
        %s983 = scalar_lea.vmem %s18, %s982
      $region104: #{seq2seq_forward.7} parent=99 // pred_fallthru
        _
    $region100: #{seq2seq_forward.7} parent=5 // pred_fallthru
      _
  $region6: #{seq2seq_forward.7} parent=0 // loop_footer
    %s36 = sadd.s32 1, %s32
  $region7: #{seq2seq_forward.7} parent=0 // loop_footer_branch
    %31 = sbr.rel target = $region3
  $region8: #{seq2seq_forward.7} parent=0 // loop_exit
    _

</llo_original>
